<compile_context>
chip_gen: v7x
topology: tpu7x:2x2x1
jax: 0.10.0
libtpu: 0.0.40
codegen_flags: <defaults>
</compile_context>

<pallas_src>
import functools

import numpy as np
import jax
import jax.numpy as jnp
from jax.experimental import pallas as pl
from jax.experimental.pallas import tpu as pltpu

P_HI = jax.lax.Precision.HIGHEST


def bigru_kernel(*refs, seq_len, tt, hidden_size, fused, unroll):
    """One grid step = `tt` timesteps of both GRU directions.

    Forward direction processes original times [g*tt, g*tt+tt-1]; backward direction
    processes original times [seq_len-1-g*tt, ...] downwards (its gi half and out blocks
    are time-reversed in the wrapper / via a reversed out index_map).  Padded-sequence
    semantics are reproduced with a per-batch length mask: state updates and outputs are
    suppressed for t >= length[b].
    """
    if fused:
        (gi_ref, len_ref, whh_ref, bhhn_ref,
         out_f_ref, out_b_ref, hid_ref, h_scr) = refs
    else:
        (gi_ref, len_ref, whh_f_ref, whh_b_ref, bhhn_ref,
         out_f_ref, out_b_ref, hid_ref, h_scr) = refs

    g = pl.program_id(0)
    H = hidden_size
    B = h_scr.shape[0]

    @pl.when(g == 0)
    def _():
        h_scr[...] = jnp.zeros_like(h_scr)

    lens = len_ref[...]                       # (B, 1) int32
    bhhn = bhhn_ref[...]                      # (1, 2H) = [b_hh_n_f | b_hh_n_b]

    if fused:
        # Single block-structured hidden matmul; gate columns interleaved across the two
        # directions: [r_f r_b | z_f z_b | n_f n_b].  Carry h = [h_f | h_b] (B, 2H).
        whh = whh_ref[...]                    # (2H, 6H)
        # Column -> direction map, hoisted out of the loop.
        col_fwd = jax.lax.broadcasted_iota(jnp.int32, (B, 2 * H), 1) < H

        def step(s, h):
            t_f = g * tt + s                  # original time, forward direction
            t_b = seq_len - 1 - t_f           # original time, backward direction

            gh = jnp.dot(h, whh, preferred_element_type=jnp.float32, precision=P_HI)
            gi_s = gi_ref[s].astype(jnp.float32)                  # (B, 6H)

            # One wide sigmoid over [r_f r_b z_f z_b], one wide tanh over [n_f n_b].
            rz = jax.nn.sigmoid(gi_s[:, :4 * H] + gh[:, :4 * H])  # r/z biases pre-folded
            r = rz[:, :2 * H]
            z = rz[:, 2 * H:]
            n = jnp.tanh(gi_s[:, 4 * H:] + r * (gh[:, 4 * H:] + bhhn))
            h_raw = (1.0 - z) * n + z * h                          # (B, 2H)

            # Per-column length mask (forward cols use t_f, backward cols use t_b).
            valid = jnp.where(col_fwd, t_f, t_b) < lens            # (B, 2H) bool
            outv = jnp.where(valid, h_raw, 0.0)
            out_f_ref[s] = outv[:, :H].astype(out_f_ref.dtype)
            out_b_ref[tt - 1 - s] = outv[:, H:].astype(out_b_ref.dtype)
            return jnp.where(valid, h_raw, h)

        h_fin = jax.lax.fori_loop(0, tt, step, h_scr[...], unroll=unroll)
        h_scr[...] = h_fin                    # persist carry across grid steps (once)
        h_f_fin = h_fin[:, :H]
        h_b_fin = h_fin[:, H:]
    else:
        # Non-fused path (e.g. v5e with 2H > 128): two independent per-direction matmuls,
        # per-direction gi layout [r_f z_f n_f | r_b z_b n_b]; carry is a (h_f, h_b) pair.
        whh_f = whh_f_ref[...]                # (H, 3H)
        whh_b = whh_b_ref[...]                # (H, 3H)
        bhh_n_f = bhhn[:, :H]
        bhh_n_b = bhhn[:, H:]

        def gru_dir(gi_d, gh_d, bhh_n, h_prev):
            rz = jax.nn.sigmoid(gi_d[:, :2 * H] + gh_d[:, :2 * H])
            n = jnp.tanh(gi_d[:, 2 * H:] + rz[:, :H] * (gh_d[:, 2 * H:] + bhh_n))
            z = rz[:, H:]
            return (1.0 - z) * n + z * h_prev

        def step(s, carry):
            h_f, h_b = carry
            t_f = g * tt + s
            t_b = seq_len - 1 - t_f

            gi_s = gi_ref[s].astype(jnp.float32)                   # (B, 6H)
            gh_f = jnp.dot(h_f, whh_f, preferred_element_type=jnp.float32, precision=P_HI)
            gh_b = jnp.dot(h_b, whh_b, preferred_element_type=jnp.float32, precision=P_HI)

            hf_raw = gru_dir(gi_s[:, :3 * H], gh_f, bhh_n_f, h_f)
            hb_raw = gru_dir(gi_s[:, 3 * H:], gh_b, bhh_n_b, h_b)

            valid_f = t_f < lens              # (B, 1) bool
            valid_b = t_b < lens
            out_f_ref[s] = jnp.where(valid_f, hf_raw, 0.0).astype(out_f_ref.dtype)
            out_b_ref[tt - 1 - s] = jnp.where(valid_b, hb_raw, 0.0).astype(out_b_ref.dtype)
            return (jnp.where(valid_f, hf_raw, h_f), jnp.where(valid_b, hb_raw, h_b))

        h0 = h_scr[...]
        h_f_fin, h_b_fin = jax.lax.fori_loop(
            0, tt, step, (h0[:, :H], h0[:, H:]), unroll=unroll)
        h_scr[:, :H] = h_f_fin
        h_scr[:, H:] = h_b_fin

    # Final GRU hidden state, written only once (last grid step).
    @pl.when(g == pl.num_programs(0) - 1)
    def _():
        hid_ref[0] = h_f_fin
        hid_ref[1] = h_b_fin


def _full_spec(shape):
    n = len(shape)
    return pl.BlockSpec(shape, lambda g, n=n: (0,) * n)


def _mxu_native_k():
    """Native MXU K width: 128 on <=v5, 256 on v6e/v7x (conservative on unknown kinds)."""
    try:
        kind = jax.devices()[0].device_kind.lower()
    except Exception:
        return 128
    return 256 if any(tag in kind for tag in ("v6", "v7", "6e", "7x")) else 128


def _vmem_bytes_estimate(tt, B, H, stream_bytes):
    gi = 2 * tt * B * 6 * H * stream_bytes        # gi_pair, double-buffered
    outs = 2 * 2 * tt * B * H * stream_bytes      # out_f + out_b, double-buffered
    weights = (2 * H) * (6 * H) * 4 + 2 * H * 4   # W_hh block + n-gate hidden bias
    misc = 4 * B * H * 4 + B * 2 * H * 4 + (1 << 16)  # hidden out, scratch, slack
    return gi + outs + weights + misc


def encoder_rnn_forward(input_seq, input_lengths, params, tt=32,
                        stream_dtype=jnp.float32, fuse_hidden_matmul=None):
    """input_seq: (T, B) int32 tokens.  input_lengths: (B,) int32 (sorted descending,
    like pack_padded_sequence expects).  Returns (outputs (T,B,H), hidden (2,B,H))."""
    f32 = jnp.float32
    emb_table = params["embedding"]
    H = emb_table.shape[1]
    embedded = jnp.take(emb_table, input_seq, axis=0).astype(f32)  # (T,B,H) gather (glue)
    T, B, _ = embedded.shape

    # Generation-aware hidden-matmul fusion: fuse only when 2H fits one MXU K-pass.
    fused = (2 * H) <= _mxu_native_k() if fuse_hidden_matmul is None else bool(fuse_hidden_matmul)

    # ---- hoisted input projection: one big matmul for all timesteps & both directions,
    #      with the r/z-gate hidden biases folded in (n-gate b_hh must stay inside r*(...)).
    zero_h = jnp.zeros((1, H), f32)
    bias_f = params["bih_f"] + jnp.concatenate([params["bhh_f"][:, :2 * H], zero_h], axis=1)
    bias_b = params["bih_b"] + jnp.concatenate([params["bhh_b"][:, :2 * H], zero_h], axis=1)
    wih_cat = jnp.concatenate([params["wih_f"], params["wih_b"]], axis=1)     # (H, 6H)
    gi = jnp.dot(embedded.reshape(T * B, H), wih_cat, precision=P_HI)
    gi = gi + jnp.concatenate([bias_f, bias_b], axis=1)
    gi = gi.reshape(T, B, 6 * H)
    gi_f = gi[:, :, :3 * H]                                                   # fwd  [r z n]
    gi_b = gi[:, :, 3 * H:]                                                   # bwd  [r z n]

    # ---- time blocking: clamp tt so the double-buffered working set fits every chip ----
    stream_bytes = jnp.dtype(stream_dtype).itemsize
    tt = max(1, min(int(tt), T))
    budget = 24 * (1 << 20)                   # conservative incl. v7x's 64 MiB VMEM
    while tt > 1 and _vmem_bytes_estimate(tt, B, H, stream_bytes) > budget:
        tt //= 2
    T_pad = pl.cdiv(T, tt) * tt
    if T_pad != T:
        pad = ((0, T_pad - T), (0, 0), (0, 0))
        gi_f = jnp.pad(gi_f, pad)             # padded steps have t >= length[b] -> masked
        gi_b = jnp.pad(gi_b, pad)
    num_blocks = T_pad // tt

    # ---- pair the streams: row t carries fwd-time t and bwd-time (T_pad-1-t) together ----
    gi_b_rev = gi_b[::-1]
    if fused:
        # interleaved gate layout [r_f r_b | z_f z_b | n_f n_b]
        gi_pair = jnp.concatenate(
            [gi_f[..., 0:H], gi_b_rev[..., 0:H],
             gi_f[..., H:2 * H], gi_b_rev[..., H:2 * H],
             gi_f[..., 2 * H:], gi_b_rev[..., 2 * H:]], axis=-1)
    else:
        gi_pair = jnp.concatenate([gi_f, gi_b_rev], axis=-1)                  # [rzn_f|rzn_b]
    gi_pair = gi_pair.astype(stream_dtype)

    lens2d = input_lengths.reshape(B, 1).astype(jnp.int32)
    bhhn = jnp.concatenate([params["bhh_f"][:, 2 * H:], params["bhh_b"][:, 2 * H:]], axis=1)

    if fused:
        Wf, Wb = params["whh_f"], params["whh_b"]
        whh_blk = jnp.zeros((2 * H, 6 * H), f32)
        whh_blk = whh_blk.at[:H, 0:H].set(Wf[:, 0:H])                 # h_f -> r_f
        whh_blk = whh_blk.at[H:, H:2 * H].set(Wb[:, 0:H])             # h_b -> r_b
        whh_blk = whh_blk.at[:H, 2 * H:3 * H].set(Wf[:, H:2 * H])     # h_f -> z_f
        whh_blk = whh_blk.at[H:, 3 * H:4 * H].set(Wb[:, H:2 * H])     # h_b -> z_b
        whh_blk = whh_blk.at[:H, 4 * H:5 * H].set(Wf[:, 2 * H:3 * H])  # h_f -> n_f
        whh_blk = whh_blk.at[H:, 5 * H:6 * H].set(Wb[:, 2 * H:3 * H])  # h_b -> n_b
        weight_args = (whh_blk, bhhn)
        weight_specs = [_full_spec((2 * H, 6 * H)), _full_spec((1, 2 * H))]
    else:
        weight_args = (params["whh_f"], params["whh_b"], bhhn)
        weight_specs = [_full_spec((H, 3 * H)), _full_spec((H, 3 * H)), _full_spec((1, 2 * H))]

    unroll = max(1, min(8, tt))
    vmem_limit = int(max(16 * (1 << 20),
                         min(48 * (1 << 20),
                             2 * _vmem_bytes_estimate(tt, B, H, stream_bytes))))

    kernel = functools.partial(bigru_kernel, seq_len=T_pad, tt=tt,
                               hidden_size=H, fused=fused, unroll=unroll)

    out_f, out_b, hidden = pl.pallas_call(
        kernel,
        out_shape=(
            jax.ShapeDtypeStruct((T_pad, B, H), stream_dtype),
            jax.ShapeDtypeStruct((T_pad, B, H), stream_dtype),
            jax.ShapeDtypeStruct((2, B, H), jnp.float32),
        ),
        grid_spec=pltpu.PrefetchScalarGridSpec(
            num_scalar_prefetch=0,
            grid=(num_blocks,),
            in_specs=[
                pl.BlockSpec((tt, B, 6 * H), lambda g: (g, 0, 0)),    # paired gi stream
                _full_spec((B, 1)),                                    # lengths
            ] + weight_specs,
            out_specs=[
                pl.BlockSpec((tt, B, H), lambda g: (g, 0, 0)),                        # fwd out
                pl.BlockSpec((tt, B, H), lambda g: (num_blocks - 1 - g, 0, 0)),       # bwd out
                pl.BlockSpec((2, B, H), lambda g: (0, 0, 0)),                         # final h
            ],
            scratch_shapes=[pltpu.VMEM((B, 2 * H), jnp.float32)],  # [h_f | h_b] carry
        ),
        compiler_params=pltpu.CompilerParams(
            dimension_semantics=("arbitrary",),
            vmem_limit_bytes=vmem_limit),
    )(gi_pair, lens2d, *weight_args)

    # Direction sum (outputs[:,:,:H] + outputs[:,:,H:]) — plain jnp add, XLA tiles it.
    outputs = out_f[:T].astype(f32) + out_b[:T].astype(f32)
    return outputs, hidden


# ---------------- pure-JAX reference (pack/pad + bi-GRU semantics) ----------------
def _ref_encoder(input_seq, input_lengths, params):
    emb_table = params["embedding"]
    H = emb_table.shape[1]
    embedded = jnp.take(emb_table, input_seq, axis=0)
    T, B, _ = embedded.shape
    lens = input_lengths

    def make_step(wih, whh, bih, bhh):
        def f(h, xt_t):
            x_t, t = xt_t
            gi = jnp.dot(x_t, wih, precision=P_HI) + bih
            gh = jnp.dot(h, whh, precision=P_HI) + bhh
            r = jax.nn.sigmoid(gi[:, :H] + gh[:, :H])
            z = jax.nn.sigmoid(gi[:, H:2 * H] + gh[:, H:2 * H])
            n = jnp.tanh(gi[:, 2 * H:] + r * gh[:, 2 * H:])
            h_new = (1.0 - z) * n + z * h
            valid = (t < lens)[:, None]
            h = jnp.where(valid, h_new, h)
            out = jnp.where(valid, h_new, 0.0)
            return h, out
        return f

    h0 = jnp.zeros((B, H), jnp.float32)
    ts = jnp.arange(T)
    h_f, out_f = jax.lax.scan(make_step(params["wih_f"], params["whh_f"],
                                        params["bih_f"][0], params["bhh_f"][0]),
                              h0, (embedded, ts))
    h_b, out_b_rev = jax.lax.scan(make_step(params["wih_b"], params["whh_b"],
                                            params["bih_b"][0], params["bhh_b"][0]),
                                  h0, (embedded[::-1], ts[::-1]))
    out_b = out_b_rev[::-1]
    return out_f + out_b, jnp.stack([h_f, h_b], axis=0)


if __name__ == "__main__":
    T, B, H, V = 10, 2, 32, 20  # seq len, batch, hidden_size, vocab size
    key = jax.random.PRNGKey(0)
    ks = jax.random.split(key, 12)

    params = {
        "embedding": jax.random.normal(ks[0], (V, H), jnp.float32) * 0.1,
        # GRU weights, pre-transposed to (H, 3H); gate order r, z, n (PyTorch convention)
        "wih_f": jax.random.normal(ks[1], (H, 3 * H), jnp.float32) * 0.1,
        "whh_f": jax.random.normal(ks[2], (H, 3 * H), jnp.float32) * 0.1,
        "bih_f": jax.random.normal(ks[3], (1, 3 * H), jnp.float32) * 0.1,
        "bhh_f": jax.random.normal(ks[4], (1, 3 * H), jnp.float32) * 0.1,
        "wih_b": jax.random.normal(ks[5], (H, 3 * H), jnp.float32) * 0.1,
        "whh_b": jax.random.normal(ks[6], (H, 3 * H), jnp.float32) * 0.1,
        "bih_b": jax.random.normal(ks[7], (1, 3 * H), jnp.float32) * 0.1,
        "bhh_b": jax.random.normal(ks[8], (1, 3 * H), jnp.float32) * 0.1,
    }

    input_seq = jax.random.randint(ks[9], (T, B), 0, V, dtype=jnp.int32)
    input_lengths = jnp.array([10, 6], dtype=jnp.int32)  # sorted descending (pack_padded_sequence)

    ref_out, ref_hid = _ref_encoder(input_seq, input_lengths, params)

    # (1) auto (fused on every current chip since 2H=64): tt=4 -> 3 time blocks incl. one
    #     padded block; exercises multi-block vreg carry, reversed backward blocks,
    #     time padding and per-batch length masking.
    fwd_fused = jax.jit(lambda seq, lens: encoder_rnn_forward(seq, lens, params, tt=4))
    out1, hid1 = fwd_fused(input_seq, input_lengths)
    jax.block_until_ready((out1, hid1))
    assert out1.shape == (T, B, H) and hid1.shape == (2, B, H)
    np.testing.assert_allclose(np.asarray(out1), np.asarray(ref_out), atol=1e-4, rtol=1e-4)
    np.testing.assert_allclose(np.asarray(hid1), np.asarray(ref_hid), atol=1e-4, rtol=1e-4)

    # (2) forced non-fused path (the v5e large-H configuration), different time block.
    fwd_split = jax.jit(lambda seq, lens: encoder_rnn_forward(
        seq, lens, params, tt=5, fuse_hidden_matmul=False))
    out2, hid2 = fwd_split(input_seq, input_lengths)
    jax.block_until_ready((out2, hid2))
    np.testing.assert_allclose(np.asarray(out2), np.asarray(ref_out), atol=1e-4, rtol=1e-4)
    np.testing.assert_allclose(np.asarray(hid2), np.asarray(ref_hid), atol=1e-4, rtol=1e-4)

    print("KERNEL_OK")
</pallas_src>

<mosaic_0001>
module attributes {stable_mosaic.version = 11 : i64} {
  func.func @bigru_kernel(%arg0: i32, %arg1: memref<4x2x192xf32, #tpu.memory_space<vmem>>, %arg2: memref<2x1xi32, #tpu.memory_space<vmem>>, %arg3: memref<64x192xf32, #tpu.memory_space<vmem>>, %arg4: memref<1x64xf32, #tpu.memory_space<vmem>>, %arg5: memref<4x2x32xf32, #tpu.memory_space<vmem>>, %arg6: memref<4x2x32xf32, #tpu.memory_space<vmem>>, %arg7: memref<2x2x32xf32, #tpu.memory_space<vmem>>, %arg8: memref<2x64xf32, #tpu.memory_space<vmem>>) attributes {dimension_semantics = [#tpu.dimension_semantics<arbitrary>], iteration_bounds = array<i64: 3>, scalar_prefetch = 0 : i64, scratch_operands = 1 : i64, tpu.core_type = #tpu.core_type<tc>, window_params = [{transform_indices = @transform_0, window_bounds = array<i64: 4, 2, 192>}, {pipeline_mode = #tpu.pipeline_mode<synchronous>, transform_indices = @transform_1, window_bounds = array<i64: 2, 1>}, {pipeline_mode = #tpu.pipeline_mode<synchronous>, transform_indices = @transform_2, window_bounds = array<i64: 64, 192>}, {pipeline_mode = #tpu.pipeline_mode<synchronous>, transform_indices = @transform_3, window_bounds = array<i64: 1, 64>}, {transform_indices = @transform_4, window_bounds = array<i64: 4, 2, 32>}, {transform_indices = @transform_5, window_bounds = array<i64: 4, 2, 32>}, {pipeline_mode = #tpu.pipeline_mode<synchronous>, transform_indices = @transform_6, window_bounds = array<i64: 2, 2, 32>}]} {
    %c0_i32 = arith.constant 0 : i32
    %0 = arith.cmpi eq, %arg0, %c0_i32 : i32
    %1 = arith.extui %0 : i1 to i32
    %c0_i32_0 = arith.constant 0 : i32
    %2 = arith.cmpi ne, %1, %c0_i32_0 : i32
    scf.if %2 {
      %cst_63 = arith.constant 0.000000e+00 : f32
      %208 = vector.broadcast %cst_63 : f32 to vector<2x64xf32>
      %c0_64 = arith.constant 0 : index
      %c0_65 = arith.constant 0 : index
      %209 = vector.load %arg8[%c0_64, %c0_65] : memref<2x64xf32, #tpu.memory_space<vmem>>, vector<2x64xf32>
      tpu.vector_store %arg8[%c0_64, %c0_65], %208 {strides = array<i32>} : memref<2x64xf32, #tpu.memory_space<vmem>>, vector<2x64xf32>,
    } else {
    }
    %c0 = arith.constant 0 : index
    %c0_1 = arith.constant 0 : index
    %3 = vector.load %arg2[%c0, %c0_1] : memref<2x1xi32, #tpu.memory_space<vmem>>, vector<2x1xi32>
    %c0_2 = arith.constant 0 : index
    %c0_3 = arith.constant 0 : index
    %4 = vector.load %arg4[%c0_2, %c0_3] : memref<1x64xf32, #tpu.memory_space<vmem>>, vector<1x64xf32>
    %c0_4 = arith.constant 0 : index
    %c0_5 = arith.constant 0 : index
    %5 = vector.load %arg3[%c0_4, %c0_5] : memref<64x192xf32, #tpu.memory_space<vmem>>, vector<64x192xf32>
    %6 = tpu.iota {dimensions = array<i32: 1>} : vector<2x64xi32>
    %c32_i32 = arith.constant 32 : i32
    %7 = vector.broadcast %c32_i32 : i32 to vector<2x64xi32>
    %8 = arith.cmpi slt, %6, %7 : vector<2x64xi32>
    %c0_6 = arith.constant 0 : index
    %c0_7 = arith.constant 0 : index
    %9 = vector.load %arg8[%c0_6, %c0_7] : memref<2x64xf32, #tpu.memory_space<vmem>>, vector<2x64xf32>
    %c0_i32_8 = arith.constant 0 : i32
    %c4_i32 = arith.constant 4 : i32
    %10 = arith.muli %arg0, %c4_i32 : i32
    %11 = arith.addi %10, %c0_i32_8 : i32
    %c11_i32 = arith.constant 11 : i32
    %12 = arith.subi %c11_i32, %11 : i32
    %cst = arith.constant dense<0.000000e+00> : vector<2x192xf32>
    %13 = tpu.matmul %9, %5, %cst {dimension_numbers = #tpu.dot_dimension_numbers<[1], [0], [0], [1], [0, 0, 1, 1], [], []>, precision = #tpu.contract_precision<fp32>} : vector<2x64xf32>, vector<64x192xf32>, vector<2x192xf32> -> vector<2x192xf32>
    %14 = arith.index_cast %c0_i32_8 : i32 to index
    %c0_9 = arith.constant 0 : index
    %c0_10 = arith.constant 0 : index
    %15 = vector.load %arg1[%14, %c0_9, %c0_10] : memref<4x2x192xf32, #tpu.memory_space<vmem>>, vector<1x2x192xf32>
    %16 = vector.shape_cast %15 : vector<1x2x192xf32> to vector<2x192xf32>
    %17 = vector.extract_strided_slice %16 {offsets = [0, 0], sizes = [2, 128], strides = [1, 1]} : vector<2x192xf32> to vector<2x128xf32>
    %18 = vector.extract_strided_slice %13 {offsets = [0, 0], sizes = [2, 128], strides = [1, 1]} : vector<2x192xf32> to vector<2x128xf32>
    %19 = arith.addf %17, %18 : vector<2x128xf32>
    %20 = arith.negf %19 : vector<2x128xf32>
    %21 = math.exp %20 : vector<2x128xf32>
    %cst_11 = arith.constant 1.000000e+00 : f32
    %22 = vector.broadcast %cst_11 : f32 to vector<2x128xf32>
    %23 = arith.addf %22, %21 : vector<2x128xf32>
    %24 = arith.divf %22, %23 : vector<2x128xf32>
    %25 = vector.extract_strided_slice %24 {offsets = [0, 0], sizes = [2, 64], strides = [1, 1]} : vector<2x128xf32> to vector<2x64xf32>
    %26 = vector.extract_strided_slice %24 {offsets = [0, 64], sizes = [2, 64], strides = [1, 1]} : vector<2x128xf32> to vector<2x64xf32>
    %27 = vector.extract_strided_slice %16 {offsets = [0, 128], sizes = [2, 64], strides = [1, 1]} : vector<2x192xf32> to vector<2x64xf32>
    %28 = vector.extract_strided_slice %13 {offsets = [0, 128], sizes = [2, 64], strides = [1, 1]} : vector<2x192xf32> to vector<2x64xf32>
    %29 = vector.broadcast %4 : vector<1x64xf32> to vector<2x64xf32>
    %30 = arith.addf %28, %29 : vector<2x64xf32>
    %31 = arith.mulf %25, %30 : vector<2x64xf32>
    %32 = arith.addf %27, %31 : vector<2x64xf32>
    %33 = math.tanh %32 : vector<2x64xf32>
    %cst_12 = arith.constant 1.000000e+00 : f32
    %34 = vector.broadcast %cst_12 : f32 to vector<2x64xf32>
    %35 = arith.subf %34, %26 : vector<2x64xf32>
    %36 = arith.mulf %35, %33 : vector<2x64xf32>
    %37 = arith.mulf %26, %9 : vector<2x64xf32>
    %38 = arith.addf %36, %37 : vector<2x64xf32>
    %39 = vector.broadcast %11 : i32 to vector<2x64xi32>
    %40 = vector.broadcast %12 : i32 to vector<2x64xi32>
    %41 = arith.select %8, %39, %40 : vector<2x64xi1>, vector<2x64xi32>
    %42 = vector.broadcast %3 : vector<2x1xi32> to vector<2x64xi32>
    %43 = arith.cmpi slt, %41, %42 : vector<2x64xi32>
    %cst_13 = arith.constant 0.000000e+00 : f32
    %44 = vector.broadcast %cst_13 : f32 to vector<2x64xf32>
    %45 = arith.select %43, %38, %44 : vector<2x64xi1>, vector<2x64xf32>
    %46 = vector.extract_strided_slice %45 {offsets = [0, 0], sizes = [2, 32], strides = [1, 1]} : vector<2x64xf32> to vector<2x32xf32>
    %47 = arith.index_cast %c0_i32_8 : i32 to index
    %c0_14 = arith.constant 0 : index
    %c0_15 = arith.constant 0 : index
    %48 = vector.load %arg5[%47, %c0_14, %c0_15] : memref<4x2x32xf32, #tpu.memory_space<vmem>>, vector<1x2x32xf32>
    %49 = vector.shape_cast %48 : vector<1x2x32xf32> to vector<2x32xf32>
    %50 = vector.shape_cast %46 : vector<2x32xf32> to vector<1x2x32xf32>
    tpu.vector_store %arg5[%47, %c0_14, %c0_15], %50 {strides = array<i32>} : memref<4x2x32xf32, #tpu.memory_space<vmem>>, vector<1x2x32xf32>,
    %51 = vector.extract_strided_slice %45 {offsets = [0, 32], sizes = [2, 32], strides = [1, 1]} : vector<2x64xf32> to vector<2x32xf32>
    %c3_i32 = arith.constant 3 : i32
    %52 = arith.subi %c3_i32, %c0_i32_8 : i32
    %53 = arith.index_cast %52 : i32 to index
    %c0_16 = arith.constant 0 : index
    %c0_17 = arith.constant 0 : index
    %54 = vector.load %arg6[%53, %c0_16, %c0_17] : memref<4x2x32xf32, #tpu.memory_space<vmem>>, vector<1x2x32xf32>
    %55 = vector.shape_cast %54 : vector<1x2x32xf32> to vector<2x32xf32>
    %56 = vector.shape_cast %51 : vector<2x32xf32> to vector<1x2x32xf32>
    tpu.vector_store %arg6[%53, %c0_16, %c0_17], %56 {strides = array<i32>} : memref<4x2x32xf32, #tpu.memory_space<vmem>>, vector<1x2x32xf32>,
    %57 = arith.select %43, %38, %9 : vector<2x64xi1>, vector<2x64xf32>
    %c1_i32 = arith.constant 1 : i32
    %c4_i32_18 = arith.constant 4 : i32
    %58 = arith.muli %arg0, %c4_i32_18 : i32
    %59 = arith.addi %58, %c1_i32 : i32
    %c11_i32_19 = arith.constant 11 : i32
    %60 = arith.subi %c11_i32_19, %59 : i32
    %cst_20 = arith.constant dense<0.000000e+00> : vector<2x192xf32>
    %61 = tpu.matmul %57, %5, %cst_20 {dimension_numbers = #tpu.dot_dimension_numbers<[1], [0], [0], [1], [0, 0, 1, 1], [], []>, precision = #tpu.contract_precision<fp32>} : vector<2x64xf32>, vector<64x192xf32>, vector<2x192xf32> -> vector<2x192xf32>
    %62 = arith.index_cast %c1_i32 : i32 to index
    %c0_21 = arith.constant 0 : index
    %c0_22 = arith.constant 0 : index
    %63 = vector.load %arg1[%62, %c0_21, %c0_22] : memref<4x2x192xf32, #tpu.memory_space<vmem>>, vector<1x2x192xf32>
    %64 = vector.shape_cast %63 : vector<1x2x192xf32> to vector<2x192xf32>
    %65 = vector.extract_strided_slice %64 {offsets = [0, 0], sizes = [2, 128], strides = [1, 1]} : vector<2x192xf32> to vector<2x128xf32>
    %66 = vector.extract_strided_slice %61 {offsets = [0, 0], sizes = [2, 128], strides = [1, 1]} : vector<2x192xf32> to vector<2x128xf32>
    %67 = arith.addf %65, %66 : vector<2x128xf32>
    %68 = arith.negf %67 : vector<2x128xf32>
    %69 = math.exp %68 : vector<2x128xf32>
    %cst_23 = arith.constant 1.000000e+00 : f32
    %70 = vector.broadcast %cst_23 : f32 to vector<2x128xf32>
    %71 = arith.addf %70, %69 : vector<2x128xf32>
    %72 = arith.divf %70, %71 : vector<2x128xf32>
    %73 = vector.extract_strided_slice %72 {offsets = [0, 0], sizes = [2, 64], strides = [1, 1]} : vector<2x128xf32> to vector<2x64xf32>
    %74 = vector.extract_strided_slice %72 {offsets = [0, 64], sizes = [2, 64], strides = [1, 1]} : vector<2x128xf32> to vector<2x64xf32>
    %75 = vector.extract_strided_slice %64 {offsets = [0, 128], sizes = [2, 64], strides = [1, 1]} : vector<2x192xf32> to vector<2x64xf32>
    %76 = vector.extract_strided_slice %61 {offsets = [0, 128], sizes = [2, 64], strides = [1, 1]} : vector<2x192xf32> to vector<2x64xf32>
    %77 = vector.broadcast %4 : vector<1x64xf32> to vector<2x64xf32>
    %78 = arith.addf %76, %77 : vector<2x64xf32>
    %79 = arith.mulf %73, %78 : vector<2x64xf32>
    %80 = arith.addf %75, %79 : vector<2x64xf32>
    %81 = math.tanh %80 : vector<2x64xf32>
    %cst_24 = arith.constant 1.000000e+00 : f32
    %82 = vector.broadcast %cst_24 : f32 to vector<2x64xf32>
    %83 = arith.subf %82, %74 : vector<2x64xf32>
    %84 = arith.mulf %83, %81 : vector<2x64xf32>
    %85 = arith.mulf %74, %57 : vector<2x64xf32>
    %86 = arith.addf %84, %85 : vector<2x64xf32>
    %87 = vector.broadcast %59 : i32 to vector<2x64xi32>
    %88 = vector.broadcast %60 : i32 to vector<2x64xi32>
    %89 = arith.select %8, %87, %88 : vector<2x64xi1>, vector<2x64xi32>
    %90 = vector.broadcast %3 : vector<2x1xi32> to vector<2x64xi32>
    %91 = arith.cmpi slt, %89, %90 : vector<2x64xi32>
    %cst_25 = arith.constant 0.000000e+00 : f32
    %92 = vector.broadcast %cst_25 : f32 to vector<2x64xf32>
    %93 = arith.select %91, %86, %92 : vector<2x64xi1>, vector<2x64xf32>
    %94 = vector.extract_strided_slice %93 {offsets = [0, 0], sizes = [2, 32], strides = [1, 1]} : vector<2x64xf32> to vector<2x32xf32>
    %95 = arith.index_cast %c1_i32 : i32 to index
    %c0_26 = arith.constant 0 : index
    %c0_27 = arith.constant 0 : index
    %96 = vector.load %arg5[%95, %c0_26, %c0_27] : memref<4x2x32xf32, #tpu.memory_space<vmem>>, vector<1x2x32xf32>
    %97 = vector.shape_cast %96 : vector<1x2x32xf32> to vector<2x32xf32>
    %98 = vector.shape_cast %94 : vector<2x32xf32> to vector<1x2x32xf32>
    tpu.vector_store %arg5[%95, %c0_26, %c0_27], %98 {strides = array<i32>} : memref<4x2x32xf32, #tpu.memory_space<vmem>>, vector<1x2x32xf32>,
    %99 = vector.extract_strided_slice %93 {offsets = [0, 32], sizes = [2, 32], strides = [1, 1]} : vector<2x64xf32> to vector<2x32xf32>
    %c3_i32_28 = arith.constant 3 : i32
    %100 = arith.subi %c3_i32_28, %c1_i32 : i32
    %101 = arith.index_cast %100 : i32 to index
    %c0_29 = arith.constant 0 : index
    %c0_30 = arith.constant 0 : index
    %102 = vector.load %arg6[%101, %c0_29, %c0_30] : memref<4x2x32xf32, #tpu.memory_space<vmem>>, vector<1x2x32xf32>
    %103 = vector.shape_cast %102 : vector<1x2x32xf32> to vector<2x32xf32>
    %104 = vector.shape_cast %99 : vector<2x32xf32> to vector<1x2x32xf32>
    tpu.vector_store %arg6[%101, %c0_29, %c0_30], %104 {strides = array<i32>} : memref<4x2x32xf32, #tpu.memory_space<vmem>>, vector<1x2x32xf32>,
    %105 = arith.select %91, %86, %57 : vector<2x64xi1>, vector<2x64xf32>
    %c2_i32 = arith.constant 2 : i32
    %c4_i32_31 = arith.constant 4 : i32
    %106 = arith.muli %arg0, %c4_i32_31 : i32
    %107 = arith.addi %106, %c2_i32 : i32
    %c11_i32_32 = arith.constant 11 : i32
    %108 = arith.subi %c11_i32_32, %107 : i32
    %cst_33 = arith.constant dense<0.000000e+00> : vector<2x192xf32>
    %109 = tpu.matmul %105, %5, %cst_33 {dimension_numbers = #tpu.dot_dimension_numbers<[1], [0], [0], [1], [0, 0, 1, 1], [], []>, precision = #tpu.contract_precision<fp32>} : vector<2x64xf32>, vector<64x192xf32>, vector<2x192xf32> -> vector<2x192xf32>
    %110 = arith.index_cast %c2_i32 : i32 to index
    %c0_34 = arith.constant 0 : index
    %c0_35 = arith.constant 0 : index
    %111 = vector.load %arg1[%110, %c0_34, %c0_35] : memref<4x2x192xf32, #tpu.memory_space<vmem>>, vector<1x2x192xf32>
    %112 = vector.shape_cast %111 : vector<1x2x192xf32> to vector<2x192xf32>
    %113 = vector.extract_strided_slice %112 {offsets = [0, 0], sizes = [2, 128], strides = [1, 1]} : vector<2x192xf32> to vector<2x128xf32>
    %114 = vector.extract_strided_slice %109 {offsets = [0, 0], sizes = [2, 128], strides = [1, 1]} : vector<2x192xf32> to vector<2x128xf32>
    %115 = arith.addf %113, %114 : vector<2x128xf32>
    %116 = arith.negf %115 : vector<2x128xf32>
    %117 = math.exp %116 : vector<2x128xf32>
    %cst_36 = arith.constant 1.000000e+00 : f32
    %118 = vector.broadcast %cst_36 : f32 to vector<2x128xf32>
    %119 = arith.addf %118, %117 : vector<2x128xf32>
    %120 = arith.divf %118, %119 : vector<2x128xf32>
    %121 = vector.extract_strided_slice %120 {offsets = [0, 0], sizes = [2, 64], strides = [1, 1]} : vector<2x128xf32> to vector<2x64xf32>
    %122 = vector.extract_strided_slice %120 {offsets = [0, 64], sizes = [2, 64], strides = [1, 1]} : vector<2x128xf32> to vector<2x64xf32>
    %123 = vector.extract_strided_slice %112 {offsets = [0, 128], sizes = [2, 64], strides = [1, 1]} : vector<2x192xf32> to vector<2x64xf32>
    %124 = vector.extract_strided_slice %109 {offsets = [0, 128], sizes = [2, 64], strides = [1, 1]} : vector<2x192xf32> to vector<2x64xf32>
    %125 = vector.broadcast %4 : vector<1x64xf32> to vector<2x64xf32>
    %126 = arith.addf %124, %125 : vector<2x64xf32>
    %127 = arith.mulf %121, %126 : vector<2x64xf32>
    %128 = arith.addf %123, %127 : vector<2x64xf32>
    %129 = math.tanh %128 : vector<2x64xf32>
    %cst_37 = arith.constant 1.000000e+00 : f32
    %130 = vector.broadcast %cst_37 : f32 to vector<2x64xf32>
    %131 = arith.subf %130, %122 : vector<2x64xf32>
    %132 = arith.mulf %131, %129 : vector<2x64xf32>
    %133 = arith.mulf %122, %105 : vector<2x64xf32>
    %134 = arith.addf %132, %133 : vector<2x64xf32>
    %135 = vector.broadcast %107 : i32 to vector<2x64xi32>
    %136 = vector.broadcast %108 : i32 to vector<2x64xi32>
    %137 = arith.select %8, %135, %136 : vector<2x64xi1>, vector<2x64xi32>
    %138 = vector.broadcast %3 : vector<2x1xi32> to vector<2x64xi32>
    %139 = arith.cmpi slt, %137, %138 : vector<2x64xi32>
    %cst_38 = arith.constant 0.000000e+00 : f32
    %140 = vector.broadcast %cst_38 : f32 to vector<2x64xf32>
    %141 = arith.select %139, %134, %140 : vector<2x64xi1>, vector<2x64xf32>
    %142 = vector.extract_strided_slice %141 {offsets = [0, 0], sizes = [2, 32], strides = [1, 1]} : vector<2x64xf32> to vector<2x32xf32>
    %143 = arith.index_cast %c2_i32 : i32 to index
    %c0_39 = arith.constant 0 : index
    %c0_40 = arith.constant 0 : index
    %144 = vector.load %arg5[%143, %c0_39, %c0_40] : memref<4x2x32xf32, #tpu.memory_space<vmem>>, vector<1x2x32xf32>
    %145 = vector.shape_cast %144 : vector<1x2x32xf32> to vector<2x32xf32>
    %146 = vector.shape_cast %142 : vector<2x32xf32> to vector<1x2x32xf32>
    tpu.vector_store %arg5[%143, %c0_39, %c0_40], %146 {strides = array<i32>} : memref<4x2x32xf32, #tpu.memory_space<vmem>>, vector<1x2x32xf32>,
    %147 = vector.extract_strided_slice %141 {offsets = [0, 32], sizes = [2, 32], strides = [1, 1]} : vector<2x64xf32> to vector<2x32xf32>
    %c3_i32_41 = arith.constant 3 : i32
    %148 = arith.subi %c3_i32_41, %c2_i32 : i32
    %149 = arith.index_cast %148 : i32 to index
    %c0_42 = arith.constant 0 : index
    %c0_43 = arith.constant 0 : index
    %150 = vector.load %arg6[%149, %c0_42, %c0_43] : memref<4x2x32xf32, #tpu.memory_space<vmem>>, vector<1x2x32xf32>
    %151 = vector.shape_cast %150 : vector<1x2x32xf32> to vector<2x32xf32>
    %152 = vector.shape_cast %147 : vector<2x32xf32> to vector<1x2x32xf32>
    tpu.vector_store %arg6[%149, %c0_42, %c0_43], %152 {strides = array<i32>} : memref<4x2x32xf32, #tpu.memory_space<vmem>>, vector<1x2x32xf32>,
    %153 = arith.select %139, %134, %105 : vector<2x64xi1>, vector<2x64xf32>
    %c3_i32_44 = arith.constant 3 : i32
    %c4_i32_45 = arith.constant 4 : i32
    %154 = arith.muli %arg0, %c4_i32_45 : i32
    %155 = arith.addi %154, %c3_i32_44 : i32
    %c11_i32_46 = arith.constant 11 : i32
    %156 = arith.subi %c11_i32_46, %155 : i32
    %cst_47 = arith.constant dense<0.000000e+00> : vector<2x192xf32>
    %157 = tpu.matmul %153, %5, %cst_47 {dimension_numbers = #tpu.dot_dimension_numbers<[1], [0], [0], [1], [0, 0, 1, 1], [], []>, precision = #tpu.contract_precision<fp32>} : vector<2x64xf32>, vector<64x192xf32>, vector<2x192xf32> -> vector<2x192xf32>
    %158 = arith.index_cast %c3_i32_44 : i32 to index
    %c0_48 = arith.constant 0 : index
    %c0_49 = arith.constant 0 : index
    %159 = vector.load %arg1[%158, %c0_48, %c0_49] : memref<4x2x192xf32, #tpu.memory_space<vmem>>, vector<1x2x192xf32>
    %160 = vector.shape_cast %159 : vector<1x2x192xf32> to vector<2x192xf32>
    %161 = vector.extract_strided_slice %160 {offsets = [0, 0], sizes = [2, 128], strides = [1, 1]} : vector<2x192xf32> to vector<2x128xf32>
    %162 = vector.extract_strided_slice %157 {offsets = [0, 0], sizes = [2, 128], strides = [1, 1]} : vector<2x192xf32> to vector<2x128xf32>
    %163 = arith.addf %161, %162 : vector<2x128xf32>
    %164 = arith.negf %163 : vector<2x128xf32>
    %165 = math.exp %164 : vector<2x128xf32>
    %cst_50 = arith.constant 1.000000e+00 : f32
    %166 = vector.broadcast %cst_50 : f32 to vector<2x128xf32>
    %167 = arith.addf %166, %165 : vector<2x128xf32>
    %168 = arith.divf %166, %167 : vector<2x128xf32>
    %169 = vector.extract_strided_slice %168 {offsets = [0, 0], sizes = [2, 64], strides = [1, 1]} : vector<2x128xf32> to vector<2x64xf32>
    %170 = vector.extract_strided_slice %168 {offsets = [0, 64], sizes = [2, 64], strides = [1, 1]} : vector<2x128xf32> to vector<2x64xf32>
    %171 = vector.extract_strided_slice %160 {offsets = [0, 128], sizes = [2, 64], strides = [1, 1]} : vector<2x192xf32> to vector<2x64xf32>
    %172 = vector.extract_strided_slice %157 {offsets = [0, 128], sizes = [2, 64], strides = [1, 1]} : vector<2x192xf32> to vector<2x64xf32>
    %173 = vector.broadcast %4 : vector<1x64xf32> to vector<2x64xf32>
    %174 = arith.addf %172, %173 : vector<2x64xf32>
    %175 = arith.mulf %169, %174 : vector<2x64xf32>
    %176 = arith.addf %171, %175 : vector<2x64xf32>
    %177 = math.tanh %176 : vector<2x64xf32>
    %cst_51 = arith.constant 1.000000e+00 : f32
    %178 = vector.broadcast %cst_51 : f32 to vector<2x64xf32>
    %179 = arith.subf %178, %170 : vector<2x64xf32>
    %180 = arith.mulf %179, %177 : vector<2x64xf32>
    %181 = arith.mulf %170, %153 : vector<2x64xf32>
    %182 = arith.addf %180, %181 : vector<2x64xf32>
    %183 = vector.broadcast %155 : i32 to vector<2x64xi32>
    %184 = vector.broadcast %156 : i32 to vector<2x64xi32>
    %185 = arith.select %8, %183, %184 : vector<2x64xi1>, vector<2x64xi32>
    %186 = vector.broadcast %3 : vector<2x1xi32> to vector<2x64xi32>
    %187 = arith.cmpi slt, %185, %186 : vector<2x64xi32>
    %cst_52 = arith.constant 0.000000e+00 : f32
    %188 = vector.broadcast %cst_52 : f32 to vector<2x64xf32>
    %189 = arith.select %187, %182, %188 : vector<2x64xi1>, vector<2x64xf32>
    %190 = vector.extract_strided_slice %189 {offsets = [0, 0], sizes = [2, 32], strides = [1, 1]} : vector<2x64xf32> to vector<2x32xf32>
    %191 = arith.index_cast %c3_i32_44 : i32 to index
    %c0_53 = arith.constant 0 : index
    %c0_54 = arith.constant 0 : index
    %192 = vector.load %arg5[%191, %c0_53, %c0_54] : memref<4x2x32xf32, #tpu.memory_space<vmem>>, vector<1x2x32xf32>
    %193 = vector.shape_cast %192 : vector<1x2x32xf32> to vector<2x32xf32>
    %194 = vector.shape_cast %190 : vector<2x32xf32> to vector<1x2x32xf32>
    tpu.vector_store %arg5[%191, %c0_53, %c0_54], %194 {strides = array<i32>} : memref<4x2x32xf32, #tpu.memory_space<vmem>>, vector<1x2x32xf32>,
    %195 = vector.extract_strided_slice %189 {offsets = [0, 32], sizes = [2, 32], strides = [1, 1]} : vector<2x64xf32> to vector<2x32xf32>
    %c3_i32_55 = arith.constant 3 : i32
    %196 = arith.subi %c3_i32_55, %c3_i32_44 : i32
    %197 = arith.index_cast %196 : i32 to index
    %c0_56 = arith.constant 0 : index
    %c0_57 = arith.constant 0 : index
    %198 = vector.load %arg6[%197, %c0_56, %c0_57] : memref<4x2x32xf32, #tpu.memory_space<vmem>>, vector<1x2x32xf32>
    %199 = vector.shape_cast %198 : vector<1x2x32xf32> to vector<2x32xf32>
    %200 = vector.shape_cast %195 : vector<2x32xf32> to vector<1x2x32xf32>
    tpu.vector_store %arg6[%197, %c0_56, %c0_57], %200 {strides = array<i32>} : memref<4x2x32xf32, #tpu.memory_space<vmem>>, vector<1x2x32xf32>,
    %201 = arith.select %187, %182, %153 : vector<2x64xi1>, vector<2x64xf32>
    %c4_i32_58 = arith.constant 4 : i32
    %c0_59 = arith.constant 0 : index
    %c0_60 = arith.constant 0 : index
    %202 = vector.load %arg8[%c0_59, %c0_60] : memref<2x64xf32, #tpu.memory_space<vmem>>, vector<2x64xf32>
    tpu.vector_store %arg8[%c0_59, %c0_60], %201 {strides = array<i32>} : memref<2x64xf32, #tpu.memory_space<vmem>>, vector<2x64xf32>,
    %203 = vector.extract_strided_slice %201 {offsets = [0, 0], sizes = [2, 32], strides = [1, 1]} : vector<2x64xf32> to vector<2x32xf32>
    %204 = vector.extract_strided_slice %201 {offsets = [0, 32], sizes = [2, 32], strides = [1, 1]} : vector<2x64xf32> to vector<2x32xf32>
    %c2_i32_61 = arith.constant 2 : i32
    %205 = arith.cmpi eq, %arg0, %c2_i32_61 : i32
    %206 = arith.extui %205 : i1 to i32
    %c0_i32_62 = arith.constant 0 : i32
    %207 = arith.cmpi ne, %206, %c0_i32_62 : i32
    scf.if %207 {
      %c0_63 = arith.constant 0 : index
      %c0_64 = arith.constant 0 : index
      %c0_65 = arith.constant 0 : index
      %208 = vector.load %arg7[%c0_63, %c0_64, %c0_65] : memref<2x2x32xf32, #tpu.memory_space<vmem>>, vector<1x2x32xf32>
      %209 = vector.shape_cast %208 : vector<1x2x32xf32> to vector<2x32xf32>
      %210 = vector.shape_cast %203 : vector<2x32xf32> to vector<1x2x32xf32>
      tpu.vector_store %arg7[%c0_63, %c0_64, %c0_65], %210 {strides = array<i32>} : memref<2x2x32xf32, #tpu.memory_space<vmem>>, vector<1x2x32xf32>,
      %c1 = arith.constant 1 : index
      %c0_66 = arith.constant 0 : index
      %c0_67 = arith.constant 0 : index
      %211 = vector.load %arg7[%c1, %c0_66, %c0_67] : memref<2x2x32xf32, #tpu.memory_space<vmem>>, vector<1x2x32xf32>
      %212 = vector.shape_cast %211 : vector<1x2x32xf32> to vector<2x32xf32>
      %213 = vector.shape_cast %204 : vector<2x32xf32> to vector<1x2x32xf32>
      tpu.vector_store %arg7[%c1, %c0_66, %c0_67], %213 {strides = array<i32>} : memref<2x2x32xf32, #tpu.memory_space<vmem>>, vector<1x2x32xf32>,
    } else {
    }
    return
  }
  func.func @transform_0(%arg0: i32) -> (i32, i32, i32) {
    %c0_i32 = arith.constant 0 : i32
    %c0_i32_0 = arith.constant 0 : i32
    %c0_i32_1 = arith.constant 0 : i32
    return %arg0, %c0_i32, %c0_i32_0 : i32, i32, i32
  }
  func.func @transform_1(%arg0: i32) -> (i32, i32) {
    %c0_i32 = arith.constant 0 : i32
    %c0_i32_0 = arith.constant 0 : i32
    %c0_i32_1 = arith.constant 0 : i32
    return %c0_i32, %c0_i32_0 : i32, i32
  }
  func.func @transform_2(%arg0: i32) -> (i32, i32) {
    %c0_i32 = arith.constant 0 : i32
    %c0_i32_0 = arith.constant 0 : i32
    %c0_i32_1 = arith.constant 0 : i32
    return %c0_i32, %c0_i32_0 : i32, i32
  }
  func.func @transform_3(%arg0: i32) -> (i32, i32) {
    %c0_i32 = arith.constant 0 : i32
    %c0_i32_0 = arith.constant 0 : i32
    %c0_i32_1 = arith.constant 0 : i32
    return %c0_i32, %c0_i32_0 : i32, i32
  }
  func.func @transform_4(%arg0: i32) -> (i32, i32, i32) {
    %c0_i32 = arith.constant 0 : i32
    %c0_i32_0 = arith.constant 0 : i32
    %c0_i32_1 = arith.constant 0 : i32
    return %arg0, %c0_i32, %c0_i32_0 : i32, i32, i32
  }
  func.func @transform_5(%arg0: i32) -> (i32, i32, i32) {
    %c2_i32 = arith.constant 2 : i32
    %0 = arith.subi %c2_i32, %arg0 : i32
    %c0_i32 = arith.constant 0 : i32
    %c0_i32_0 = arith.constant 0 : i32
    %c0_i32_1 = arith.constant 0 : i32
    return %0, %c0_i32, %c0_i32_0 : i32, i32, i32
  }
  func.func @transform_6(%arg0: i32) -> (i32, i32, i32) {
    %c0_i32 = arith.constant 0 : i32
    %c0_i32_0 = arith.constant 0 : i32
    %c0_i32_1 = arith.constant 0 : i32
    %c0_i32_2 = arith.constant 0 : i32
    return %c0_i32, %c0_i32_0, %c0_i32_1 : i32, i32, i32
  }
}

</mosaic_0001>

<llo_original>
// kernel: reverse
$region0: #{reverse}
  #allocation0 [shape = 's32[1]{0}', space=sflag, size = 0x4, scoped, tag = 'scoped memory for reverse']
  %s0 = inlined_call_operand.vmem [shape: f32[12,2,32], index: 0, kind: input, shape index: {}]
  %s1 = inlined_call_operand.vmem [shape: f32[12,2,32], index: 1, kind: output, shape index: {}]
  %s2 = scalar_lea.vmem %s0, 22
  %v3 = vld [vmem:[%s2] sm:$0x3]
  %4 = vst [vmem:[%s1] sm:$0x3] %v3
  %s5 = scalar_lea.vmem %s0, 20
  %v6 = vld [vmem:[%s5] sm:$0x3]
  %s7 = scalar_lea.vmem %s1, 2
  %8 = vst [vmem:[%s7] sm:$0x3] %v6
  %s9 = scalar_lea.vmem %s0, 18
  %v10 = vld [vmem:[%s9] sm:$0x3]
  %s11 = scalar_lea.vmem %s1, 4
  %12 = vst [vmem:[%s11] sm:$0x3] %v10
  %s13 = scalar_lea.vmem %s0, 16
  %v14 = vld [vmem:[%s13] sm:$0x3]
  %s15 = scalar_lea.vmem %s1, 6
  %16 = vst [vmem:[%s15] sm:$0x3] %v14
  %s17 = scalar_lea.vmem %s0, 14
  %v18 = vld [vmem:[%s17] sm:$0x3]
  %s19 = scalar_lea.vmem %s1, 8
  %20 = vst [vmem:[%s19] sm:$0x3] %v18
  %s21 = scalar_lea.vmem %s0, 12
  %v22 = vld [vmem:[%s21] sm:$0x3]
  %s23 = scalar_lea.vmem %s1, 10
  %24 = vst [vmem:[%s23] sm:$0x3] %v22
  %s25 = scalar_lea.vmem %s0, 10
  %v26 = vld [vmem:[%s25] sm:$0x3]
  %s27 = scalar_lea.vmem %s1, 12
  %28 = vst [vmem:[%s27] sm:$0x3] %v26
  %s29 = scalar_lea.vmem %s0, 8
  %v30 = vld [vmem:[%s29] sm:$0x3]
  %s31 = scalar_lea.vmem %s1, 14
  %32 = vst [vmem:[%s31] sm:$0x3] %v30
  %s33 = scalar_lea.vmem %s0, 6
  %v34 = vld [vmem:[%s33] sm:$0x3]
  %s35 = scalar_lea.vmem %s1, 16
  %36 = vst [vmem:[%s35] sm:$0x3] %v34
  %s37 = scalar_lea.vmem %s0, 4
  %v38 = vld [vmem:[%s37] sm:$0x3]
  %s39 = scalar_lea.vmem %s1, 18
  %40 = vst [vmem:[%s39] sm:$0x3] %v38
  %s41 = scalar_lea.vmem %s0, 2
  %v42 = vld [vmem:[%s41] sm:$0x3]
  %s43 = scalar_lea.vmem %s1, 20
  %44 = vst [vmem:[%s43] sm:$0x3] %v42
  %v45 = vld [vmem:[%s0] sm:$0x3]
  %s46 = scalar_lea.vmem %s1, 22
  %47 = vst [vmem:[%s46] sm:$0x3] %v45

// kernel: _lambda_.1
$region0: #{_lambda_.1}
  #allocation0 [shape = 'u32[]', space=smem, size = 0x4, offset = 0x4, fixed_abs, tag = 'smem constant byte address 0x4 - core index']
  #allocation1 [shape = 'u32[144,128]{1,0:T(1,128)}', space=vmem, size = 0x12000, scoped, tag = 'internal scratch']
  #allocation2 [shape = 'f32[2,64]{1,0:T(2,128)}', space=vmem, size = 0x400, scoped, tag = 'scratch operand']
  %s0 = inlined_call_operand.vmem [shape: f32[12,2,192], index: 0, kind: input, shape index: {}]
  %s1 = inlined_call_operand.vmem [shape: s32[2,1], index: 1, kind: input, shape index: {}]
  %s2 = inlined_call_operand.vmem [shape: f32[64,192], index: 2, kind: input, shape index: {}]
  %s3 = inlined_call_operand.vmem [shape: f32[1,64], index: 3, kind: input, shape index: {}]
  %s4 = inlined_call_operand.vmem [shape: f32[12,2,32], index: 4, kind: output, shape index: {0}]
  %s5 = inlined_call_operand.vmem [shape: f32[12,2,32], index: 5, kind: output, shape index: {1}]
  %s6 = inlined_call_operand.hbm [shape: f32[2,2,32], index: 6, kind: output, shape index: {2}]
  %7 = xla_tuple %s4, %s5, %s6
  %s8 = sld [smem:[#allocation0]]
  $region73: #{_lambda_.1} parent=0
    _
  %s10 = ssub.s32 1, %s8
  %s11 = scalar_select 0, %s10, %s8
  $region1: #{_lambda_.1} parent=0
    #allocation3 [shape = 'u8[2048]{0}', space=vmem, size = 0x800, scoped, tag = 'output window, operand 2, single buffered']
    #allocation4 [shape = 's32[2]{0}', space=sflag, size = 0x8, scoped, tag = 'scoped memory for _lambda_.1']
    %12 = vsyncpa [#allocation4], 0
    loop: start=0, step=1, limit=5
    $region2: #{_lambda_.1} parent=1 // loop_pre_header
      _
    $region3: #{_lambda_.1} parent=1 // loop_header
      %s14 = sphi 0, %s18
      %p15 = scmp.ge.s32.totalorder %s14, 5
      %s24 = sphi 0, %s26
      %s27 = sphi 0, %s24
      %s28 = sphi 0, %s27
      %s44 = sphi 0, %s28
      %s48 = sphi 0, %s48
      %s50 = sphi 0, %s48
      %s51 = sphi 0, %s50
      %s65 = sphi 0, %s51
      %s69 = sphi 0, %s69
      %s71 = sphi 0, %s69
      %s72 = sphi 0, %s71
      %s86 = sphi 0, %s72
      %s90 = sphi 0, %s90
      %s92 = sphi 0, %s90
      %s93 = sphi 0, %s92
      %s107 = sphi 0, %s93
      %s113 = sphi 0, %s115
      %s116 = sphi 0, %s113
      %s117 = sphi 0, %s116
      %s133 = sphi 0, %s117
      %s141 = sphi 0, %s143
      %s144 = sphi 0, %s141
      %s145 = sphi 0, %s144
      %s161 = sphi 0, %s145
      %s165 = sphi 0, %s165
      %s167 = sphi 0, %s165
      %s168 = sphi 0, %s167
      %s182 = sphi 0, %s168
    $region4: #{_lambda_.1} parent=1 // loop_header_branch
      %17 = sbr.rel (%p15) target = $region8
    $region5: #{_lambda_.1} parent=1 // loop_body
      %s19 = ssub.s32 %s14, 1
      %s20 = ssub.s32 %s14, 2
      %s21 = sadd.s32 %s14, 1
      %s22 = ssub.s32 %s14, %s21
      %p23 = scmp.eq.s32.totalorder %s22, 0
      %s25 = sadd.s32 %s24, 1
      %s26 = scalar_select %p23, %s24, %s25
      %p29 = pneg %p23
      %p30 = scmp.eq.s32.totalorder %s14, 2
      %p31 = por %p29, %p30
      %p32 = scmp.ne.s32.totalorder %s24, %s27
      %p33 = scmp.eq.s32.totalorder %s14, 0
      %p34 = por %p32, %p33
      %p35 = scmp.ne.s32.totalorder %s24, %s27
      %p36 = scmp.eq.s32.totalorder %s19, 2
      %p37 = por %p35, %p36
      %p38 = scmp.ne.s32.totalorder %s27, %s28
      %p39 = scmp.eq.s32.totalorder %s19, 0
      %p40 = por %p38, %p39
      %p41 = scmp.ne.s32.totalorder %s27, %s28
      %p42 = scmp.eq.s32.totalorder %s20, 2
      %p43 = por %p41, %p42
      %p45 = scmp.ne.s32.totalorder %s28, %s44
      %p46 = scmp.eq.s32.totalorder %s20, 0
      %p47 = por %p45, %p46
      %s49 = sadd.s32 %s48, 1
      %p52 = scmp.eq.s32.totalorder %s14, 2
      %p53 = scmp.ne.s32.totalorder %s48, %s50
      %p54 = scmp.eq.s32.totalorder %s14, 0
      %p55 = por %p53, %p54
      %p56 = scmp.ne.s32.totalorder %s48, %s50
      %p57 = scmp.eq.s32.totalorder %s19, 2
      %p58 = por %p56, %p57
      %p59 = scmp.ne.s32.totalorder %s50, %s51
      %p60 = scmp.eq.s32.totalorder %s19, 0
      %p61 = por %p59, %p60
      %p62 = scmp.ne.s32.totalorder %s50, %s51
      %p63 = scmp.eq.s32.totalorder %s20, 2
      %p64 = por %p62, %p63
      %p66 = scmp.ne.s32.totalorder %s51, %s65
      %p67 = scmp.eq.s32.totalorder %s20, 0
      %p68 = por %p66, %p67
      %s70 = sadd.s32 %s69, 1
      %p73 = scmp.eq.s32.totalorder %s14, 2
      %p74 = scmp.ne.s32.totalorder %s69, %s71
      %p75 = scmp.eq.s32.totalorder %s14, 0
      %p76 = por %p74, %p75
      %p77 = scmp.ne.s32.totalorder %s69, %s71
      %p78 = scmp.eq.s32.totalorder %s19, 2
      %p79 = por %p77, %p78
      %p80 = scmp.ne.s32.totalorder %s71, %s72
      %p81 = scmp.eq.s32.totalorder %s19, 0
      %p82 = por %p80, %p81
      %p83 = scmp.ne.s32.totalorder %s71, %s72
      %p84 = scmp.eq.s32.totalorder %s20, 2
      %p85 = por %p83, %p84
      %p87 = scmp.ne.s32.totalorder %s72, %s86
      %p88 = scmp.eq.s32.totalorder %s20, 0
      %p89 = por %p87, %p88
      %s91 = sadd.s32 %s90, 1
      %p94 = scmp.eq.s32.totalorder %s14, 2
      %p95 = scmp.ne.s32.totalorder %s90, %s92
      %p96 = scmp.eq.s32.totalorder %s14, 0
      %p97 = por %p95, %p96
      %p98 = scmp.ne.s32.totalorder %s90, %s92
      %p99 = scmp.eq.s32.totalorder %s19, 2
      %p100 = por %p98, %p99
      %p101 = scmp.ne.s32.totalorder %s92, %s93
      %p102 = scmp.eq.s32.totalorder %s19, 0
      %p103 = por %p101, %p102
      %p104 = scmp.ne.s32.totalorder %s92, %s93
      %p105 = scmp.eq.s32.totalorder %s20, 2
      %p106 = por %p104, %p105
      %p108 = scmp.ne.s32.totalorder %s93, %s107
      %p109 = scmp.eq.s32.totalorder %s20, 0
      %p110 = por %p108, %p109
      %s111 = ssub.s32 %s14, %s21
      %p112 = scmp.eq.s32.totalorder %s111, 0
      %s114 = sadd.s32 %s113, 1
      %s115 = scalar_select %p112, %s113, %s114
      %p118 = pneg %p112
      %p119 = scmp.eq.s32.totalorder %s14, 2
      %p120 = por %p118, %p119
      %p121 = scmp.ne.s32.totalorder %s113, %s116
      %p122 = scmp.eq.s32.totalorder %s14, 0
      %p123 = por %p121, %p122
      %p124 = scmp.ne.s32.totalorder %s113, %s116
      %p125 = scmp.eq.s32.totalorder %s19, 2
      %p126 = por %p124, %p125
      %p127 = scmp.ne.s32.totalorder %s116, %s117
      %p128 = scmp.eq.s32.totalorder %s19, 0
      %p129 = por %p127, %p128
      %p130 = scmp.ne.s32.totalorder %s116, %s117
      %p131 = scmp.eq.s32.totalorder %s20, 2
      %p132 = por %p130, %p131
      %p134 = scmp.ne.s32.totalorder %s117, %s133
      %p135 = scmp.eq.s32.totalorder %s20, 0
      %p136 = por %p134, %p135
      %s137 = ssub.s32 2, %s14
      %s138 = ssub.s32 2, %s21
      %s139 = ssub.s32 %s137, %s138
      %p140 = scmp.eq.s32.totalorder %s139, 0
      %s142 = sadd.s32 %s141, 1
      %s143 = scalar_select %p140, %s141, %s142
      %p146 = pneg %p140
      %p147 = scmp.eq.s32.totalorder %s14, 2
      %p148 = por %p146, %p147
      %p149 = scmp.ne.s32.totalorder %s141, %s144
      %p150 = scmp.eq.s32.totalorder %s14, 0
      %p151 = por %p149, %p150
      %p152 = scmp.ne.s32.totalorder %s141, %s144
      %p153 = scmp.eq.s32.totalorder %s19, 2
      %p154 = por %p152, %p153
      %p155 = scmp.ne.s32.totalorder %s144, %s145
      %p156 = scmp.eq.s32.totalorder %s19, 0
      %p157 = por %p155, %p156
      %p158 = scmp.ne.s32.totalorder %s144, %s145
      %p159 = scmp.eq.s32.totalorder %s20, 2
      %p160 = por %p158, %p159
      %p162 = scmp.ne.s32.totalorder %s145, %s161
      %p163 = scmp.eq.s32.totalorder %s20, 0
      %p164 = por %p162, %p163
      %s166 = sadd.s32 %s165, 1
      %p169 = scmp.eq.s32.totalorder %s14, 2
      %p170 = scmp.ne.s32.totalorder %s165, %s167
      %p171 = scmp.eq.s32.totalorder %s14, 0
      %p172 = por %p170, %p171
      %p173 = scmp.ne.s32.totalorder %s165, %s167
      %p174 = scmp.eq.s32.totalorder %s19, 2
      %p175 = por %p173, %p174
      %p176 = scmp.ne.s32.totalorder %s167, %s168
      %p177 = scmp.eq.s32.totalorder %s19, 0
      %p178 = por %p176, %p177
      %p179 = scmp.ne.s32.totalorder %s167, %s168
      %p180 = scmp.eq.s32.totalorder %s20, 2
      %p181 = por %p179, %p180
      %p183 = scmp.ne.s32.totalorder %s168, %s182
      %p184 = scmp.eq.s32.totalorder %s20, 0
      %p185 = por %p183, %p184
      %p186 = scmp.le.s32.totalorder 1, %s14
      %p187 = scmp.lt.s32.totalorder %s14, 4
      %p188 = pnand %p186, %p187
      %p189 = pneg %p188
      // Predicated region
      $region9: #{_lambda_.1} parent=5 // pred_check
        _
      $region10: #{_lambda_.1} parent=5 // pred_check_branch
        %191 = sbr.rel (%p188) target = $region12
      $region11: #{_lambda_.1} parent=5 // pred_region
        %s192 = ssub.s32 %s14, 1
        // Predicated region
        $region13: #{_lambda_.1} parent=11 // pred_check
          %p193 = pneg %p61
        $region14: #{_lambda_.1} parent=11 // pred_check_branch
          %195 = sbr.rel (%p193) target = $region16
        $region15: #{_lambda_.1} parent=11 // pred_region
          _
        $region16: #{_lambda_.1} parent=11 // pred_fallthru
          _
        // Predicated region
        $region17: #{_lambda_.1} parent=11 // pred_check
          %p196 = pneg %p82
        $region18: #{_lambda_.1} parent=11 // pred_check_branch
          %198 = sbr.rel (%p196) target = $region20
        $region19: #{_lambda_.1} parent=11 // pred_region
          _
        $region20: #{_lambda_.1} parent=11 // pred_fallthru
          _
        // Predicated region
        $region21: #{_lambda_.1} parent=11 // pred_check
          %p199 = pneg %p103
        $region22: #{_lambda_.1} parent=11 // pred_check_branch
          %201 = sbr.rel (%p199) target = $region24
        $region23: #{_lambda_.1} parent=11 // pred_region
          _
        $region24: #{_lambda_.1} parent=11 // pred_fallthru
          _
      $region12: #{_lambda_.1} parent=5 // pred_fallthru
        _
      %p202 = scmp.lt.s32.totalorder %s14, 3
      // Predicated region
      $region25: #{_lambda_.1} parent=5 // pred_check
        %p203 = pneg %p202
      $region26: #{_lambda_.1} parent=5 // pred_check_branch
        %205 = sbr.rel (%p203) target = $region28
      $region27: #{_lambda_.1} parent=5 // pred_region
        // Predicated region
        $region29: #{_lambda_.1} parent=27 // pred_check
          %p206 = pneg %p34
        $region30: #{_lambda_.1} parent=27 // pred_check_branch
          %208 = sbr.rel (%p206) target = $region32
        $region31: #{_lambda_.1} parent=27 // pred_region
          %s209 = smul.u32 4, %s14
          %p210 = scmp.lt.s32.totalorder %s209, 11
          %s211 = scalar_select %p210, %s209, 11
          %s212 = smul.addr %s211, 2
          %s213 = smul.addr %s212, 2
          %s214 = scalar_lea.vmem %s0, %s213
          %s215 = smul.u32 4, %s14
        $region32: #{_lambda_.1} parent=27 // pred_fallthru
          _
      $region28: #{_lambda_.1} parent=5 // pred_fallthru
        _
      %p216 = scmp.le.s32.totalorder 1, %s14
      %p217 = scmp.lt.s32.totalorder %s14, 4
      %p218 = pnand %p216, %p217
      %p219 = pneg %p218
      // Predicated region
      $region33: #{_lambda_.1} parent=5 // pred_check
        _
      $region34: #{_lambda_.1} parent=5 // pred_check_branch
        %221 = sbr.rel (%p218) target = $region36
      $region35: #{_lambda_.1} parent=5 // pred_region
        %s222 = ssub.s32 %s14, 1
        %s223 = smul.u32 4, %s19
        %p224 = scmp.lt.s32.totalorder %s223, 11
        %s225 = scalar_select %p224, %s223, 11
        %s226 = smul.addr %s225, 2
        %s227 = smul.addr %s226, 2
        %s228 = scalar_lea.vmem %s0, %s227
        %p229 = pneg %p40
        %p230 = pneg %p37
        %p231 = pneg %p61
        %p232 = pneg %p58
        %p233 = pneg %p82
        %p234 = pneg %p79
        %p235 = pneg %p103
        %p236 = pneg %p100
        %p237 = pneg %p129
        %p238 = pneg %p126
        %s239 = smul.u32 4, %s19
        %p240 = scmp.lt.s32.totalorder %s239, 11
        %s241 = scalar_select %p240, %s239, 11
        %s242 = smul.addr %s241, 2
        %s243 = scalar_lea.vmem %s4, %s242
        %p244 = pneg %p157
        %p245 = pneg %p154
        %s246 = ssub.s32 2, %s19
        %s247 = smul.u32 4, %s246
        %p248 = scmp.lt.s32.totalorder %s247, 11
        %s249 = scalar_select %p248, %s247, 11
        %s250 = smul.addr %s249, 2
        %s251 = scalar_lea.vmem %s5, %s250
        %p252 = pneg %p178
        %p253 = pneg %p175
        %s254 = smul.u32 4, %s19
        %p255 = scmp.lt.s32.totalorder %s254, 11
        %s256 = scalar_select %p255, %s254, 11
        %s257 = smul.addr %s256, 2
        %s258 = smul.addr %s257, 2
        %s259 = scalar_lea.vmem %s0, %s258
        %s260 = smul.u32 4, %s19
        %s261 = smul.u32 4, %s19
        %p262 = scmp.lt.s32.totalorder %s261, 11
        %s263 = scalar_select %p262, %s261, 11
        %s264 = smul.addr %s263, 2
        %s265 = scalar_lea.vmem %s4, %s264
        %s266 = smul.u32 4, %s19
        %s267 = ssub.s32 2, %s19
        %s268 = smul.u32 4, %s267
        %p269 = scmp.lt.s32.totalorder %s268, 11
        %s270 = scalar_select %p269, %s268, 11
        %s271 = smul.addr %s270, 2
        %s272 = scalar_lea.vmem %s5, %s271
        %s273 = ssub.s32 2, %s19
        %s274 = smul.u32 4, %s273
        %p275 = scmp.eq.s32.totalorder %s19, 0
        // Predicated region
        $region37: #{_lambda_.1} parent=35 // pred_check
          %p276 = pneg %p275
        $region38: #{_lambda_.1} parent=35 // pred_check_branch
          %278 = sbr.rel (%p276) target = $region40
        $region39: #{_lambda_.1} parent=35 // pred_region
          %vm279 = vcmask 517120
          %280 = vst.msk [vmem:[#allocation2] sm:$0x3] %vm279, 0.0
        $region40: #{_lambda_.1} parent=35 // pred_fallthru
          _
        %v281 = vld [vmem:[%s1] sm:$0x3]
        %v282 = vld [vmem:[%s3] sm:$0x1]
        %v283 = vld [vmem:[%s2] sm:$0xff]
        %v284 = vld [vmem:[%s2 + $0x8] sm:$0xff]
        %v285 = vld [vmem:[%s2 + $0x10] sm:$0xff]
        %v286 = vld [vmem:[%s2 + $0x18] sm:$0xff]
        %v287 = vld [vmem:[%s2 + $0x20] sm:$0xff]
        %v288 = vld [vmem:[%s2 + $0x28] sm:$0xff]
        %v289 = vld [vmem:[%s2 + $0x30] sm:$0xff]
        %v290 = vld [vmem:[%s2 + $0x38] sm:$0xff]
        %v291 = vld [vmem:[%s2 + $0x40] sm:$0xff]
        %v292 = vld [vmem:[%s2 + $0x48] sm:$0xff]
        %v293 = vld [vmem:[%s2 + $0x50] sm:$0xff]
        %v294 = vld [vmem:[%s2 + $0x58] sm:$0xff]
        %v295 = vld [vmem:[%s2 + $0x60] sm:$0xff]
        %v296 = vld [vmem:[%s2 + $0x68] sm:$0xff]
        %v297 = vld [vmem:[%s2 + $0x70] sm:$0xff]
        %v298 = vld [vmem:[%s2 + $0x78] sm:$0xff]
        %v299 = vlaneseq
        %v300 = vand.u32 %v299, 127
        %vm301 = vcmp.lt.s32.totalorder %v300, 32
        %v302 = vld [vmem:[#allocation2] sm:$0x3]
        %s303 = smul.u32 %s19, 4
        %s304 = ssub.s32 11, %s303
        %vm305 = vcmask 523264
        %v307 = vsel %vm305, %v302, 0
        %v309 = vand.u32 %v284, 4294901760
        %310 = vmatprep.subr.mxu0 %v309
        %v311 = vand.u32 %v283, 4294901760
        %312 = vmatpush1.msra.mxu0 %v311
        %v313 = vand.u32 %v286, 4294901760
        %314 = vmatprep.subr.mxu0 %v313
        %v315 = vand.u32 %v285, 4294901760
        %316 = vmatpush1.msra.mxu0 %v315
        %v317 = vand.u32 %v288, 4294901760
        %318 = vmatprep.subr.mxu0 %v317
        %v319 = vand.u32 %v287, 4294901760
        %320 = vmatpush1.msra.mxu0 %v319
        %v321 = vand.u32 %v290, 4294901760
        %322 = vmatprep.subr.mxu0 %v321
        %v323 = vand.u32 %v289, 4294901760
        %324 = vmatpush1.msra.mxu0 %v323
        %v325 = vand.u32 %v292, 4294901760
        %326 = vmatprep.subr.mxu0 %v325
        %v327 = vand.u32 %v291, 4294901760
        %328 = vmatpush1.msra.mxu0 %v327
        %v329 = vand.u32 %v294, 4294901760
        %330 = vmatprep.subr.mxu0 %v329
        %v331 = vand.u32 %v293, 4294901760
        %332 = vmatpush1.msra.mxu0 %v331
        %v333 = vand.u32 %v296, 4294901760
        %334 = vmatprep.subr.mxu0 %v333
        %v335 = vand.u32 %v295, 4294901760
        %336 = vmatpush1.msra.mxu0 %v335
        %v337 = vand.u32 %v298, 4294901760
        %338 = vmatprep.subr.mxu0 %v337
        %v339 = vand.u32 %v297, 4294901760
        %340 = vmatpush1.msra.mxu0 %v339
        %341 = vmatprep.subr.mxu0 0.0
        %342 = vmatpush1.msra.mxu0 0.0
        %343 = vmatprep.subr.mxu0 0.0
        %344 = vmatpush1.msra.mxu0 0.0
        %345 = vmatprep.subr.mxu0 0.0
        %346 = vmatpush1.msra.mxu0 0.0
        %347 = vmatprep.subr.mxu0 0.0
        %348 = vmatpush1.msra.mxu0 0.0
        %349 = vmatprep.subr.mxu0 0.0
        %350 = vmatpush1.msra.mxu0 0.0
        %351 = vmatprep.subr.mxu0 0.0
        %352 = vmatpush1.msra.mxu0 0.0
        %353 = vmatprep.subr.mxu0 0.0
        %354 = vmatpush1.msra.mxu0 0.0
        %355 = vmatprep.subr.mxu0 0.0
        %356 = vmatpush1.msra.mxu0 0.0
        %357 = vmatprep.subr.mxu0 0.0
        %358 = vmatpush1.msra.mxu0 0.0
        %359 = vmatprep.subr.mxu0 0.0
        %360 = vmatpush1.msra.mxu0 0.0
        %361 = vmatprep.subr.mxu0 0.0
        %362 = vmatpush1.msra.mxu0 0.0
        %363 = vmatprep.subr.mxu0 0.0
        %364 = vmatpush1.msra.mxu0 0.0
        %365 = vmatprep.subr.mxu0 0.0
        %366 = vmatpush1.msra.mxu0 0.0
        %367 = vmatprep.subr.mxu0 0.0
        %368 = vmatpush1.msra.mxu0 0.0
        %369 = vmatprep.subr.mxu0 0.0
        %370 = vmatpush1.msra.mxu0 0.0
        %371 = vmatprep.subr.mxu0 0.0
        %372 = vmatpush1.msra.mxu0 0.0
        %373 = vmatprep.subr.mxu0 0.0
        %374 = vmatpush1.msra.mxu0 0.0
        %375 = vmatprep.subr.mxu0 0.0
        %376 = vmatpush1.msra.mxu0 0.0
        %377 = vmatprep.subr.mxu0 0.0
        %378 = vmatpush1.msra.mxu0 0.0
        %379 = vmatprep.subr.mxu0 0.0
        %380 = vmatpush1.msra.mxu0 0.0
        %381 = vmatprep.subr.mxu0 0.0
        %382 = vmatpush1.msra.mxu0 0.0
        %383 = vmatprep.subr.mxu0 0.0
        %384 = vmatpush1.msra.mxu0 0.0
        %385 = vmatprep.subr.mxu0 0.0
        %386 = vmatpush1.msra.mxu0 0.0
        %387 = vmatprep.subr.mxu0 0.0
        %388 = vmatpush1.msra.mxu0 0.0
        %389 = vmatprep.mubr.f32.mxu0 0.0
        %v390 = vand.u32 %v307, 4294901760
        %v391 = vsub.f32 %v307, %v390
        %v392 = vand.u32 %v391, 4294901760
        %v393 = vsub.f32 %v391, %v392
        %v394 = vand.u32 %v393, 4294901760
        %395 = vmatmul.mubr.f32.gmra.mrb[0].mxu0 %v394
        %v396 = vpop.f32.mrb[0].mxu0
        %v397 = vadd.f32 0.0, %v396
        %v398 = vpop.f32.mrb[0].mxu0
        %v399 = vadd.f32 0.0, %v398
        %400 = vdwg.mxu0
        %v401 = vand.u32 %v284, 4294901760
        %v402 = vsub.f32 %v284, %v401
        %v403 = vand.u32 %v402, 4294901760
        %v404 = vsub.f32 %v402, %v403
        %v405 = vand.u32 %v404, 4294901760
        %406 = vmatprep.subr.mxu0 %v405
        %v407 = vand.u32 %v283, 4294901760
        %v408 = vsub.f32 %v283, %v407
        %v409 = vand.u32 %v408, 4294901760
        %v410 = vsub.f32 %v408, %v409
        %v411 = vand.u32 %v410, 4294901760
        %412 = vmatpush1.msra.mxu0 %v411
        %v413 = vand.u32 %v286, 4294901760
        %v414 = vsub.f32 %v286, %v413
        %v415 = vand.u32 %v414, 4294901760
        %v416 = vsub.f32 %v414, %v415
        %v417 = vand.u32 %v416, 4294901760
        %418 = vmatprep.subr.mxu0 %v417
        %v419 = vand.u32 %v285, 4294901760
        %v420 = vsub.f32 %v285, %v419
        %v421 = vand.u32 %v420, 4294901760
        %v422 = vsub.f32 %v420, %v421
        %v423 = vand.u32 %v422, 4294901760
        %424 = vmatpush1.msra.mxu0 %v423
        %v425 = vand.u32 %v288, 4294901760
        %v426 = vsub.f32 %v288, %v425
        %v427 = vand.u32 %v426, 4294901760
        %v428 = vsub.f32 %v426, %v427
        %v429 = vand.u32 %v428, 4294901760
        %430 = vmatprep.subr.mxu0 %v429
        %v431 = vand.u32 %v287, 4294901760
        %v432 = vsub.f32 %v287, %v431
        %v433 = vand.u32 %v432, 4294901760
        %v434 = vsub.f32 %v432, %v433
        %v435 = vand.u32 %v434, 4294901760
        %436 = vmatpush1.msra.mxu0 %v435
        %v437 = vand.u32 %v290, 4294901760
        %v438 = vsub.f32 %v290, %v437
        %v439 = vand.u32 %v438, 4294901760
        %v440 = vsub.f32 %v438, %v439
        %v441 = vand.u32 %v440, 4294901760
        %442 = vmatprep.subr.mxu0 %v441
        %v443 = vand.u32 %v289, 4294901760
        %v444 = vsub.f32 %v289, %v443
        %v445 = vand.u32 %v444, 4294901760
        %v446 = vsub.f32 %v444, %v445
        %v447 = vand.u32 %v446, 4294901760
        %448 = vmatpush1.msra.mxu0 %v447
        %v449 = vand.u32 %v292, 4294901760
        %v450 = vsub.f32 %v292, %v449
        %v451 = vand.u32 %v450, 4294901760
        %v452 = vsub.f32 %v450, %v451
        %v453 = vand.u32 %v452, 4294901760
        %454 = vmatprep.subr.mxu0 %v453
        %v455 = vand.u32 %v291, 4294901760
        %v456 = vsub.f32 %v291, %v455
        %v457 = vand.u32 %v456, 4294901760
        %v458 = vsub.f32 %v456, %v457
        %v459 = vand.u32 %v458, 4294901760
        %460 = vmatpush1.msra.mxu0 %v459
        %v461 = vand.u32 %v294, 4294901760
        %v462 = vsub.f32 %v294, %v461
        %v463 = vand.u32 %v462, 4294901760
        %v464 = vsub.f32 %v462, %v463
        %v465 = vand.u32 %v464, 4294901760
        %466 = vmatprep.subr.mxu0 %v465
        %v467 = vand.u32 %v293, 4294901760
        %v468 = vsub.f32 %v293, %v467
        %v469 = vand.u32 %v468, 4294901760
        %v470 = vsub.f32 %v468, %v469
        %v471 = vand.u32 %v470, 4294901760
        %472 = vmatpush1.msra.mxu0 %v471
        %v473 = vand.u32 %v296, 4294901760
        %v474 = vsub.f32 %v296, %v473
        %v475 = vand.u32 %v474, 4294901760
        %v476 = vsub.f32 %v474, %v475
        %v477 = vand.u32 %v476, 4294901760
        %478 = vmatprep.subr.mxu0 %v477
        %v479 = vand.u32 %v295, 4294901760
        %v480 = vsub.f32 %v295, %v479
        %v481 = vand.u32 %v480, 4294901760
        %v482 = vsub.f32 %v480, %v481
        %v483 = vand.u32 %v482, 4294901760
        %484 = vmatpush1.msra.mxu0 %v483
        %v485 = vand.u32 %v298, 4294901760
        %v486 = vsub.f32 %v298, %v485
        %v487 = vand.u32 %v486, 4294901760
        %v488 = vsub.f32 %v486, %v487
        %v489 = vand.u32 %v488, 4294901760
        %490 = vmatprep.subr.mxu0 %v489
        %v491 = vand.u32 %v297, 4294901760
        %v492 = vsub.f32 %v297, %v491
        %v493 = vand.u32 %v492, 4294901760
        %v494 = vsub.f32 %v492, %v493
        %v495 = vand.u32 %v494, 4294901760
        %496 = vmatpush1.msra.mxu0 %v495
        %497 = vmatprep.subr.mxu0 0.0
        %498 = vmatpush1.msra.mxu0 0.0
        %499 = vmatprep.subr.mxu0 0.0
        %500 = vmatpush1.msra.mxu0 0.0
        %501 = vmatprep.subr.mxu0 0.0
        %502 = vmatpush1.msra.mxu0 0.0
        %503 = vmatprep.subr.mxu0 0.0
        %504 = vmatpush1.msra.mxu0 0.0
        %505 = vmatprep.subr.mxu0 0.0
        %506 = vmatpush1.msra.mxu0 0.0
        %507 = vmatprep.subr.mxu0 0.0
        %508 = vmatpush1.msra.mxu0 0.0
        %509 = vmatprep.subr.mxu0 0.0
        %510 = vmatpush1.msra.mxu0 0.0
        %511 = vmatprep.subr.mxu0 0.0
        %512 = vmatpush1.msra.mxu0 0.0
        %513 = vmatprep.subr.mxu0 0.0
        %514 = vmatpush1.msra.mxu0 0.0
        %515 = vmatprep.subr.mxu0 0.0
        %516 = vmatpush1.msra.mxu0 0.0
        %517 = vmatprep.subr.mxu0 0.0
        %518 = vmatpush1.msra.mxu0 0.0
        %519 = vmatprep.subr.mxu0 0.0
        %520 = vmatpush1.msra.mxu0 0.0
        %521 = vmatprep.subr.mxu0 0.0
        %522 = vmatpush1.msra.mxu0 0.0
        %523 = vmatprep.subr.mxu0 0.0
        %524 = vmatpush1.msra.mxu0 0.0
        %525 = vmatprep.subr.mxu0 0.0
        %526 = vmatpush1.msra.mxu0 0.0
        %527 = vmatprep.subr.mxu0 0.0
        %528 = vmatpush1.msra.mxu0 0.0
        %529 = vmatprep.subr.mxu0 0.0
        %530 = vmatpush1.msra.mxu0 0.0
        %531 = vmatprep.subr.mxu0 0.0
        %532 = vmatpush1.msra.mxu0 0.0
        %533 = vmatprep.subr.mxu0 0.0
        %534 = vmatpush1.msra.mxu0 0.0
        %535 = vmatprep.subr.mxu0 0.0
        %536 = vmatpush1.msra.mxu0 0.0
        %537 = vmatprep.subr.mxu0 0.0
        %538 = vmatpush1.msra.mxu0 0.0
        %539 = vmatprep.subr.mxu0 0.0
        %540 = vmatpush1.msra.mxu0 0.0
        %541 = vmatprep.subr.mxu0 0.0
        %542 = vmatpush1.msra.mxu0 0.0
        %543 = vmatprep.subr.mxu0 0.0
        %544 = vmatpush1.msra.mxu0 0.0
        %545 = vmatprep.mubr.f32.mxu0 0.0
        %v546 = vand.u32 %v307, 4294901760
        %547 = vmatmul.mubr.f32.gmra.mrb[0].mxu0 %v546
        %v548 = vpop.f32.mrb[0].mxu0
        %v549 = vadd.f32 %v397, %v548
        %v550 = vpop.f32.mrb[0].mxu0
        %v551 = vadd.f32 %v399, %v550
        %552 = vdwg.mxu0
        %v553 = vand.u32 %v284, 4294901760
        %v554 = vsub.f32 %v284, %v553
        %555 = vmatprep.subr.mxu0 %v554
        %v556 = vand.u32 %v283, 4294901760
        %v557 = vsub.f32 %v283, %v556
        %558 = vmatpush1.msra.mxu0 %v557
        %v559 = vand.u32 %v286, 4294901760
        %v560 = vsub.f32 %v286, %v559
        %561 = vmatprep.subr.mxu0 %v560
        %v562 = vand.u32 %v285, 4294901760
        %v563 = vsub.f32 %v285, %v562
        %564 = vmatpush1.msra.mxu0 %v563
        %v565 = vand.u32 %v288, 4294901760
        %v566 = vsub.f32 %v288, %v565
        %567 = vmatprep.subr.mxu0 %v566
        %v568 = vand.u32 %v287, 4294901760
        %v569 = vsub.f32 %v287, %v568
        %570 = vmatpush1.msra.mxu0 %v569
        %v571 = vand.u32 %v290, 4294901760
        %v572 = vsub.f32 %v290, %v571
        %573 = vmatprep.subr.mxu0 %v572
        %v574 = vand.u32 %v289, 4294901760
        %v575 = vsub.f32 %v289, %v574
        %576 = vmatpush1.msra.mxu0 %v575
        %v577 = vand.u32 %v292, 4294901760
        %v578 = vsub.f32 %v292, %v577
        %579 = vmatprep.subr.mxu0 %v578
        %v580 = vand.u32 %v291, 4294901760
        %v581 = vsub.f32 %v291, %v580
        %582 = vmatpush1.msra.mxu0 %v581
        %v583 = vand.u32 %v294, 4294901760
        %v584 = vsub.f32 %v294, %v583
        %585 = vmatprep.subr.mxu0 %v584
        %v586 = vand.u32 %v293, 4294901760
        %v587 = vsub.f32 %v293, %v586
        %588 = vmatpush1.msra.mxu0 %v587
        %v589 = vand.u32 %v296, 4294901760
        %v590 = vsub.f32 %v296, %v589
        %591 = vmatprep.subr.mxu0 %v590
        %v592 = vand.u32 %v295, 4294901760
        %v593 = vsub.f32 %v295, %v592
        %594 = vmatpush1.msra.mxu0 %v593
        %v595 = vand.u32 %v298, 4294901760
        %v596 = vsub.f32 %v298, %v595
        %597 = vmatprep.subr.mxu0 %v596
        %v598 = vand.u32 %v297, 4294901760
        %v599 = vsub.f32 %v297, %v598
        %600 = vmatpush1.msra.mxu0 %v599
        %601 = vmatprep.subr.mxu0 0.0
        %602 = vmatpush1.msra.mxu0 0.0
        %603 = vmatprep.subr.mxu0 0.0
        %604 = vmatpush1.msra.mxu0 0.0
        %605 = vmatprep.subr.mxu0 0.0
        %606 = vmatpush1.msra.mxu0 0.0
        %607 = vmatprep.subr.mxu0 0.0
        %608 = vmatpush1.msra.mxu0 0.0
        %609 = vmatprep.subr.mxu0 0.0
        %610 = vmatpush1.msra.mxu0 0.0
        %611 = vmatprep.subr.mxu0 0.0
        %612 = vmatpush1.msra.mxu0 0.0
        %613 = vmatprep.subr.mxu0 0.0
        %614 = vmatpush1.msra.mxu0 0.0
        %615 = vmatprep.subr.mxu0 0.0
        %616 = vmatpush1.msra.mxu0 0.0
        %617 = vmatprep.subr.mxu0 0.0
        %618 = vmatpush1.msra.mxu0 0.0
        %619 = vmatprep.subr.mxu0 0.0
        %620 = vmatpush1.msra.mxu0 0.0
        %621 = vmatprep.subr.mxu0 0.0
        %622 = vmatpush1.msra.mxu0 0.0
        %623 = vmatprep.subr.mxu0 0.0
        %624 = vmatpush1.msra.mxu0 0.0
        %625 = vmatprep.subr.mxu0 0.0
        %626 = vmatpush1.msra.mxu0 0.0
        %627 = vmatprep.subr.mxu0 0.0
        %628 = vmatpush1.msra.mxu0 0.0
        %629 = vmatprep.subr.mxu0 0.0
        %630 = vmatpush1.msra.mxu0 0.0
        %631 = vmatprep.subr.mxu0 0.0
        %632 = vmatpush1.msra.mxu0 0.0
        %633 = vmatprep.subr.mxu0 0.0
        %634 = vmatpush1.msra.mxu0 0.0
        %635 = vmatprep.subr.mxu0 0.0
        %636 = vmatpush1.msra.mxu0 0.0
        %637 = vmatprep.subr.mxu0 0.0
        %638 = vmatpush1.msra.mxu0 0.0
        %639 = vmatprep.subr.mxu0 0.0
        %640 = vmatpush1.msra.mxu0 0.0
        %641 = vmatprep.subr.mxu0 0.0
        %642 = vmatpush1.msra.mxu0 0.0
        %643 = vmatprep.subr.mxu0 0.0
        %644 = vmatpush1.msra.mxu0 0.0
        %645 = vmatprep.subr.mxu0 0.0
        %646 = vmatpush1.msra.mxu0 0.0
        %647 = vmatprep.subr.mxu0 0.0
        %648 = vmatpush1.msra.mxu0 0.0
        %649 = vmatprep.mubr.f32.mxu0 0.0
        %v650 = vand.u32 %v307, 4294901760
        %v651 = vsub.f32 %v307, %v650
        %652 = vmatmul.mubr.f32.gmra.mrb[0].mxu0 %v651
        %v653 = vpop.f32.mrb[0].mxu0
        %v654 = vadd.f32 %v549, %v653
        %v655 = vpop.f32.mrb[0].mxu0
        %v656 = vadd.f32 %v551, %v655
        %657 = vdwg.mxu0
        %v658 = vand.u32 %v284, 4294901760
        %659 = vmatprep.subr.mxu0 %v658
        %v660 = vand.u32 %v283, 4294901760
        %661 = vmatpush1.msra.mxu0 %v660
        %v662 = vand.u32 %v286, 4294901760
        %663 = vmatprep.subr.mxu0 %v662
        %v664 = vand.u32 %v285, 4294901760
        %665 = vmatpush1.msra.mxu0 %v664
        %v666 = vand.u32 %v288, 4294901760
        %667 = vmatprep.subr.mxu0 %v666
        %v668 = vand.u32 %v287, 4294901760
        %669 = vmatpush1.msra.mxu0 %v668
        %v670 = vand.u32 %v290, 4294901760
        %671 = vmatprep.subr.mxu0 %v670
        %v672 = vand.u32 %v289, 4294901760
        %673 = vmatpush1.msra.mxu0 %v672
        %v674 = vand.u32 %v292, 4294901760
        %675 = vmatprep.subr.mxu0 %v674
        %v676 = vand.u32 %v291, 4294901760
        %677 = vmatpush1.msra.mxu0 %v676
        %v678 = vand.u32 %v294, 4294901760
        %679 = vmatprep.subr.mxu0 %v678
        %v680 = vand.u32 %v293, 4294901760
        %681 = vmatpush1.msra.mxu0 %v680
        %v682 = vand.u32 %v296, 4294901760
        %683 = vmatprep.subr.mxu0 %v682
        %v684 = vand.u32 %v295, 4294901760
        %685 = vmatpush1.msra.mxu0 %v684
        %v686 = vand.u32 %v298, 4294901760
        %687 = vmatprep.subr.mxu0 %v686
        %v688 = vand.u32 %v297, 4294901760
        %689 = vmatpush1.msra.mxu0 %v688
        %690 = vmatprep.subr.mxu0 0.0
        %691 = vmatpush1.msra.mxu0 0.0
        %692 = vmatprep.subr.mxu0 0.0
        %693 = vmatpush1.msra.mxu0 0.0
        %694 = vmatprep.subr.mxu0 0.0
        %695 = vmatpush1.msra.mxu0 0.0
        %696 = vmatprep.subr.mxu0 0.0
        %697 = vmatpush1.msra.mxu0 0.0
        %698 = vmatprep.subr.mxu0 0.0
        %699 = vmatpush1.msra.mxu0 0.0
        %700 = vmatprep.subr.mxu0 0.0
        %701 = vmatpush1.msra.mxu0 0.0
        %702 = vmatprep.subr.mxu0 0.0
        %703 = vmatpush1.msra.mxu0 0.0
        %704 = vmatprep.subr.mxu0 0.0
        %705 = vmatpush1.msra.mxu0 0.0
        %706 = vmatprep.subr.mxu0 0.0
        %707 = vmatpush1.msra.mxu0 0.0
        %708 = vmatprep.subr.mxu0 0.0
        %709 = vmatpush1.msra.mxu0 0.0
        %710 = vmatprep.subr.mxu0 0.0
        %711 = vmatpush1.msra.mxu0 0.0
        %712 = vmatprep.subr.mxu0 0.0
        %713 = vmatpush1.msra.mxu0 0.0
        %714 = vmatprep.subr.mxu0 0.0
        %715 = vmatpush1.msra.mxu0 0.0
        %716 = vmatprep.subr.mxu0 0.0
        %717 = vmatpush1.msra.mxu0 0.0
        %718 = vmatprep.subr.mxu0 0.0
        %719 = vmatpush1.msra.mxu0 0.0
        %720 = vmatprep.subr.mxu0 0.0
        %721 = vmatpush1.msra.mxu0 0.0
        %722 = vmatprep.subr.mxu0 0.0
        %723 = vmatpush1.msra.mxu0 0.0
        %724 = vmatprep.subr.mxu0 0.0
        %725 = vmatpush1.msra.mxu0 0.0
        %726 = vmatprep.subr.mxu0 0.0
        %727 = vmatpush1.msra.mxu0 0.0
        %728 = vmatprep.subr.mxu0 0.0
        %729 = vmatpush1.msra.mxu0 0.0
        %730 = vmatprep.subr.mxu0 0.0
        %731 = vmatpush1.msra.mxu0 0.0
        %732 = vmatprep.subr.mxu0 0.0
        %733 = vmatpush1.msra.mxu0 0.0
        %734 = vmatprep.subr.mxu0 0.0
        %735 = vmatpush1.msra.mxu0 0.0
        %736 = vmatprep.subr.mxu0 0.0
        %737 = vmatpush1.msra.mxu0 0.0
        %738 = vmatprep.mubr.f32.mxu0 0.0
        %v739 = vand.u32 %v307, 4294901760
        %v740 = vsub.f32 %v307, %v739
        %v741 = vand.u32 %v740, 4294901760
        %742 = vmatmul.mubr.f32.gmra.mrb[0].mxu0 %v741
        %v743 = vpop.f32.mrb[0].mxu0
        %v744 = vadd.f32 %v654, %v743
        %v745 = vpop.f32.mrb[0].mxu0
        %v746 = vadd.f32 %v656, %v745
        %747 = vdwg.mxu0
        %v748 = vand.u32 %v284, 4294901760
        %v749 = vsub.f32 %v284, %v748
        %v750 = vand.u32 %v749, 4294901760
        %751 = vmatprep.subr.mxu0 %v750
        %v752 = vand.u32 %v283, 4294901760
        %v753 = vsub.f32 %v283, %v752
        %v754 = vand.u32 %v753, 4294901760
        %755 = vmatpush1.msra.mxu0 %v754
        %v756 = vand.u32 %v286, 4294901760
        %v757 = vsub.f32 %v286, %v756
        %v758 = vand.u32 %v757, 4294901760
        %759 = vmatprep.subr.mxu0 %v758
        %v760 = vand.u32 %v285, 4294901760
        %v761 = vsub.f32 %v285, %v760
        %v762 = vand.u32 %v761, 4294901760
        %763 = vmatpush1.msra.mxu0 %v762
        %v764 = vand.u32 %v288, 4294901760
        %v765 = vsub.f32 %v288, %v764
        %v766 = vand.u32 %v765, 4294901760
        %767 = vmatprep.subr.mxu0 %v766
        %v768 = vand.u32 %v287, 4294901760
        %v769 = vsub.f32 %v287, %v768
        %v770 = vand.u32 %v769, 4294901760
        %771 = vmatpush1.msra.mxu0 %v770
        %v772 = vand.u32 %v290, 4294901760
        %v773 = vsub.f32 %v290, %v772
        %v774 = vand.u32 %v773, 4294901760
        %775 = vmatprep.subr.mxu0 %v774
        %v776 = vand.u32 %v289, 4294901760
        %v777 = vsub.f32 %v289, %v776
        %v778 = vand.u32 %v777, 4294901760
        %779 = vmatpush1.msra.mxu0 %v778
        %v780 = vand.u32 %v292, 4294901760
        %v781 = vsub.f32 %v292, %v780
        %v782 = vand.u32 %v781, 4294901760
        %783 = vmatprep.subr.mxu0 %v782
        %v784 = vand.u32 %v291, 4294901760
        %v785 = vsub.f32 %v291, %v784
        %v786 = vand.u32 %v785, 4294901760
        %787 = vmatpush1.msra.mxu0 %v786
        %v788 = vand.u32 %v294, 4294901760
        %v789 = vsub.f32 %v294, %v788
        %v790 = vand.u32 %v789, 4294901760
        %791 = vmatprep.subr.mxu0 %v790
        %v792 = vand.u32 %v293, 4294901760
        %v793 = vsub.f32 %v293, %v792
        %v794 = vand.u32 %v793, 4294901760
        %795 = vmatpush1.msra.mxu0 %v794
        %v796 = vand.u32 %v296, 4294901760
        %v797 = vsub.f32 %v296, %v796
        %v798 = vand.u32 %v797, 4294901760
        %799 = vmatprep.subr.mxu0 %v798
        %v800 = vand.u32 %v295, 4294901760
        %v801 = vsub.f32 %v295, %v800
        %v802 = vand.u32 %v801, 4294901760
        %803 = vmatpush1.msra.mxu0 %v802
        %v804 = vand.u32 %v298, 4294901760
        %v805 = vsub.f32 %v298, %v804
        %v806 = vand.u32 %v805, 4294901760
        %807 = vmatprep.subr.mxu0 %v806
        %v808 = vand.u32 %v297, 4294901760
        %v809 = vsub.f32 %v297, %v808
        %v810 = vand.u32 %v809, 4294901760
        %811 = vmatpush1.msra.mxu0 %v810
        %812 = vmatprep.subr.mxu0 0.0
        %813 = vmatpush1.msra.mxu0 0.0
        %814 = vmatprep.subr.mxu0 0.0
        %815 = vmatpush1.msra.mxu0 0.0
        %816 = vmatprep.subr.mxu0 0.0
        %817 = vmatpush1.msra.mxu0 0.0
        %818 = vmatprep.subr.mxu0 0.0
        %819 = vmatpush1.msra.mxu0 0.0
        %820 = vmatprep.subr.mxu0 0.0
        %821 = vmatpush1.msra.mxu0 0.0
        %822 = vmatprep.subr.mxu0 0.0
        %823 = vmatpush1.msra.mxu0 0.0
        %824 = vmatprep.subr.mxu0 0.0
        %825 = vmatpush1.msra.mxu0 0.0
        %826 = vmatprep.subr.mxu0 0.0
        %827 = vmatpush1.msra.mxu0 0.0
        %828 = vmatprep.subr.mxu0 0.0
        %829 = vmatpush1.msra.mxu0 0.0
        %830 = vmatprep.subr.mxu0 0.0
        %831 = vmatpush1.msra.mxu0 0.0
        %832 = vmatprep.subr.mxu0 0.0
        %833 = vmatpush1.msra.mxu0 0.0
        %834 = vmatprep.subr.mxu0 0.0
        %835 = vmatpush1.msra.mxu0 0.0
        %836 = vmatprep.subr.mxu0 0.0
        %837 = vmatpush1.msra.mxu0 0.0
        %838 = vmatprep.subr.mxu0 0.0
        %839 = vmatpush1.msra.mxu0 0.0
        %840 = vmatprep.subr.mxu0 0.0
        %841 = vmatpush1.msra.mxu0 0.0
        %842 = vmatprep.subr.mxu0 0.0
        %843 = vmatpush1.msra.mxu0 0.0
        %844 = vmatprep.subr.mxu0 0.0
        %845 = vmatpush1.msra.mxu0 0.0
        %846 = vmatprep.subr.mxu0 0.0
        %847 = vmatpush1.msra.mxu0 0.0
        %848 = vmatprep.subr.mxu0 0.0
        %849 = vmatpush1.msra.mxu0 0.0
        %850 = vmatprep.subr.mxu0 0.0
        %851 = vmatpush1.msra.mxu0 0.0
        %852 = vmatprep.subr.mxu0 0.0
        %853 = vmatpush1.msra.mxu0 0.0
        %854 = vmatprep.subr.mxu0 0.0
        %855 = vmatpush1.msra.mxu0 0.0
        %856 = vmatprep.subr.mxu0 0.0
        %857 = vmatpush1.msra.mxu0 0.0
        %858 = vmatprep.subr.mxu0 0.0
        %859 = vmatpush1.msra.mxu0 0.0
        %860 = vmatprep.mubr.f32.mxu0 0.0
        %v861 = vand.u32 %v307, 4294901760
        %862 = vmatmul.mubr.f32.gmra.mrb[0].mxu0 %v861
        %v863 = vpop.f32.mrb[0].mxu0
        %v864 = vadd.f32 %v744, %v863
        %v865 = vpop.f32.mrb[0].mxu0
        %v866 = vadd.f32 %v746, %v865
        %867 = vdwg.mxu0
        %v868 = vand.u32 %v284, 4294901760
        %869 = vmatprep.subr.mxu0 %v868
        %v870 = vand.u32 %v283, 4294901760
        %871 = vmatpush1.msra.mxu0 %v870
        %v872 = vand.u32 %v286, 4294901760
        %873 = vmatprep.subr.mxu0 %v872
        %v874 = vand.u32 %v285, 4294901760
        %875 = vmatpush1.msra.mxu0 %v874
        %v876 = vand.u32 %v288, 4294901760
        %877 = vmatprep.subr.mxu0 %v876
        %v878 = vand.u32 %v287, 4294901760
        %879 = vmatpush1.msra.mxu0 %v878
        %v880 = vand.u32 %v290, 4294901760
        %881 = vmatprep.subr.mxu0 %v880
        %v882 = vand.u32 %v289, 4294901760
        %883 = vmatpush1.msra.mxu0 %v882
        %v884 = vand.u32 %v292, 4294901760
        %885 = vmatprep.subr.mxu0 %v884
        %v886 = vand.u32 %v291, 4294901760
        %887 = vmatpush1.msra.mxu0 %v886
        %v888 = vand.u32 %v294, 4294901760
        %889 = vmatprep.subr.mxu0 %v888
        %v890 = vand.u32 %v293, 4294901760
        %891 = vmatpush1.msra.mxu0 %v890
        %v892 = vand.u32 %v296, 4294901760
        %893 = vmatprep.subr.mxu0 %v892
        %v894 = vand.u32 %v295, 4294901760
        %895 = vmatpush1.msra.mxu0 %v894
        %v896 = vand.u32 %v298, 4294901760
        %897 = vmatprep.subr.mxu0 %v896
        %v898 = vand.u32 %v297, 4294901760
        %899 = vmatpush1.msra.mxu0 %v898
        %900 = vmatprep.subr.mxu0 0.0
        %901 = vmatpush1.msra.mxu0 0.0
        %902 = vmatprep.subr.mxu0 0.0
        %903 = vmatpush1.msra.mxu0 0.0
        %904 = vmatprep.subr.mxu0 0.0
        %905 = vmatpush1.msra.mxu0 0.0
        %906 = vmatprep.subr.mxu0 0.0
        %907 = vmatpush1.msra.mxu0 0.0
        %908 = vmatprep.subr.mxu0 0.0
        %909 = vmatpush1.msra.mxu0 0.0
        %910 = vmatprep.subr.mxu0 0.0
        %911 = vmatpush1.msra.mxu0 0.0
        %912 = vmatprep.subr.mxu0 0.0
        %913 = vmatpush1.msra.mxu0 0.0
        %914 = vmatprep.subr.mxu0 0.0
        %915 = vmatpush1.msra.mxu0 0.0
        %916 = vmatprep.subr.mxu0 0.0
        %917 = vmatpush1.msra.mxu0 0.0
        %918 = vmatprep.subr.mxu0 0.0
        %919 = vmatpush1.msra.mxu0 0.0
        %920 = vmatprep.subr.mxu0 0.0
        %921 = vmatpush1.msra.mxu0 0.0
        %922 = vmatprep.subr.mxu0 0.0
        %923 = vmatpush1.msra.mxu0 0.0
        %924 = vmatprep.subr.mxu0 0.0
        %925 = vmatpush1.msra.mxu0 0.0
        %926 = vmatprep.subr.mxu0 0.0
        %927 = vmatpush1.msra.mxu0 0.0
        %928 = vmatprep.subr.mxu0 0.0
        %929 = vmatpush1.msra.mxu0 0.0
        %930 = vmatprep.subr.mxu0 0.0
        %931 = vmatpush1.msra.mxu0 0.0
        %932 = vmatprep.subr.mxu0 0.0
        %933 = vmatpush1.msra.mxu0 0.0
        %934 = vmatprep.subr.mxu0 0.0
        %935 = vmatpush1.msra.mxu0 0.0
        %936 = vmatprep.subr.mxu0 0.0
        %937 = vmatpush1.msra.mxu0 0.0
        %938 = vmatprep.subr.mxu0 0.0
        %939 = vmatpush1.msra.mxu0 0.0
        %940 = vmatprep.subr.mxu0 0.0
        %941 = vmatpush1.msra.mxu0 0.0
        %942 = vmatprep.subr.mxu0 0.0
        %943 = vmatpush1.msra.mxu0 0.0
        %944 = vmatprep.subr.mxu0 0.0
        %945 = vmatpush1.msra.mxu0 0.0
        %946 = vmatprep.subr.mxu0 0.0
        %947 = vmatpush1.msra.mxu0 0.0
        %948 = vmatprep.mubr.f32.mxu0 0.0
        %v949 = vand.u32 %v307, 4294901760
        %950 = vmatmul.mubr.f32.gmra.mrb[0].mxu0 %v949
        %v951 = vpop.f32.mrb[0].mxu0
        %v952 = vadd.f32 %v864, %v951
        %v953 = vpop.f32.mrb[0].mxu0
        %v954 = vadd.f32 %v866, %v953
        %955 = vdwg.mxu0
        %v956 = vld [vmem:[%s259] sm:$0xf]
        %v957 = vadd.f32 %v956, %v952
        %v958 = vxor.u32 %v957, 2147483648
        %v959 = vmul.f32 %v958, 1.442695
        %v960 = vpow.pop %v959
        %v961 = vadd.f32 %v960, 1.0
        %v962 = vrcp.pop %v961
        %v963 = vmul.f32 1.0, %v962
        %v965 = vlaneseq
        %v966 = vshrl.u32 %v965, 7
        %v967 = vsub.s32 0, %v966
        %v968 = vrot.slane %v282, %v967
        %v970 = vadd.f32 %v954, %v968
        %v971 = vmul.f32 %v963, %v970
        %v973 = vrot.slane %v956, 2
        %v975 = vadd.f32 %v973, %v971
        %v976 = vtanh.pop %v975
        %v977 = vsub.f32 1.0, %v963
        %979 = vrot.lane.b32.xlu0 %v976, 64
        %v980 = vpop.permute.xlu0 %979
        %v982 = vmul.f32 %v977, %v980
        %v984 = vunpack.c.l.s4 1983009808
        %v985 = vunpack.c.0.s8 %v984
        %v986 = vlaneseq
        %v987 = vshrl.u32 %v986, 7
        %v988 = vsub.s32 %v985, %v987
        %v989 = vrot.slane %v302, %v988
        %990 = vrot.lane.b32.xlu0 %v989, 64
        %v991 = vpop.permute.xlu0 %990
        %v993 = vmul.f32 %v963, %v991
        %v994 = vadd.f32 %v982, %v993
        %v995 = vstv %s303
        %v996 = vstv %s304
        %v997 = vsel %vm301, %v995, %v996
        %998 = vset.pattern.permute.xlu0 0
        %999 = vperm.xlu0 %998, %v281
        %v1000 = vpop.permute.xlu0 %999
        %vm1001 = vcmp.lt.s32.totalorder %v997, %v1000
        %v1004 = vunpack.c.l.s4 1983009808
        %v1005 = vunpack.c.0.s8 %v1004
        %v1006 = vlaneseq
        %v1007 = vshrl.u32 %v1006, 7
        %v1008 = vsub.s32 %v1005, %v1007
        %v1009 = vrot.slane %v994, %v1008
        %1010 = vrot.lane.b32.xlu0 %v1009, 64
        %v1011 = vpop.permute.xlu0 %1010
        %v1013 = vsel %vm1001, %v1011, 0.0
        %vm1014 = vcmask 254976
        %1015 = vst.msk [vmem:[%s265] sm:$0x3] %vm1014, %v1013
        %1017 = vrot.lane.b32.xlu0 %v1013, 96
        %v1018 = vpop.permute.xlu0 %1017
        %s1020 = scalar_lea.vmem %s272, 6
        %1021 = vst.msk [vmem:[%s1020] sm:$0x3] %vm1014, %v1018
        %v1022 = vsel %vm1001, %v1011, %v302
        %s1023 = sadd.s32 %s303, 1
        %s1024 = ssub.s32 10, %s303
        %v1026 = vsel %vm305, %v1022, 0
        %v1028 = vand.u32 %v284, 4294901760
        %1029 = vmatprep.subr.mxu0 %v1028
        %v1030 = vand.u32 %v283, 4294901760
        %1031 = vmatpush1.msra.mxu0 %v1030
        %v1032 = vand.u32 %v286, 4294901760
        %1033 = vmatprep.subr.mxu0 %v1032
        %v1034 = vand.u32 %v285, 4294901760
        %1035 = vmatpush1.msra.mxu0 %v1034
        %v1036 = vand.u32 %v288, 4294901760
        %1037 = vmatprep.subr.mxu0 %v1036
        %v1038 = vand.u32 %v287, 4294901760
        %1039 = vmatpush1.msra.mxu0 %v1038
        %v1040 = vand.u32 %v290, 4294901760
        %1041 = vmatprep.subr.mxu0 %v1040
        %v1042 = vand.u32 %v289, 4294901760
        %1043 = vmatpush1.msra.mxu0 %v1042
        %v1044 = vand.u32 %v292, 4294901760
        %1045 = vmatprep.subr.mxu0 %v1044
        %v1046 = vand.u32 %v291, 4294901760
        %1047 = vmatpush1.msra.mxu0 %v1046
        %v1048 = vand.u32 %v294, 4294901760
        %1049 = vmatprep.subr.mxu0 %v1048
        %v1050 = vand.u32 %v293, 4294901760
        %1051 = vmatpush1.msra.mxu0 %v1050
        %v1052 = vand.u32 %v296, 4294901760
        %1053 = vmatprep.subr.mxu0 %v1052
        %v1054 = vand.u32 %v295, 4294901760
        %1055 = vmatpush1.msra.mxu0 %v1054
        %v1056 = vand.u32 %v298, 4294901760
        %1057 = vmatprep.subr.mxu0 %v1056
        %v1058 = vand.u32 %v297, 4294901760
        %1059 = vmatpush1.msra.mxu0 %v1058
        %1060 = vmatprep.subr.mxu0 0.0
        %1061 = vmatpush1.msra.mxu0 0.0
        %1062 = vmatprep.subr.mxu0 0.0
        %1063 = vmatpush1.msra.mxu0 0.0
        %1064 = vmatprep.subr.mxu0 0.0
        %1065 = vmatpush1.msra.mxu0 0.0
        %1066 = vmatprep.subr.mxu0 0.0
        %1067 = vmatpush1.msra.mxu0 0.0
        %1068 = vmatprep.subr.mxu0 0.0
        %1069 = vmatpush1.msra.mxu0 0.0
        %1070 = vmatprep.subr.mxu0 0.0
        %1071 = vmatpush1.msra.mxu0 0.0
        %1072 = vmatprep.subr.mxu0 0.0
        %1073 = vmatpush1.msra.mxu0 0.0
        %1074 = vmatprep.subr.mxu0 0.0
        %1075 = vmatpush1.msra.mxu0 0.0
        %1076 = vmatprep.subr.mxu0 0.0
        %1077 = vmatpush1.msra.mxu0 0.0
        %1078 = vmatprep.subr.mxu0 0.0
        %1079 = vmatpush1.msra.mxu0 0.0
        %1080 = vmatprep.subr.mxu0 0.0
        %1081 = vmatpush1.msra.mxu0 0.0
        %1082 = vmatprep.subr.mxu0 0.0
        %1083 = vmatpush1.msra.mxu0 0.0
        %1084 = vmatprep.subr.mxu0 0.0
        %1085 = vmatpush1.msra.mxu0 0.0
        %1086 = vmatprep.subr.mxu0 0.0
        %1087 = vmatpush1.msra.mxu0 0.0
        %1088 = vmatprep.subr.mxu0 0.0
        %1089 = vmatpush1.msra.mxu0 0.0
        %1090 = vmatprep.subr.mxu0 0.0
        %1091 = vmatpush1.msra.mxu0 0.0
        %1092 = vmatprep.subr.mxu0 0.0
        %1093 = vmatpush1.msra.mxu0 0.0
        %1094 = vmatprep.subr.mxu0 0.0
        %1095 = vmatpush1.msra.mxu0 0.0
        %1096 = vmatprep.subr.mxu0 0.0
        %1097 = vmatpush1.msra.mxu0 0.0
        %1098 = vmatprep.subr.mxu0 0.0
        %1099 = vmatpush1.msra.mxu0 0.0
        %1100 = vmatprep.subr.mxu0 0.0
        %1101 = vmatpush1.msra.mxu0 0.0
        %1102 = vmatprep.subr.mxu0 0.0
        %1103 = vmatpush1.msra.mxu0 0.0
        %1104 = vmatprep.subr.mxu0 0.0
        %1105 = vmatpush1.msra.mxu0 0.0
        %1106 = vmatprep.subr.mxu0 0.0
        %1107 = vmatpush1.msra.mxu0 0.0
        %1108 = vmatprep.mubr.f32.mxu0 0.0
        %v1109 = vand.u32 %v1026, 4294901760
        %v1110 = vsub.f32 %v1026, %v1109
        %v1111 = vand.u32 %v1110, 4294901760
        %v1112 = vsub.f32 %v1110, %v1111
        %v1113 = vand.u32 %v1112, 4294901760
        %1114 = vmatmul.mubr.f32.gmra.mrb[0].mxu0 %v1113
        %v1115 = vpop.f32.mrb[0].mxu0
        %v1116 = vadd.f32 0.0, %v1115
        %v1117 = vpop.f32.mrb[0].mxu0
        %v1118 = vadd.f32 0.0, %v1117
        %1119 = vdwg.mxu0
        %v1120 = vand.u32 %v284, 4294901760
        %v1121 = vsub.f32 %v284, %v1120
        %v1122 = vand.u32 %v1121, 4294901760
        %v1123 = vsub.f32 %v1121, %v1122
        %v1124 = vand.u32 %v1123, 4294901760
        %1125 = vmatprep.subr.mxu0 %v1124
        %v1126 = vand.u32 %v283, 4294901760
        %v1127 = vsub.f32 %v283, %v1126
        %v1128 = vand.u32 %v1127, 4294901760
        %v1129 = vsub.f32 %v1127, %v1128
        %v1130 = vand.u32 %v1129, 4294901760
        %1131 = vmatpush1.msra.mxu0 %v1130
        %v1132 = vand.u32 %v286, 4294901760
        %v1133 = vsub.f32 %v286, %v1132
        %v1134 = vand.u32 %v1133, 4294901760
        %v1135 = vsub.f32 %v1133, %v1134
        %v1136 = vand.u32 %v1135, 4294901760
        %1137 = vmatprep.subr.mxu0 %v1136
        %v1138 = vand.u32 %v285, 4294901760
        %v1139 = vsub.f32 %v285, %v1138
        %v1140 = vand.u32 %v1139, 4294901760
        %v1141 = vsub.f32 %v1139, %v1140
        %v1142 = vand.u32 %v1141, 4294901760
        %1143 = vmatpush1.msra.mxu0 %v1142
        %v1144 = vand.u32 %v288, 4294901760
        %v1145 = vsub.f32 %v288, %v1144
        %v1146 = vand.u32 %v1145, 4294901760
        %v1147 = vsub.f32 %v1145, %v1146
        %v1148 = vand.u32 %v1147, 4294901760
        %1149 = vmatprep.subr.mxu0 %v1148
        %v1150 = vand.u32 %v287, 4294901760
        %v1151 = vsub.f32 %v287, %v1150
        %v1152 = vand.u32 %v1151, 4294901760
        %v1153 = vsub.f32 %v1151, %v1152
        %v1154 = vand.u32 %v1153, 4294901760
        %1155 = vmatpush1.msra.mxu0 %v1154
        %v1156 = vand.u32 %v290, 4294901760
        %v1157 = vsub.f32 %v290, %v1156
        %v1158 = vand.u32 %v1157, 4294901760
        %v1159 = vsub.f32 %v1157, %v1158
        %v1160 = vand.u32 %v1159, 4294901760
        %1161 = vmatprep.subr.mxu0 %v1160
        %v1162 = vand.u32 %v289, 4294901760
        %v1163 = vsub.f32 %v289, %v1162
        %v1164 = vand.u32 %v1163, 4294901760
        %v1165 = vsub.f32 %v1163, %v1164
        %v1166 = vand.u32 %v1165, 4294901760
        %1167 = vmatpush1.msra.mxu0 %v1166
        %v1168 = vand.u32 %v292, 4294901760
        %v1169 = vsub.f32 %v292, %v1168
        %v1170 = vand.u32 %v1169, 4294901760
        %v1171 = vsub.f32 %v1169, %v1170
        %v1172 = vand.u32 %v1171, 4294901760
        %1173 = vmatprep.subr.mxu0 %v1172
        %v1174 = vand.u32 %v291, 4294901760
        %v1175 = vsub.f32 %v291, %v1174
        %v1176 = vand.u32 %v1175, 4294901760
        %v1177 = vsub.f32 %v1175, %v1176
        %v1178 = vand.u32 %v1177, 4294901760
        %1179 = vmatpush1.msra.mxu0 %v1178
        %v1180 = vand.u32 %v294, 4294901760
        %v1181 = vsub.f32 %v294, %v1180
        %v1182 = vand.u32 %v1181, 4294901760
        %v1183 = vsub.f32 %v1181, %v1182
        %v1184 = vand.u32 %v1183, 4294901760
        %1185 = vmatprep.subr.mxu0 %v1184
        %v1186 = vand.u32 %v293, 4294901760
        %v1187 = vsub.f32 %v293, %v1186
        %v1188 = vand.u32 %v1187, 4294901760
        %v1189 = vsub.f32 %v1187, %v1188
        %v1190 = vand.u32 %v1189, 4294901760
        %1191 = vmatpush1.msra.mxu0 %v1190
        %v1192 = vand.u32 %v296, 4294901760
        %v1193 = vsub.f32 %v296, %v1192
        %v1194 = vand.u32 %v1193, 4294901760
        %v1195 = vsub.f32 %v1193, %v1194
        %v1196 = vand.u32 %v1195, 4294901760
        %1197 = vmatprep.subr.mxu0 %v1196
        %v1198 = vand.u32 %v295, 4294901760
        %v1199 = vsub.f32 %v295, %v1198
        %v1200 = vand.u32 %v1199, 4294901760
        %v1201 = vsub.f32 %v1199, %v1200
        %v1202 = vand.u32 %v1201, 4294901760
        %1203 = vmatpush1.msra.mxu0 %v1202
        %v1204 = vand.u32 %v298, 4294901760
        %v1205 = vsub.f32 %v298, %v1204
        %v1206 = vand.u32 %v1205, 4294901760
        %v1207 = vsub.f32 %v1205, %v1206
        %v1208 = vand.u32 %v1207, 4294901760
        %1209 = vmatprep.subr.mxu0 %v1208
        %v1210 = vand.u32 %v297, 4294901760
        %v1211 = vsub.f32 %v297, %v1210
        %v1212 = vand.u32 %v1211, 4294901760
        %v1213 = vsub.f32 %v1211, %v1212
        %v1214 = vand.u32 %v1213, 4294901760
        %1215 = vmatpush1.msra.mxu0 %v1214
        %1216 = vmatprep.subr.mxu0 0.0
        %1217 = vmatpush1.msra.mxu0 0.0
        %1218 = vmatprep.subr.mxu0 0.0
        %1219 = vmatpush1.msra.mxu0 0.0
        %1220 = vmatprep.subr.mxu0 0.0
        %1221 = vmatpush1.msra.mxu0 0.0
        %1222 = vmatprep.subr.mxu0 0.0
        %1223 = vmatpush1.msra.mxu0 0.0
        %1224 = vmatprep.subr.mxu0 0.0
        %1225 = vmatpush1.msra.mxu0 0.0
        %1226 = vmatprep.subr.mxu0 0.0
        %1227 = vmatpush1.msra.mxu0 0.0
        %1228 = vmatprep.subr.mxu0 0.0
        %1229 = vmatpush1.msra.mxu0 0.0
        %1230 = vmatprep.subr.mxu0 0.0
        %1231 = vmatpush1.msra.mxu0 0.0
        %1232 = vmatprep.subr.mxu0 0.0
        %1233 = vmatpush1.msra.mxu0 0.0
        %1234 = vmatprep.subr.mxu0 0.0
        %1235 = vmatpush1.msra.mxu0 0.0
        %1236 = vmatprep.subr.mxu0 0.0
        %1237 = vmatpush1.msra.mxu0 0.0
        %1238 = vmatprep.subr.mxu0 0.0
        %1239 = vmatpush1.msra.mxu0 0.0
        %1240 = vmatprep.subr.mxu0 0.0
        %1241 = vmatpush1.msra.mxu0 0.0
        %1242 = vmatprep.subr.mxu0 0.0
        %1243 = vmatpush1.msra.mxu0 0.0
        %1244 = vmatprep.subr.mxu0 0.0
        %1245 = vmatpush1.msra.mxu0 0.0
        %1246 = vmatprep.subr.mxu0 0.0
        %1247 = vmatpush1.msra.mxu0 0.0
        %1248 = vmatprep.subr.mxu0 0.0
        %1249 = vmatpush1.msra.mxu0 0.0
        %1250 = vmatprep.subr.mxu0 0.0
        %1251 = vmatpush1.msra.mxu0 0.0
        %1252 = vmatprep.subr.mxu0 0.0
        %1253 = vmatpush1.msra.mxu0 0.0
        %1254 = vmatprep.subr.mxu0 0.0
        %1255 = vmatpush1.msra.mxu0 0.0
        %1256 = vmatprep.subr.mxu0 0.0
        %1257 = vmatpush1.msra.mxu0 0.0
        %1258 = vmatprep.subr.mxu0 0.0
        %1259 = vmatpush1.msra.mxu0 0.0
        %1260 = vmatprep.subr.mxu0 0.0
        %1261 = vmatpush1.msra.mxu0 0.0
        %1262 = vmatprep.subr.mxu0 0.0
        %1263 = vmatpush1.msra.mxu0 0.0
        %1264 = vmatprep.mubr.f32.mxu0 0.0
        %v1265 = vand.u32 %v1026, 4294901760
        %1266 = vmatmul.mubr.f32.gmra.mrb[0].mxu0 %v1265
        %v1267 = vpop.f32.mrb[0].mxu0
        %v1268 = vadd.f32 %v1116, %v1267
        %v1269 = vpop.f32.mrb[0].mxu0
        %v1270 = vadd.f32 %v1118, %v1269
        %1271 = vdwg.mxu0
        %v1272 = vand.u32 %v284, 4294901760
        %v1273 = vsub.f32 %v284, %v1272
        %1274 = vmatprep.subr.mxu0 %v1273
        %v1275 = vand.u32 %v283, 4294901760
        %v1276 = vsub.f32 %v283, %v1275
        %1277 = vmatpush1.msra.mxu0 %v1276
        %v1278 = vand.u32 %v286, 4294901760
        %v1279 = vsub.f32 %v286, %v1278
        %1280 = vmatprep.subr.mxu0 %v1279
        %v1281 = vand.u32 %v285, 4294901760
        %v1282 = vsub.f32 %v285, %v1281
        %1283 = vmatpush1.msra.mxu0 %v1282
        %v1284 = vand.u32 %v288, 4294901760
        %v1285 = vsub.f32 %v288, %v1284
        %1286 = vmatprep.subr.mxu0 %v1285
        %v1287 = vand.u32 %v287, 4294901760
        %v1288 = vsub.f32 %v287, %v1287
        %1289 = vmatpush1.msra.mxu0 %v1288
        %v1290 = vand.u32 %v290, 4294901760
        %v1291 = vsub.f32 %v290, %v1290
        %1292 = vmatprep.subr.mxu0 %v1291
        %v1293 = vand.u32 %v289, 4294901760
        %v1294 = vsub.f32 %v289, %v1293
        %1295 = vmatpush1.msra.mxu0 %v1294
        %v1296 = vand.u32 %v292, 4294901760
        %v1297 = vsub.f32 %v292, %v1296
        %1298 = vmatprep.subr.mxu0 %v1297
        %v1299 = vand.u32 %v291, 4294901760
        %v1300 = vsub.f32 %v291, %v1299
        %1301 = vmatpush1.msra.mxu0 %v1300
        %v1302 = vand.u32 %v294, 4294901760
        %v1303 = vsub.f32 %v294, %v1302
        %1304 = vmatprep.subr.mxu0 %v1303
        %v1305 = vand.u32 %v293, 4294901760
        %v1306 = vsub.f32 %v293, %v1305
        %1307 = vmatpush1.msra.mxu0 %v1306
        %v1308 = vand.u32 %v296, 4294901760
        %v1309 = vsub.f32 %v296, %v1308
        %1310 = vmatprep.subr.mxu0 %v1309
        %v1311 = vand.u32 %v295, 4294901760
        %v1312 = vsub.f32 %v295, %v1311
        %1313 = vmatpush1.msra.mxu0 %v1312
        %v1314 = vand.u32 %v298, 4294901760
        %v1315 = vsub.f32 %v298, %v1314
        %1316 = vmatprep.subr.mxu0 %v1315
        %v1317 = vand.u32 %v297, 4294901760
        %v1318 = vsub.f32 %v297, %v1317
        %1319 = vmatpush1.msra.mxu0 %v1318
        %1320 = vmatprep.subr.mxu0 0.0
        %1321 = vmatpush1.msra.mxu0 0.0
        %1322 = vmatprep.subr.mxu0 0.0
        %1323 = vmatpush1.msra.mxu0 0.0
        %1324 = vmatprep.subr.mxu0 0.0
        %1325 = vmatpush1.msra.mxu0 0.0
        %1326 = vmatprep.subr.mxu0 0.0
        %1327 = vmatpush1.msra.mxu0 0.0
        %1328 = vmatprep.subr.mxu0 0.0
        %1329 = vmatpush1.msra.mxu0 0.0
        %1330 = vmatprep.subr.mxu0 0.0
        %1331 = vmatpush1.msra.mxu0 0.0
        %1332 = vmatprep.subr.mxu0 0.0
        %1333 = vmatpush1.msra.mxu0 0.0
        %1334 = vmatprep.subr.mxu0 0.0
        %1335 = vmatpush1.msra.mxu0 0.0
        %1336 = vmatprep.subr.mxu0 0.0
        %1337 = vmatpush1.msra.mxu0 0.0
        %1338 = vmatprep.subr.mxu0 0.0
        %1339 = vmatpush1.msra.mxu0 0.0
        %1340 = vmatprep.subr.mxu0 0.0
        %1341 = vmatpush1.msra.mxu0 0.0
        %1342 = vmatprep.subr.mxu0 0.0
        %1343 = vmatpush1.msra.mxu0 0.0
        %1344 = vmatprep.subr.mxu0 0.0
        %1345 = vmatpush1.msra.mxu0 0.0
        %1346 = vmatprep.subr.mxu0 0.0
        %1347 = vmatpush1.msra.mxu0 0.0
        %1348 = vmatprep.subr.mxu0 0.0
        %1349 = vmatpush1.msra.mxu0 0.0
        %1350 = vmatprep.subr.mxu0 0.0
        %1351 = vmatpush1.msra.mxu0 0.0
        %1352 = vmatprep.subr.mxu0 0.0
        %1353 = vmatpush1.msra.mxu0 0.0
        %1354 = vmatprep.subr.mxu0 0.0
        %1355 = vmatpush1.msra.mxu0 0.0
        %1356 = vmatprep.subr.mxu0 0.0
        %1357 = vmatpush1.msra.mxu0 0.0
        %1358 = vmatprep.subr.mxu0 0.0
        %1359 = vmatpush1.msra.mxu0 0.0
        %1360 = vmatprep.subr.mxu0 0.0
        %1361 = vmatpush1.msra.mxu0 0.0
        %1362 = vmatprep.subr.mxu0 0.0
        %1363 = vmatpush1.msra.mxu0 0.0
        %1364 = vmatprep.subr.mxu0 0.0
        %1365 = vmatpush1.msra.mxu0 0.0
        %1366 = vmatprep.subr.mxu0 0.0
        %1367 = vmatpush1.msra.mxu0 0.0
        %1368 = vmatprep.mubr.f32.mxu0 0.0
        %v1369 = vand.u32 %v1026, 4294901760
        %v1370 = vsub.f32 %v1026, %v1369
        %1371 = vmatmul.mubr.f32.gmra.mrb[0].mxu0 %v1370
        %v1372 = vpop.f32.mrb[0].mxu0
        %v1373 = vadd.f32 %v1268, %v1372
        %v1374 = vpop.f32.mrb[0].mxu0
        %v1375 = vadd.f32 %v1270, %v1374
        %1376 = vdwg.mxu0
        %v1377 = vand.u32 %v284, 4294901760
        %1378 = vmatprep.subr.mxu0 %v1377
        %v1379 = vand.u32 %v283, 4294901760
        %1380 = vmatpush1.msra.mxu0 %v1379
        %v1381 = vand.u32 %v286, 4294901760
        %1382 = vmatprep.subr.mxu0 %v1381
        %v1383 = vand.u32 %v285, 4294901760
        %1384 = vmatpush1.msra.mxu0 %v1383
        %v1385 = vand.u32 %v288, 4294901760
        %1386 = vmatprep.subr.mxu0 %v1385
        %v1387 = vand.u32 %v287, 4294901760
        %1388 = vmatpush1.msra.mxu0 %v1387
        %v1389 = vand.u32 %v290, 4294901760
        %1390 = vmatprep.subr.mxu0 %v1389
        %v1391 = vand.u32 %v289, 4294901760
        %1392 = vmatpush1.msra.mxu0 %v1391
        %v1393 = vand.u32 %v292, 4294901760
        %1394 = vmatprep.subr.mxu0 %v1393
        %v1395 = vand.u32 %v291, 4294901760
        %1396 = vmatpush1.msra.mxu0 %v1395
        %v1397 = vand.u32 %v294, 4294901760
        %1398 = vmatprep.subr.mxu0 %v1397
        %v1399 = vand.u32 %v293, 4294901760
        %1400 = vmatpush1.msra.mxu0 %v1399
        %v1401 = vand.u32 %v296, 4294901760
        %1402 = vmatprep.subr.mxu0 %v1401
        %v1403 = vand.u32 %v295, 4294901760
        %1404 = vmatpush1.msra.mxu0 %v1403
        %v1405 = vand.u32 %v298, 4294901760
        %1406 = vmatprep.subr.mxu0 %v1405
        %v1407 = vand.u32 %v297, 4294901760
        %1408 = vmatpush1.msra.mxu0 %v1407
        %1409 = vmatprep.subr.mxu0 0.0
        %1410 = vmatpush1.msra.mxu0 0.0
        %1411 = vmatprep.subr.mxu0 0.0
        %1412 = vmatpush1.msra.mxu0 0.0
        %1413 = vmatprep.subr.mxu0 0.0
        %1414 = vmatpush1.msra.mxu0 0.0
        %1415 = vmatprep.subr.mxu0 0.0
        %1416 = vmatpush1.msra.mxu0 0.0
        %1417 = vmatprep.subr.mxu0 0.0
        %1418 = vmatpush1.msra.mxu0 0.0
        %1419 = vmatprep.subr.mxu0 0.0
        %1420 = vmatpush1.msra.mxu0 0.0
        %1421 = vmatprep.subr.mxu0 0.0
        %1422 = vmatpush1.msra.mxu0 0.0
        %1423 = vmatprep.subr.mxu0 0.0
        %1424 = vmatpush1.msra.mxu0 0.0
        %1425 = vmatprep.subr.mxu0 0.0
        %1426 = vmatpush1.msra.mxu0 0.0
        %1427 = vmatprep.subr.mxu0 0.0
        %1428 = vmatpush1.msra.mxu0 0.0
        %1429 = vmatprep.subr.mxu0 0.0
        %1430 = vmatpush1.msra.mxu0 0.0
        %1431 = vmatprep.subr.mxu0 0.0
        %1432 = vmatpush1.msra.mxu0 0.0
        %1433 = vmatprep.subr.mxu0 0.0
        %1434 = vmatpush1.msra.mxu0 0.0
        %1435 = vmatprep.subr.mxu0 0.0
        %1436 = vmatpush1.msra.mxu0 0.0
        %1437 = vmatprep.subr.mxu0 0.0
        %1438 = vmatpush1.msra.mxu0 0.0
        %1439 = vmatprep.subr.mxu0 0.0
        %1440 = vmatpush1.msra.mxu0 0.0
        %1441 = vmatprep.subr.mxu0 0.0
        %1442 = vmatpush1.msra.mxu0 0.0
        %1443 = vmatprep.subr.mxu0 0.0
        %1444 = vmatpush1.msra.mxu0 0.0
        %1445 = vmatprep.subr.mxu0 0.0
        %1446 = vmatpush1.msra.mxu0 0.0
        %1447 = vmatprep.subr.mxu0 0.0
        %1448 = vmatpush1.msra.mxu0 0.0
        %1449 = vmatprep.subr.mxu0 0.0
        %1450 = vmatpush1.msra.mxu0 0.0
        %1451 = vmatprep.subr.mxu0 0.0
        %1452 = vmatpush1.msra.mxu0 0.0
        %1453 = vmatprep.subr.mxu0 0.0
        %1454 = vmatpush1.msra.mxu0 0.0
        %1455 = vmatprep.subr.mxu0 0.0
        %1456 = vmatpush1.msra.mxu0 0.0
        %1457 = vmatprep.mubr.f32.mxu0 0.0
        %v1458 = vand.u32 %v1026, 4294901760
        %v1459 = vsub.f32 %v1026, %v1458
        %v1460 = vand.u32 %v1459, 4294901760
        %1461 = vmatmul.mubr.f32.gmra.mrb[0].mxu0 %v1460
        %v1462 = vpop.f32.mrb[0].mxu0
        %v1463 = vadd.f32 %v1373, %v1462
        %v1464 = vpop.f32.mrb[0].mxu0
        %v1465 = vadd.f32 %v1375, %v1464
        %1466 = vdwg.mxu0
        %v1467 = vand.u32 %v284, 4294901760
        %v1468 = vsub.f32 %v284, %v1467
        %v1469 = vand.u32 %v1468, 4294901760
        %1470 = vmatprep.subr.mxu0 %v1469
        %v1471 = vand.u32 %v283, 4294901760
        %v1472 = vsub.f32 %v283, %v1471
        %v1473 = vand.u32 %v1472, 4294901760
        %1474 = vmatpush1.msra.mxu0 %v1473
        %v1475 = vand.u32 %v286, 4294901760
        %v1476 = vsub.f32 %v286, %v1475
        %v1477 = vand.u32 %v1476, 4294901760
        %1478 = vmatprep.subr.mxu0 %v1477
        %v1479 = vand.u32 %v285, 4294901760
        %v1480 = vsub.f32 %v285, %v1479
        %v1481 = vand.u32 %v1480, 4294901760
        %1482 = vmatpush1.msra.mxu0 %v1481
        %v1483 = vand.u32 %v288, 4294901760
        %v1484 = vsub.f32 %v288, %v1483
        %v1485 = vand.u32 %v1484, 4294901760
        %1486 = vmatprep.subr.mxu0 %v1485
        %v1487 = vand.u32 %v287, 4294901760
        %v1488 = vsub.f32 %v287, %v1487
        %v1489 = vand.u32 %v1488, 4294901760
        %1490 = vmatpush1.msra.mxu0 %v1489
        %v1491 = vand.u32 %v290, 4294901760
        %v1492 = vsub.f32 %v290, %v1491
        %v1493 = vand.u32 %v1492, 4294901760
        %1494 = vmatprep.subr.mxu0 %v1493
        %v1495 = vand.u32 %v289, 4294901760
        %v1496 = vsub.f32 %v289, %v1495
        %v1497 = vand.u32 %v1496, 4294901760
        %1498 = vmatpush1.msra.mxu0 %v1497
        %v1499 = vand.u32 %v292, 4294901760
        %v1500 = vsub.f32 %v292, %v1499
        %v1501 = vand.u32 %v1500, 4294901760
        %1502 = vmatprep.subr.mxu0 %v1501
        %v1503 = vand.u32 %v291, 4294901760
        %v1504 = vsub.f32 %v291, %v1503
        %v1505 = vand.u32 %v1504, 4294901760
        %1506 = vmatpush1.msra.mxu0 %v1505
        %v1507 = vand.u32 %v294, 4294901760
        %v1508 = vsub.f32 %v294, %v1507
        %v1509 = vand.u32 %v1508, 4294901760
        %1510 = vmatprep.subr.mxu0 %v1509
        %v1511 = vand.u32 %v293, 4294901760
        %v1512 = vsub.f32 %v293, %v1511
        %v1513 = vand.u32 %v1512, 4294901760
        %1514 = vmatpush1.msra.mxu0 %v1513
        %v1515 = vand.u32 %v296, 4294901760
        %v1516 = vsub.f32 %v296, %v1515
        %v1517 = vand.u32 %v1516, 4294901760
        %1518 = vmatprep.subr.mxu0 %v1517
        %v1519 = vand.u32 %v295, 4294901760
        %v1520 = vsub.f32 %v295, %v1519
        %v1521 = vand.u32 %v1520, 4294901760
        %1522 = vmatpush1.msra.mxu0 %v1521
        %v1523 = vand.u32 %v298, 4294901760
        %v1524 = vsub.f32 %v298, %v1523
        %v1525 = vand.u32 %v1524, 4294901760
        %1526 = vmatprep.subr.mxu0 %v1525
        %v1527 = vand.u32 %v297, 4294901760
        %v1528 = vsub.f32 %v297, %v1527
        %v1529 = vand.u32 %v1528, 4294901760
        %1530 = vmatpush1.msra.mxu0 %v1529
        %1531 = vmatprep.subr.mxu0 0.0
        %1532 = vmatpush1.msra.mxu0 0.0
        %1533 = vmatprep.subr.mxu0 0.0
        %1534 = vmatpush1.msra.mxu0 0.0
        %1535 = vmatprep.subr.mxu0 0.0
        %1536 = vmatpush1.msra.mxu0 0.0
        %1537 = vmatprep.subr.mxu0 0.0
        %1538 = vmatpush1.msra.mxu0 0.0
        %1539 = vmatprep.subr.mxu0 0.0
        %1540 = vmatpush1.msra.mxu0 0.0
        %1541 = vmatprep.subr.mxu0 0.0
        %1542 = vmatpush1.msra.mxu0 0.0
        %1543 = vmatprep.subr.mxu0 0.0
        %1544 = vmatpush1.msra.mxu0 0.0
        %1545 = vmatprep.subr.mxu0 0.0
        %1546 = vmatpush1.msra.mxu0 0.0
        %1547 = vmatprep.subr.mxu0 0.0
        %1548 = vmatpush1.msra.mxu0 0.0
        %1549 = vmatprep.subr.mxu0 0.0
        %1550 = vmatpush1.msra.mxu0 0.0
        %1551 = vmatprep.subr.mxu0 0.0
        %1552 = vmatpush1.msra.mxu0 0.0
        %1553 = vmatprep.subr.mxu0 0.0
        %1554 = vmatpush1.msra.mxu0 0.0
        %1555 = vmatprep.subr.mxu0 0.0
        %1556 = vmatpush1.msra.mxu0 0.0
        %1557 = vmatprep.subr.mxu0 0.0
        %1558 = vmatpush1.msra.mxu0 0.0
        %1559 = vmatprep.subr.mxu0 0.0
        %1560 = vmatpush1.msra.mxu0 0.0
        %1561 = vmatprep.subr.mxu0 0.0
        %1562 = vmatpush1.msra.mxu0 0.0
        %1563 = vmatprep.subr.mxu0 0.0
        %1564 = vmatpush1.msra.mxu0 0.0
        %1565 = vmatprep.subr.mxu0 0.0
        %1566 = vmatpush1.msra.mxu0 0.0
        %1567 = vmatprep.subr.mxu0 0.0
        %1568 = vmatpush1.msra.mxu0 0.0
        %1569 = vmatprep.subr.mxu0 0.0
        %1570 = vmatpush1.msra.mxu0 0.0
        %1571 = vmatprep.subr.mxu0 0.0
        %1572 = vmatpush1.msra.mxu0 0.0
        %1573 = vmatprep.subr.mxu0 0.0
        %1574 = vmatpush1.msra.mxu0 0.0
        %1575 = vmatprep.subr.mxu0 0.0
        %1576 = vmatpush1.msra.mxu0 0.0
        %1577 = vmatprep.subr.mxu0 0.0
        %1578 = vmatpush1.msra.mxu0 0.0
        %1579 = vmatprep.mubr.f32.mxu0 0.0
        %v1580 = vand.u32 %v1026, 4294901760
        %1581 = vmatmul.mubr.f32.gmra.mrb[0].mxu0 %v1580
        %v1582 = vpop.f32.mrb[0].mxu0
        %v1583 = vadd.f32 %v1463, %v1582
        %v1584 = vpop.f32.mrb[0].mxu0
        %v1585 = vadd.f32 %v1465, %v1584
        %1586 = vdwg.mxu0
        %v1587 = vand.u32 %v284, 4294901760
        %1588 = vmatprep.subr.mxu0 %v1587
        %v1589 = vand.u32 %v283, 4294901760
        %1590 = vmatpush1.msra.mxu0 %v1589
        %v1591 = vand.u32 %v286, 4294901760
        %1592 = vmatprep.subr.mxu0 %v1591
        %v1593 = vand.u32 %v285, 4294901760
        %1594 = vmatpush1.msra.mxu0 %v1593
        %v1595 = vand.u32 %v288, 4294901760
        %1596 = vmatprep.subr.mxu0 %v1595
        %v1597 = vand.u32 %v287, 4294901760
        %1598 = vmatpush1.msra.mxu0 %v1597
        %v1599 = vand.u32 %v290, 4294901760
        %1600 = vmatprep.subr.mxu0 %v1599
        %v1601 = vand.u32 %v289, 4294901760
        %1602 = vmatpush1.msra.mxu0 %v1601
        %v1603 = vand.u32 %v292, 4294901760
        %1604 = vmatprep.subr.mxu0 %v1603
        %v1605 = vand.u32 %v291, 4294901760
        %1606 = vmatpush1.msra.mxu0 %v1605
        %v1607 = vand.u32 %v294, 4294901760
        %1608 = vmatprep.subr.mxu0 %v1607
        %v1609 = vand.u32 %v293, 4294901760
        %1610 = vmatpush1.msra.mxu0 %v1609
        %v1611 = vand.u32 %v296, 4294901760
        %1612 = vmatprep.subr.mxu0 %v1611
        %v1613 = vand.u32 %v295, 4294901760
        %1614 = vmatpush1.msra.mxu0 %v1613
        %v1615 = vand.u32 %v298, 4294901760
        %1616 = vmatprep.subr.mxu0 %v1615
        %v1617 = vand.u32 %v297, 4294901760
        %1618 = vmatpush1.msra.mxu0 %v1617
        %1619 = vmatprep.subr.mxu0 0.0
        %1620 = vmatpush1.msra.mxu0 0.0
        %1621 = vmatprep.subr.mxu0 0.0
        %1622 = vmatpush1.msra.mxu0 0.0
        %1623 = vmatprep.subr.mxu0 0.0
        %1624 = vmatpush1.msra.mxu0 0.0
        %1625 = vmatprep.subr.mxu0 0.0
        %1626 = vmatpush1.msra.mxu0 0.0
        %1627 = vmatprep.subr.mxu0 0.0
        %1628 = vmatpush1.msra.mxu0 0.0
        %1629 = vmatprep.subr.mxu0 0.0
        %1630 = vmatpush1.msra.mxu0 0.0
        %1631 = vmatprep.subr.mxu0 0.0
        %1632 = vmatpush1.msra.mxu0 0.0
        %1633 = vmatprep.subr.mxu0 0.0
        %1634 = vmatpush1.msra.mxu0 0.0
        %1635 = vmatprep.subr.mxu0 0.0
        %1636 = vmatpush1.msra.mxu0 0.0
        %1637 = vmatprep.subr.mxu0 0.0
        %1638 = vmatpush1.msra.mxu0 0.0
        %1639 = vmatprep.subr.mxu0 0.0
        %1640 = vmatpush1.msra.mxu0 0.0
        %1641 = vmatprep.subr.mxu0 0.0
        %1642 = vmatpush1.msra.mxu0 0.0
        %1643 = vmatprep.subr.mxu0 0.0
        %1644 = vmatpush1.msra.mxu0 0.0
        %1645 = vmatprep.subr.mxu0 0.0
        %1646 = vmatpush1.msra.mxu0 0.0
        %1647 = vmatprep.subr.mxu0 0.0
        %1648 = vmatpush1.msra.mxu0 0.0
        %1649 = vmatprep.subr.mxu0 0.0
        %1650 = vmatpush1.msra.mxu0 0.0
        %1651 = vmatprep.subr.mxu0 0.0
        %1652 = vmatpush1.msra.mxu0 0.0
        %1653 = vmatprep.subr.mxu0 0.0
        %1654 = vmatpush1.msra.mxu0 0.0
        %1655 = vmatprep.subr.mxu0 0.0
        %1656 = vmatpush1.msra.mxu0 0.0
        %1657 = vmatprep.subr.mxu0 0.0
        %1658 = vmatpush1.msra.mxu0 0.0
        %1659 = vmatprep.subr.mxu0 0.0
        %1660 = vmatpush1.msra.mxu0 0.0
        %1661 = vmatprep.subr.mxu0 0.0
        %1662 = vmatpush1.msra.mxu0 0.0
        %1663 = vmatprep.subr.mxu0 0.0
        %1664 = vmatpush1.msra.mxu0 0.0
        %1665 = vmatprep.subr.mxu0 0.0
        %1666 = vmatpush1.msra.mxu0 0.0
        %1667 = vmatprep.mubr.f32.mxu0 0.0
        %v1668 = vand.u32 %v1026, 4294901760
        %1669 = vmatmul.mubr.f32.gmra.mrb[0].mxu0 %v1668
        %v1670 = vpop.f32.mrb[0].mxu0
        %v1671 = vadd.f32 %v1583, %v1670
        %v1672 = vpop.f32.mrb[0].mxu0
        %v1673 = vadd.f32 %v1585, %v1672
        %1674 = vdwg.mxu0
        %s1675 = scalar_lea.vmem %s259, 4
        %v1676 = vld [vmem:[%s1675] sm:$0xf]
        %v1677 = vadd.f32 %v1676, %v1671
        %v1678 = vxor.u32 %v1677, 2147483648
        %v1679 = vmul.f32 %v1678, 1.442695
        %v1680 = vpow.pop %v1679
        %v1681 = vadd.f32 %v1680, 1.0
        %v1682 = vrcp.pop %v1681
        %v1683 = vmul.f32 1.0, %v1682
        %v1684 = vadd.f32 %v1673, %v968
        %v1685 = vmul.f32 %v1683, %v1684
        %v1687 = vrot.slane %v1676, 2
        %v1689 = vadd.f32 %v1687, %v1685
        %v1690 = vtanh.pop %v1689
        %v1691 = vsub.f32 1.0, %v1683
        %1693 = vrot.lane.b32.xlu0 %v1690, 64
        %v1694 = vpop.permute.xlu0 %1693
        %v1696 = vmul.f32 %v1691, %v1694
        %v1698 = vunpack.c.l.s4 1983009808
        %v1699 = vunpack.c.0.s8 %v1698
        %v1700 = vlaneseq
        %v1701 = vshrl.u32 %v1700, 7
        %v1702 = vsub.s32 %v1699, %v1701
        %v1703 = vrot.slane %v1022, %v1702
        %1704 = vrot.lane.b32.xlu0 %v1703, 64
        %v1705 = vpop.permute.xlu0 %1704
        %v1707 = vmul.f32 %v1683, %v1705
        %v1708 = vadd.f32 %v1696, %v1707
        %v1709 = vstv %s1023
        %v1710 = vstv %s1024
        %v1711 = vsel %vm301, %v1709, %v1710
        %vm1712 = vcmp.lt.s32.totalorder %v1711, %v1000
        %v1715 = vunpack.c.l.s4 1983009808
        %v1716 = vunpack.c.0.s8 %v1715
        %v1717 = vlaneseq
        %v1718 = vshrl.u32 %v1717, 7
        %v1719 = vsub.s32 %v1716, %v1718
        %v1720 = vrot.slane %v1708, %v1719
        %1721 = vrot.lane.b32.xlu0 %v1720, 64
        %v1722 = vpop.permute.xlu0 %1721
        %v1724 = vsel %vm1712, %v1722, 0.0
        %s1725 = scalar_lea.vmem %s265, 2
        %1726 = vst.msk [vmem:[%s1725] sm:$0x3] %vm1014, %v1724
        %1728 = vrot.lane.b32.xlu0 %v1724, 96
        %v1729 = vpop.permute.xlu0 %1728
        %s1731 = scalar_lea.vmem %s272, 4
        %1732 = vst.msk [vmem:[%s1731] sm:$0x3] %vm1014, %v1729
        %v1733 = vsel %vm1712, %v1722, %v1022
        %s1734 = sadd.s32 %s303, 2
        %s1735 = ssub.s32 9, %s303
        %v1737 = vsel %vm305, %v1733, 0
        %v1739 = vand.u32 %v284, 4294901760
        %1740 = vmatprep.subr.mxu0 %v1739
        %v1741 = vand.u32 %v283, 4294901760
        %1742 = vmatpush1.msra.mxu0 %v1741
        %v1743 = vand.u32 %v286, 4294901760
        %1744 = vmatprep.subr.mxu0 %v1743
        %v1745 = vand.u32 %v285, 4294901760
        %1746 = vmatpush1.msra.mxu0 %v1745
        %v1747 = vand.u32 %v288, 4294901760
        %1748 = vmatprep.subr.mxu0 %v1747
        %v1749 = vand.u32 %v287, 4294901760
        %1750 = vmatpush1.msra.mxu0 %v1749
        %v1751 = vand.u32 %v290, 4294901760
        %1752 = vmatprep.subr.mxu0 %v1751
        %v1753 = vand.u32 %v289, 4294901760
        %1754 = vmatpush1.msra.mxu0 %v1753
        %v1755 = vand.u32 %v292, 4294901760
        %1756 = vmatprep.subr.mxu0 %v1755
        %v1757 = vand.u32 %v291, 4294901760
        %1758 = vmatpush1.msra.mxu0 %v1757
        %v1759 = vand.u32 %v294, 4294901760
        %1760 = vmatprep.subr.mxu0 %v1759
        %v1761 = vand.u32 %v293, 4294901760
        %1762 = vmatpush1.msra.mxu0 %v1761
        %v1763 = vand.u32 %v296, 4294901760
        %1764 = vmatprep.subr.mxu0 %v1763
        %v1765 = vand.u32 %v295, 4294901760
        %1766 = vmatpush1.msra.mxu0 %v1765
        %v1767 = vand.u32 %v298, 4294901760
        %1768 = vmatprep.subr.mxu0 %v1767
        %v1769 = vand.u32 %v297, 4294901760
        %1770 = vmatpush1.msra.mxu0 %v1769
        %1771 = vmatprep.subr.mxu0 0.0
        %1772 = vmatpush1.msra.mxu0 0.0
        %1773 = vmatprep.subr.mxu0 0.0
        %1774 = vmatpush1.msra.mxu0 0.0
        %1775 = vmatprep.subr.mxu0 0.0
        %1776 = vmatpush1.msra.mxu0 0.0
        %1777 = vmatprep.subr.mxu0 0.0
        %1778 = vmatpush1.msra.mxu0 0.0
        %1779 = vmatprep.subr.mxu0 0.0
        %1780 = vmatpush1.msra.mxu0 0.0
        %1781 = vmatprep.subr.mxu0 0.0
        %1782 = vmatpush1.msra.mxu0 0.0
        %1783 = vmatprep.subr.mxu0 0.0
        %1784 = vmatpush1.msra.mxu0 0.0
        %1785 = vmatprep.subr.mxu0 0.0
        %1786 = vmatpush1.msra.mxu0 0.0
        %1787 = vmatprep.subr.mxu0 0.0
        %1788 = vmatpush1.msra.mxu0 0.0
        %1789 = vmatprep.subr.mxu0 0.0
        %1790 = vmatpush1.msra.mxu0 0.0
        %1791 = vmatprep.subr.mxu0 0.0
        %1792 = vmatpush1.msra.mxu0 0.0
        %1793 = vmatprep.subr.mxu0 0.0
        %1794 = vmatpush1.msra.mxu0 0.0
        %1795 = vmatprep.subr.mxu0 0.0
        %1796 = vmatpush1.msra.mxu0 0.0
        %1797 = vmatprep.subr.mxu0 0.0
        %1798 = vmatpush1.msra.mxu0 0.0
        %1799 = vmatprep.subr.mxu0 0.0
        %1800 = vmatpush1.msra.mxu0 0.0
        %1801 = vmatprep.subr.mxu0 0.0
        %1802 = vmatpush1.msra.mxu0 0.0
        %1803 = vmatprep.subr.mxu0 0.0
        %1804 = vmatpush1.msra.mxu0 0.0
        %1805 = vmatprep.subr.mxu0 0.0
        %1806 = vmatpush1.msra.mxu0 0.0
        %1807 = vmatprep.subr.mxu0 0.0
        %1808 = vmatpush1.msra.mxu0 0.0
        %1809 = vmatprep.subr.mxu0 0.0
        %1810 = vmatpush1.msra.mxu0 0.0
        %1811 = vmatprep.subr.mxu0 0.0
        %1812 = vmatpush1.msra.mxu0 0.0
        %1813 = vmatprep.subr.mxu0 0.0
        %1814 = vmatpush1.msra.mxu0 0.0
        %1815 = vmatprep.subr.mxu0 0.0
        %1816 = vmatpush1.msra.mxu0 0.0
        %1817 = vmatprep.subr.mxu0 0.0
        %1818 = vmatpush1.msra.mxu0 0.0
        %1819 = vmatprep.mubr.f32.mxu0 0.0
        %v1820 = vand.u32 %v1737, 4294901760
        %v1821 = vsub.f32 %v1737, %v1820
        %v1822 = vand.u32 %v1821, 4294901760
        %v1823 = vsub.f32 %v1821, %v1822
        %v1824 = vand.u32 %v1823, 4294901760
        %1825 = vmatmul.mubr.f32.gmra.mrb[0].mxu0 %v1824
        %v1826 = vpop.f32.mrb[0].mxu0
        %v1827 = vadd.f32 0.0, %v1826
        %v1828 = vpop.f32.mrb[0].mxu0
        %v1829 = vadd.f32 0.0, %v1828
        %1830 = vdwg.mxu0
        %v1831 = vand.u32 %v284, 4294901760
        %v1832 = vsub.f32 %v284, %v1831
        %v1833 = vand.u32 %v1832, 4294901760
        %v1834 = vsub.f32 %v1832, %v1833
        %v1835 = vand.u32 %v1834, 4294901760
        %1836 = vmatprep.subr.mxu0 %v1835
        %v1837 = vand.u32 %v283, 4294901760
        %v1838 = vsub.f32 %v283, %v1837
        %v1839 = vand.u32 %v1838, 4294901760
        %v1840 = vsub.f32 %v1838, %v1839
        %v1841 = vand.u32 %v1840, 4294901760
        %1842 = vmatpush1.msra.mxu0 %v1841
        %v1843 = vand.u32 %v286, 4294901760
        %v1844 = vsub.f32 %v286, %v1843
        %v1845 = vand.u32 %v1844, 4294901760
        %v1846 = vsub.f32 %v1844, %v1845
        %v1847 = vand.u32 %v1846, 4294901760
        %1848 = vmatprep.subr.mxu0 %v1847
        %v1849 = vand.u32 %v285, 4294901760
        %v1850 = vsub.f32 %v285, %v1849
        %v1851 = vand.u32 %v1850, 4294901760
        %v1852 = vsub.f32 %v1850, %v1851
        %v1853 = vand.u32 %v1852, 4294901760
        %1854 = vmatpush1.msra.mxu0 %v1853
        %v1855 = vand.u32 %v288, 4294901760
        %v1856 = vsub.f32 %v288, %v1855
        %v1857 = vand.u32 %v1856, 4294901760
        %v1858 = vsub.f32 %v1856, %v1857
        %v1859 = vand.u32 %v1858, 4294901760
        %1860 = vmatprep.subr.mxu0 %v1859
        %v1861 = vand.u32 %v287, 4294901760
        %v1862 = vsub.f32 %v287, %v1861
        %v1863 = vand.u32 %v1862, 4294901760
        %v1864 = vsub.f32 %v1862, %v1863
        %v1865 = vand.u32 %v1864, 4294901760
        %1866 = vmatpush1.msra.mxu0 %v1865
        %v1867 = vand.u32 %v290, 4294901760
        %v1868 = vsub.f32 %v290, %v1867
        %v1869 = vand.u32 %v1868, 4294901760
        %v1870 = vsub.f32 %v1868, %v1869
        %v1871 = vand.u32 %v1870, 4294901760
        %1872 = vmatprep.subr.mxu0 %v1871
        %v1873 = vand.u32 %v289, 4294901760
        %v1874 = vsub.f32 %v289, %v1873
        %v1875 = vand.u32 %v1874, 4294901760
        %v1876 = vsub.f32 %v1874, %v1875
        %v1877 = vand.u32 %v1876, 4294901760
        %1878 = vmatpush1.msra.mxu0 %v1877
        %v1879 = vand.u32 %v292, 4294901760
        %v1880 = vsub.f32 %v292, %v1879
        %v1881 = vand.u32 %v1880, 4294901760
        %v1882 = vsub.f32 %v1880, %v1881
        %v1883 = vand.u32 %v1882, 4294901760
        %1884 = vmatprep.subr.mxu0 %v1883
        %v1885 = vand.u32 %v291, 4294901760
        %v1886 = vsub.f32 %v291, %v1885
        %v1887 = vand.u32 %v1886, 4294901760
        %v1888 = vsub.f32 %v1886, %v1887
        %v1889 = vand.u32 %v1888, 4294901760
        %1890 = vmatpush1.msra.mxu0 %v1889
        %v1891 = vand.u32 %v294, 4294901760
        %v1892 = vsub.f32 %v294, %v1891
        %v1893 = vand.u32 %v1892, 4294901760
        %v1894 = vsub.f32 %v1892, %v1893
        %v1895 = vand.u32 %v1894, 4294901760
        %1896 = vmatprep.subr.mxu0 %v1895
        %v1897 = vand.u32 %v293, 4294901760
        %v1898 = vsub.f32 %v293, %v1897
        %v1899 = vand.u32 %v1898, 4294901760
        %v1900 = vsub.f32 %v1898, %v1899
        %v1901 = vand.u32 %v1900, 4294901760
        %1902 = vmatpush1.msra.mxu0 %v1901
        %v1903 = vand.u32 %v296, 4294901760
        %v1904 = vsub.f32 %v296, %v1903
        %v1905 = vand.u32 %v1904, 4294901760
        %v1906 = vsub.f32 %v1904, %v1905
        %v1907 = vand.u32 %v1906, 4294901760
        %1908 = vmatprep.subr.mxu0 %v1907
        %v1909 = vand.u32 %v295, 4294901760
        %v1910 = vsub.f32 %v295, %v1909
        %v1911 = vand.u32 %v1910, 4294901760
        %v1912 = vsub.f32 %v1910, %v1911
        %v1913 = vand.u32 %v1912, 4294901760
        %1914 = vmatpush1.msra.mxu0 %v1913
        %v1915 = vand.u32 %v298, 4294901760
        %v1916 = vsub.f32 %v298, %v1915
        %v1917 = vand.u32 %v1916, 4294901760
        %v1918 = vsub.f32 %v1916, %v1917
        %v1919 = vand.u32 %v1918, 4294901760
        %1920 = vmatprep.subr.mxu0 %v1919
        %v1921 = vand.u32 %v297, 4294901760
        %v1922 = vsub.f32 %v297, %v1921
        %v1923 = vand.u32 %v1922, 4294901760
        %v1924 = vsub.f32 %v1922, %v1923
        %v1925 = vand.u32 %v1924, 4294901760
        %1926 = vmatpush1.msra.mxu0 %v1925
        %1927 = vmatprep.subr.mxu0 0.0
        %1928 = vmatpush1.msra.mxu0 0.0
        %1929 = vmatprep.subr.mxu0 0.0
        %1930 = vmatpush1.msra.mxu0 0.0
        %1931 = vmatprep.subr.mxu0 0.0
        %1932 = vmatpush1.msra.mxu0 0.0
        %1933 = vmatprep.subr.mxu0 0.0
        %1934 = vmatpush1.msra.mxu0 0.0
        %1935 = vmatprep.subr.mxu0 0.0
        %1936 = vmatpush1.msra.mxu0 0.0
        %1937 = vmatprep.subr.mxu0 0.0
        %1938 = vmatpush1.msra.mxu0 0.0
        %1939 = vmatprep.subr.mxu0 0.0
        %1940 = vmatpush1.msra.mxu0 0.0
        %1941 = vmatprep.subr.mxu0 0.0
        %1942 = vmatpush1.msra.mxu0 0.0
        %1943 = vmatprep.subr.mxu0 0.0
        %1944 = vmatpush1.msra.mxu0 0.0
        %1945 = vmatprep.subr.mxu0 0.0
        %1946 = vmatpush1.msra.mxu0 0.0
        %1947 = vmatprep.subr.mxu0 0.0
        %1948 = vmatpush1.msra.mxu0 0.0
        %1949 = vmatprep.subr.mxu0 0.0
        %1950 = vmatpush1.msra.mxu0 0.0
        %1951 = vmatprep.subr.mxu0 0.0
        %1952 = vmatpush1.msra.mxu0 0.0
        %1953 = vmatprep.subr.mxu0 0.0
        %1954 = vmatpush1.msra.mxu0 0.0
        %1955 = vmatprep.subr.mxu0 0.0
        %1956 = vmatpush1.msra.mxu0 0.0
        %1957 = vmatprep.subr.mxu0 0.0
        %1958 = vmatpush1.msra.mxu0 0.0
        %1959 = vmatprep.subr.mxu0 0.0
        %1960 = vmatpush1.msra.mxu0 0.0
        %1961 = vmatprep.subr.mxu0 0.0
        %1962 = vmatpush1.msra.mxu0 0.0
        %1963 = vmatprep.subr.mxu0 0.0
        %1964 = vmatpush1.msra.mxu0 0.0
        %1965 = vmatprep.subr.mxu0 0.0
        %1966 = vmatpush1.msra.mxu0 0.0
        %1967 = vmatprep.subr.mxu0 0.0
        %1968 = vmatpush1.msra.mxu0 0.0
        %1969 = vmatprep.subr.mxu0 0.0
        %1970 = vmatpush1.msra.mxu0 0.0
        %1971 = vmatprep.subr.mxu0 0.0
        %1972 = vmatpush1.msra.mxu0 0.0
        %1973 = vmatprep.subr.mxu0 0.0
        %1974 = vmatpush1.msra.mxu0 0.0
        %1975 = vmatprep.mubr.f32.mxu0 0.0
        %v1976 = vand.u32 %v1737, 4294901760
        %1977 = vmatmul.mubr.f32.gmra.mrb[0].mxu0 %v1976
        %v1978 = vpop.f32.mrb[0].mxu0
        %v1979 = vadd.f32 %v1827, %v1978
        %v1980 = vpop.f32.mrb[0].mxu0
        %v1981 = vadd.f32 %v1829, %v1980
        %1982 = vdwg.mxu0
        %v1983 = vand.u32 %v284, 4294901760
        %v1984 = vsub.f32 %v284, %v1983
        %1985 = vmatprep.subr.mxu0 %v1984
        %v1986 = vand.u32 %v283, 4294901760
        %v1987 = vsub.f32 %v283, %v1986
        %1988 = vmatpush1.msra.mxu0 %v1987
        %v1989 = vand.u32 %v286, 4294901760
        %v1990 = vsub.f32 %v286, %v1989
        %1991 = vmatprep.subr.mxu0 %v1990
        %v1992 = vand.u32 %v285, 4294901760
        %v1993 = vsub.f32 %v285, %v1992
        %1994 = vmatpush1.msra.mxu0 %v1993
        %v1995 = vand.u32 %v288, 4294901760
        %v1996 = vsub.f32 %v288, %v1995
        %1997 = vmatprep.subr.mxu0 %v1996
        %v1998 = vand.u32 %v287, 4294901760
        %v1999 = vsub.f32 %v287, %v1998
        %2000 = vmatpush1.msra.mxu0 %v1999
        %v2001 = vand.u32 %v290, 4294901760
        %v2002 = vsub.f32 %v290, %v2001
        %2003 = vmatprep.subr.mxu0 %v2002
        %v2004 = vand.u32 %v289, 4294901760
        %v2005 = vsub.f32 %v289, %v2004
        %2006 = vmatpush1.msra.mxu0 %v2005
        %v2007 = vand.u32 %v292, 4294901760
        %v2008 = vsub.f32 %v292, %v2007
        %2009 = vmatprep.subr.mxu0 %v2008
        %v2010 = vand.u32 %v291, 4294901760
        %v2011 = vsub.f32 %v291, %v2010
        %2012 = vmatpush1.msra.mxu0 %v2011
        %v2013 = vand.u32 %v294, 4294901760
        %v2014 = vsub.f32 %v294, %v2013
        %2015 = vmatprep.subr.mxu0 %v2014
        %v2016 = vand.u32 %v293, 4294901760
        %v2017 = vsub.f32 %v293, %v2016
        %2018 = vmatpush1.msra.mxu0 %v2017
        %v2019 = vand.u32 %v296, 4294901760
        %v2020 = vsub.f32 %v296, %v2019
        %2021 = vmatprep.subr.mxu0 %v2020
        %v2022 = vand.u32 %v295, 4294901760
        %v2023 = vsub.f32 %v295, %v2022
        %2024 = vmatpush1.msra.mxu0 %v2023
        %v2025 = vand.u32 %v298, 4294901760
        %v2026 = vsub.f32 %v298, %v2025
        %2027 = vmatprep.subr.mxu0 %v2026
        %v2028 = vand.u32 %v297, 4294901760
        %v2029 = vsub.f32 %v297, %v2028
        %2030 = vmatpush1.msra.mxu0 %v2029
        %2031 = vmatprep.subr.mxu0 0.0
        %2032 = vmatpush1.msra.mxu0 0.0
        %2033 = vmatprep.subr.mxu0 0.0
        %2034 = vmatpush1.msra.mxu0 0.0
        %2035 = vmatprep.subr.mxu0 0.0
        %2036 = vmatpush1.msra.mxu0 0.0
        %2037 = vmatprep.subr.mxu0 0.0
        %2038 = vmatpush1.msra.mxu0 0.0
        %2039 = vmatprep.subr.mxu0 0.0
        %2040 = vmatpush1.msra.mxu0 0.0
        %2041 = vmatprep.subr.mxu0 0.0
        %2042 = vmatpush1.msra.mxu0 0.0
        %2043 = vmatprep.subr.mxu0 0.0
        %2044 = vmatpush1.msra.mxu0 0.0
        %2045 = vmatprep.subr.mxu0 0.0
        %2046 = vmatpush1.msra.mxu0 0.0
        %2047 = vmatprep.subr.mxu0 0.0
        %2048 = vmatpush1.msra.mxu0 0.0
        %2049 = vmatprep.subr.mxu0 0.0
        %2050 = vmatpush1.msra.mxu0 0.0
        %2051 = vmatprep.subr.mxu0 0.0
        %2052 = vmatpush1.msra.mxu0 0.0
        %2053 = vmatprep.subr.mxu0 0.0
        %2054 = vmatpush1.msra.mxu0 0.0
        %2055 = vmatprep.subr.mxu0 0.0
        %2056 = vmatpush1.msra.mxu0 0.0
        %2057 = vmatprep.subr.mxu0 0.0
        %2058 = vmatpush1.msra.mxu0 0.0
        %2059 = vmatprep.subr.mxu0 0.0
        %2060 = vmatpush1.msra.mxu0 0.0
        %2061 = vmatprep.subr.mxu0 0.0
        %2062 = vmatpush1.msra.mxu0 0.0
        %2063 = vmatprep.subr.mxu0 0.0
        %2064 = vmatpush1.msra.mxu0 0.0
        %2065 = vmatprep.subr.mxu0 0.0
        %2066 = vmatpush1.msra.mxu0 0.0
        %2067 = vmatprep.subr.mxu0 0.0
        %2068 = vmatpush1.msra.mxu0 0.0
        %2069 = vmatprep.subr.mxu0 0.0
        %2070 = vmatpush1.msra.mxu0 0.0
        %2071 = vmatprep.subr.mxu0 0.0
        %2072 = vmatpush1.msra.mxu0 0.0
        %2073 = vmatprep.subr.mxu0 0.0
        %2074 = vmatpush1.msra.mxu0 0.0
        %2075 = vmatprep.subr.mxu0 0.0
        %2076 = vmatpush1.msra.mxu0 0.0
        %2077 = vmatprep.subr.mxu0 0.0
        %2078 = vmatpush1.msra.mxu0 0.0
        %2079 = vmatprep.mubr.f32.mxu0 0.0
        %v2080 = vand.u32 %v1737, 4294901760
        %v2081 = vsub.f32 %v1737, %v2080
        %2082 = vmatmul.mubr.f32.gmra.mrb[0].mxu0 %v2081
        %v2083 = vpop.f32.mrb[0].mxu0
        %v2084 = vadd.f32 %v1979, %v2083
        %v2085 = vpop.f32.mrb[0].mxu0
        %v2086 = vadd.f32 %v1981, %v2085
        %2087 = vdwg.mxu0
        %v2088 = vand.u32 %v284, 4294901760
        %2089 = vmatprep.subr.mxu0 %v2088
        %v2090 = vand.u32 %v283, 4294901760
        %2091 = vmatpush1.msra.mxu0 %v2090
        %v2092 = vand.u32 %v286, 4294901760
        %2093 = vmatprep.subr.mxu0 %v2092
        %v2094 = vand.u32 %v285, 4294901760
        %2095 = vmatpush1.msra.mxu0 %v2094
        %v2096 = vand.u32 %v288, 4294901760
        %2097 = vmatprep.subr.mxu0 %v2096
        %v2098 = vand.u32 %v287, 4294901760
        %2099 = vmatpush1.msra.mxu0 %v2098
        %v2100 = vand.u32 %v290, 4294901760
        %2101 = vmatprep.subr.mxu0 %v2100
        %v2102 = vand.u32 %v289, 4294901760
        %2103 = vmatpush1.msra.mxu0 %v2102
        %v2104 = vand.u32 %v292, 4294901760
        %2105 = vmatprep.subr.mxu0 %v2104
        %v2106 = vand.u32 %v291, 4294901760
        %2107 = vmatpush1.msra.mxu0 %v2106
        %v2108 = vand.u32 %v294, 4294901760
        %2109 = vmatprep.subr.mxu0 %v2108
        %v2110 = vand.u32 %v293, 4294901760
        %2111 = vmatpush1.msra.mxu0 %v2110
        %v2112 = vand.u32 %v296, 4294901760
        %2113 = vmatprep.subr.mxu0 %v2112
        %v2114 = vand.u32 %v295, 4294901760
        %2115 = vmatpush1.msra.mxu0 %v2114
        %v2116 = vand.u32 %v298, 4294901760
        %2117 = vmatprep.subr.mxu0 %v2116
        %v2118 = vand.u32 %v297, 4294901760
        %2119 = vmatpush1.msra.mxu0 %v2118
        %2120 = vmatprep.subr.mxu0 0.0
        %2121 = vmatpush1.msra.mxu0 0.0
        %2122 = vmatprep.subr.mxu0 0.0
        %2123 = vmatpush1.msra.mxu0 0.0
        %2124 = vmatprep.subr.mxu0 0.0
        %2125 = vmatpush1.msra.mxu0 0.0
        %2126 = vmatprep.subr.mxu0 0.0
        %2127 = vmatpush1.msra.mxu0 0.0
        %2128 = vmatprep.subr.mxu0 0.0
        %2129 = vmatpush1.msra.mxu0 0.0
        %2130 = vmatprep.subr.mxu0 0.0
        %2131 = vmatpush1.msra.mxu0 0.0
        %2132 = vmatprep.subr.mxu0 0.0
        %2133 = vmatpush1.msra.mxu0 0.0
        %2134 = vmatprep.subr.mxu0 0.0
        %2135 = vmatpush1.msra.mxu0 0.0
        %2136 = vmatprep.subr.mxu0 0.0
        %2137 = vmatpush1.msra.mxu0 0.0
        %2138 = vmatprep.subr.mxu0 0.0
        %2139 = vmatpush1.msra.mxu0 0.0
        %2140 = vmatprep.subr.mxu0 0.0
        %2141 = vmatpush1.msra.mxu0 0.0
        %2142 = vmatprep.subr.mxu0 0.0
        %2143 = vmatpush1.msra.mxu0 0.0
        %2144 = vmatprep.subr.mxu0 0.0
        %2145 = vmatpush1.msra.mxu0 0.0
        %2146 = vmatprep.subr.mxu0 0.0
        %2147 = vmatpush1.msra.mxu0 0.0
        %2148 = vmatprep.subr.mxu0 0.0
        %2149 = vmatpush1.msra.mxu0 0.0
        %2150 = vmatprep.subr.mxu0 0.0
        %2151 = vmatpush1.msra.mxu0 0.0
        %2152 = vmatprep.subr.mxu0 0.0
        %2153 = vmatpush1.msra.mxu0 0.0
        %2154 = vmatprep.subr.mxu0 0.0
        %2155 = vmatpush1.msra.mxu0 0.0
        %2156 = vmatprep.subr.mxu0 0.0
        %2157 = vmatpush1.msra.mxu0 0.0
        %2158 = vmatprep.subr.mxu0 0.0
        %2159 = vmatpush1.msra.mxu0 0.0
        %2160 = vmatprep.subr.mxu0 0.0
        %2161 = vmatpush1.msra.mxu0 0.0
        %2162 = vmatprep.subr.mxu0 0.0
        %2163 = vmatpush1.msra.mxu0 0.0
        %2164 = vmatprep.subr.mxu0 0.0
        %2165 = vmatpush1.msra.mxu0 0.0
        %2166 = vmatprep.subr.mxu0 0.0
        %2167 = vmatpush1.msra.mxu0 0.0
        %2168 = vmatprep.mubr.f32.mxu0 0.0
        %v2169 = vand.u32 %v1737, 4294901760
        %v2170 = vsub.f32 %v1737, %v2169
        %v2171 = vand.u32 %v2170, 4294901760
        %2172 = vmatmul.mubr.f32.gmra.mrb[0].mxu0 %v2171
        %v2173 = vpop.f32.mrb[0].mxu0
        %v2174 = vadd.f32 %v2084, %v2173
        %v2175 = vpop.f32.mrb[0].mxu0
        %v2176 = vadd.f32 %v2086, %v2175
        %2177 = vdwg.mxu0
        %v2178 = vand.u32 %v284, 4294901760
        %v2179 = vsub.f32 %v284, %v2178
        %v2180 = vand.u32 %v2179, 4294901760
        %2181 = vmatprep.subr.mxu0 %v2180
        %v2182 = vand.u32 %v283, 4294901760
        %v2183 = vsub.f32 %v283, %v2182
        %v2184 = vand.u32 %v2183, 4294901760
        %2185 = vmatpush1.msra.mxu0 %v2184
        %v2186 = vand.u32 %v286, 4294901760
        %v2187 = vsub.f32 %v286, %v2186
        %v2188 = vand.u32 %v2187, 4294901760
        %2189 = vmatprep.subr.mxu0 %v2188
        %v2190 = vand.u32 %v285, 4294901760
        %v2191 = vsub.f32 %v285, %v2190
        %v2192 = vand.u32 %v2191, 4294901760
        %2193 = vmatpush1.msra.mxu0 %v2192
        %v2194 = vand.u32 %v288, 4294901760
        %v2195 = vsub.f32 %v288, %v2194
        %v2196 = vand.u32 %v2195, 4294901760
        %2197 = vmatprep.subr.mxu0 %v2196
        %v2198 = vand.u32 %v287, 4294901760
        %v2199 = vsub.f32 %v287, %v2198
        %v2200 = vand.u32 %v2199, 4294901760
        %2201 = vmatpush1.msra.mxu0 %v2200
        %v2202 = vand.u32 %v290, 4294901760
        %v2203 = vsub.f32 %v290, %v2202
        %v2204 = vand.u32 %v2203, 4294901760
        %2205 = vmatprep.subr.mxu0 %v2204
        %v2206 = vand.u32 %v289, 4294901760
        %v2207 = vsub.f32 %v289, %v2206
        %v2208 = vand.u32 %v2207, 4294901760
        %2209 = vmatpush1.msra.mxu0 %v2208
        %v2210 = vand.u32 %v292, 4294901760
        %v2211 = vsub.f32 %v292, %v2210
        %v2212 = vand.u32 %v2211, 4294901760
        %2213 = vmatprep.subr.mxu0 %v2212
        %v2214 = vand.u32 %v291, 4294901760
        %v2215 = vsub.f32 %v291, %v2214
        %v2216 = vand.u32 %v2215, 4294901760
        %2217 = vmatpush1.msra.mxu0 %v2216
        %v2218 = vand.u32 %v294, 4294901760
        %v2219 = vsub.f32 %v294, %v2218
        %v2220 = vand.u32 %v2219, 4294901760
        %2221 = vmatprep.subr.mxu0 %v2220
        %v2222 = vand.u32 %v293, 4294901760
        %v2223 = vsub.f32 %v293, %v2222
        %v2224 = vand.u32 %v2223, 4294901760
        %2225 = vmatpush1.msra.mxu0 %v2224
        %v2226 = vand.u32 %v296, 4294901760
        %v2227 = vsub.f32 %v296, %v2226
        %v2228 = vand.u32 %v2227, 4294901760
        %2229 = vmatprep.subr.mxu0 %v2228
        %v2230 = vand.u32 %v295, 4294901760
        %v2231 = vsub.f32 %v295, %v2230
        %v2232 = vand.u32 %v2231, 4294901760
        %2233 = vmatpush1.msra.mxu0 %v2232
        %v2234 = vand.u32 %v298, 4294901760
        %v2235 = vsub.f32 %v298, %v2234
        %v2236 = vand.u32 %v2235, 4294901760
        %2237 = vmatprep.subr.mxu0 %v2236
        %v2238 = vand.u32 %v297, 4294901760
        %v2239 = vsub.f32 %v297, %v2238
        %v2240 = vand.u32 %v2239, 4294901760
        %2241 = vmatpush1.msra.mxu0 %v2240
        %2242 = vmatprep.subr.mxu0 0.0
        %2243 = vmatpush1.msra.mxu0 0.0
        %2244 = vmatprep.subr.mxu0 0.0
        %2245 = vmatpush1.msra.mxu0 0.0
        %2246 = vmatprep.subr.mxu0 0.0
        %2247 = vmatpush1.msra.mxu0 0.0
        %2248 = vmatprep.subr.mxu0 0.0
        %2249 = vmatpush1.msra.mxu0 0.0
        %2250 = vmatprep.subr.mxu0 0.0
        %2251 = vmatpush1.msra.mxu0 0.0
        %2252 = vmatprep.subr.mxu0 0.0
        %2253 = vmatpush1.msra.mxu0 0.0
        %2254 = vmatprep.subr.mxu0 0.0
        %2255 = vmatpush1.msra.mxu0 0.0
        %2256 = vmatprep.subr.mxu0 0.0
        %2257 = vmatpush1.msra.mxu0 0.0
        %2258 = vmatprep.subr.mxu0 0.0
        %2259 = vmatpush1.msra.mxu0 0.0
        %2260 = vmatprep.subr.mxu0 0.0
        %2261 = vmatpush1.msra.mxu0 0.0
        %2262 = vmatprep.subr.mxu0 0.0
        %2263 = vmatpush1.msra.mxu0 0.0
        %2264 = vmatprep.subr.mxu0 0.0
        %2265 = vmatpush1.msra.mxu0 0.0
        %2266 = vmatprep.subr.mxu0 0.0
        %2267 = vmatpush1.msra.mxu0 0.0
        %2268 = vmatprep.subr.mxu0 0.0
        %2269 = vmatpush1.msra.mxu0 0.0
        %2270 = vmatprep.subr.mxu0 0.0
        %2271 = vmatpush1.msra.mxu0 0.0
        %2272 = vmatprep.subr.mxu0 0.0
        %2273 = vmatpush1.msra.mxu0 0.0
        %2274 = vmatprep.subr.mxu0 0.0
        %2275 = vmatpush1.msra.mxu0 0.0
        %2276 = vmatprep.subr.mxu0 0.0
        %2277 = vmatpush1.msra.mxu0 0.0
        %2278 = vmatprep.subr.mxu0 0.0
        %2279 = vmatpush1.msra.mxu0 0.0
        %2280 = vmatprep.subr.mxu0 0.0
        %2281 = vmatpush1.msra.mxu0 0.0
        %2282 = vmatprep.subr.mxu0 0.0
        %2283 = vmatpush1.msra.mxu0 0.0
        %2284 = vmatprep.subr.mxu0 0.0
        %2285 = vmatpush1.msra.mxu0 0.0
        %2286 = vmatprep.subr.mxu0 0.0
        %2287 = vmatpush1.msra.mxu0 0.0
        %2288 = vmatprep.subr.mxu0 0.0
        %2289 = vmatpush1.msra.mxu0 0.0
        %2290 = vmatprep.mubr.f32.mxu0 0.0
        %v2291 = vand.u32 %v1737, 4294901760
        %2292 = vmatmul.mubr.f32.gmra.mrb[0].mxu0 %v2291
        %v2293 = vpop.f32.mrb[0].mxu0
        %v2294 = vadd.f32 %v2174, %v2293
        %v2295 = vpop.f32.mrb[0].mxu0
        %v2296 = vadd.f32 %v2176, %v2295
        %2297 = vdwg.mxu0
        %v2298 = vand.u32 %v284, 4294901760
        %2299 = vmatprep.subr.mxu0 %v2298
        %v2300 = vand.u32 %v283, 4294901760
        %2301 = vmatpush1.msra.mxu0 %v2300
        %v2302 = vand.u32 %v286, 4294901760
        %2303 = vmatprep.subr.mxu0 %v2302
        %v2304 = vand.u32 %v285, 4294901760
        %2305 = vmatpush1.msra.mxu0 %v2304
        %v2306 = vand.u32 %v288, 4294901760
        %2307 = vmatprep.subr.mxu0 %v2306
        %v2308 = vand.u32 %v287, 4294901760
        %2309 = vmatpush1.msra.mxu0 %v2308
        %v2310 = vand.u32 %v290, 4294901760
        %2311 = vmatprep.subr.mxu0 %v2310
        %v2312 = vand.u32 %v289, 4294901760
        %2313 = vmatpush1.msra.mxu0 %v2312
        %v2314 = vand.u32 %v292, 4294901760
        %2315 = vmatprep.subr.mxu0 %v2314
        %v2316 = vand.u32 %v291, 4294901760
        %2317 = vmatpush1.msra.mxu0 %v2316
        %v2318 = vand.u32 %v294, 4294901760
        %2319 = vmatprep.subr.mxu0 %v2318
        %v2320 = vand.u32 %v293, 4294901760
        %2321 = vmatpush1.msra.mxu0 %v2320
        %v2322 = vand.u32 %v296, 4294901760
        %2323 = vmatprep.subr.mxu0 %v2322
        %v2324 = vand.u32 %v295, 4294901760
        %2325 = vmatpush1.msra.mxu0 %v2324
        %v2326 = vand.u32 %v298, 4294901760
        %2327 = vmatprep.subr.mxu0 %v2326
        %v2328 = vand.u32 %v297, 4294901760
        %2329 = vmatpush1.msra.mxu0 %v2328
        %2330 = vmatprep.subr.mxu0 0.0
        %2331 = vmatpush1.msra.mxu0 0.0
        %2332 = vmatprep.subr.mxu0 0.0
        %2333 = vmatpush1.msra.mxu0 0.0
        %2334 = vmatprep.subr.mxu0 0.0
        %2335 = vmatpush1.msra.mxu0 0.0
        %2336 = vmatprep.subr.mxu0 0.0
        %2337 = vmatpush1.msra.mxu0 0.0
        %2338 = vmatprep.subr.mxu0 0.0
        %2339 = vmatpush1.msra.mxu0 0.0
        %2340 = vmatprep.subr.mxu0 0.0
        %2341 = vmatpush1.msra.mxu0 0.0
        %2342 = vmatprep.subr.mxu0 0.0
        %2343 = vmatpush1.msra.mxu0 0.0
        %2344 = vmatprep.subr.mxu0 0.0
        %2345 = vmatpush1.msra.mxu0 0.0
        %2346 = vmatprep.subr.mxu0 0.0
        %2347 = vmatpush1.msra.mxu0 0.0
        %2348 = vmatprep.subr.mxu0 0.0
        %2349 = vmatpush1.msra.mxu0 0.0
        %2350 = vmatprep.subr.mxu0 0.0
        %2351 = vmatpush1.msra.mxu0 0.0
        %2352 = vmatprep.subr.mxu0 0.0
        %2353 = vmatpush1.msra.mxu0 0.0
        %2354 = vmatprep.subr.mxu0 0.0
        %2355 = vmatpush1.msra.mxu0 0.0
        %2356 = vmatprep.subr.mxu0 0.0
        %2357 = vmatpush1.msra.mxu0 0.0
        %2358 = vmatprep.subr.mxu0 0.0
        %2359 = vmatpush1.msra.mxu0 0.0
        %2360 = vmatprep.subr.mxu0 0.0
        %2361 = vmatpush1.msra.mxu0 0.0
        %2362 = vmatprep.subr.mxu0 0.0
        %2363 = vmatpush1.msra.mxu0 0.0
        %2364 = vmatprep.subr.mxu0 0.0
        %2365 = vmatpush1.msra.mxu0 0.0
        %2366 = vmatprep.subr.mxu0 0.0
        %2367 = vmatpush1.msra.mxu0 0.0
        %2368 = vmatprep.subr.mxu0 0.0
        %2369 = vmatpush1.msra.mxu0 0.0
        %2370 = vmatprep.subr.mxu0 0.0
        %2371 = vmatpush1.msra.mxu0 0.0
        %2372 = vmatprep.subr.mxu0 0.0
        %2373 = vmatpush1.msra.mxu0 0.0
        %2374 = vmatprep.subr.mxu0 0.0
        %2375 = vmatpush1.msra.mxu0 0.0
        %2376 = vmatprep.subr.mxu0 0.0
        %2377 = vmatpush1.msra.mxu0 0.0
        %2378 = vmatprep.mubr.f32.mxu0 0.0
        %v2379 = vand.u32 %v1737, 4294901760
        %2380 = vmatmul.mubr.f32.gmra.mrb[0].mxu0 %v2379
        %v2381 = vpop.f32.mrb[0].mxu0
        %v2382 = vadd.f32 %v2294, %v2381
        %v2383 = vpop.f32.mrb[0].mxu0
        %v2384 = vadd.f32 %v2296, %v2383
        %2385 = vdwg.mxu0
        %s2386 = scalar_lea.vmem %s259, 8
        %v2387 = vld [vmem:[%s2386] sm:$0xf]
        %v2388 = vadd.f32 %v2387, %v2382
        %v2389 = vxor.u32 %v2388, 2147483648
        %v2390 = vmul.f32 %v2389, 1.442695
        %v2391 = vpow.pop %v2390
        %v2392 = vadd.f32 %v2391, 1.0
        %v2393 = vrcp.pop %v2392
        %v2394 = vmul.f32 1.0, %v2393
        %v2395 = vadd.f32 %v2384, %v968
        %v2396 = vmul.f32 %v2394, %v2395
        %v2398 = vrot.slane %v2387, 2
        %v2400 = vadd.f32 %v2398, %v2396
        %v2401 = vtanh.pop %v2400
        %v2402 = vsub.f32 1.0, %v2394
        %2404 = vrot.lane.b32.xlu0 %v2401, 64
        %v2405 = vpop.permute.xlu0 %2404
        %v2407 = vmul.f32 %v2402, %v2405
        %v2409 = vunpack.c.l.s4 1983009808
        %v2410 = vunpack.c.0.s8 %v2409
        %v2411 = vlaneseq
        %v2412 = vshrl.u32 %v2411, 7
        %v2413 = vsub.s32 %v2410, %v2412
        %v2414 = vrot.slane %v1733, %v2413
        %2415 = vrot.lane.b32.xlu0 %v2414, 64
        %v2416 = vpop.permute.xlu0 %2415
        %v2418 = vmul.f32 %v2394, %v2416
        %v2419 = vadd.f32 %v2407, %v2418
        %v2420 = vstv %s1734
        %v2421 = vstv %s1735
        %v2422 = vsel %vm301, %v2420, %v2421
        %vm2423 = vcmp.lt.s32.totalorder %v2422, %v1000
        %v2426 = vunpack.c.l.s4 1983009808
        %v2427 = vunpack.c.0.s8 %v2426
        %v2428 = vlaneseq
        %v2429 = vshrl.u32 %v2428, 7
        %v2430 = vsub.s32 %v2427, %v2429
        %v2431 = vrot.slane %v2419, %v2430
        %2432 = vrot.lane.b32.xlu0 %v2431, 64
        %v2433 = vpop.permute.xlu0 %2432
        %v2435 = vsel %vm2423, %v2433, 0.0
        %s2436 = scalar_lea.vmem %s265, 4
        %2437 = vst.msk [vmem:[%s2436] sm:$0x3] %vm1014, %v2435
        %2439 = vrot.lane.b32.xlu0 %v2435, 96
        %v2440 = vpop.permute.xlu0 %2439
        %s2442 = scalar_lea.vmem %s272, 2
        %2443 = vst.msk [vmem:[%s2442] sm:$0x3] %vm1014, %v2440
        %v2444 = vsel %vm2423, %v2433, %v1733
        %s2445 = sadd.s32 %s303, 3
        %s2446 = ssub.s32 8, %s303
        %v2448 = vsel %vm305, %v2444, 0
        %v2450 = vand.u32 %v284, 4294901760
        %2451 = vmatprep.subr.mxu0 %v2450
        %v2452 = vand.u32 %v283, 4294901760
        %2453 = vmatpush1.msra.mxu0 %v2452
        %v2454 = vand.u32 %v286, 4294901760
        %2455 = vmatprep.subr.mxu0 %v2454
        %v2456 = vand.u32 %v285, 4294901760
        %2457 = vmatpush1.msra.mxu0 %v2456
        %v2458 = vand.u32 %v288, 4294901760
        %2459 = vmatprep.subr.mxu0 %v2458
        %v2460 = vand.u32 %v287, 4294901760
        %2461 = vmatpush1.msra.mxu0 %v2460
        %v2462 = vand.u32 %v290, 4294901760
        %2463 = vmatprep.subr.mxu0 %v2462
        %v2464 = vand.u32 %v289, 4294901760
        %2465 = vmatpush1.msra.mxu0 %v2464
        %v2466 = vand.u32 %v292, 4294901760
        %2467 = vmatprep.subr.mxu0 %v2466
        %v2468 = vand.u32 %v291, 4294901760
        %2469 = vmatpush1.msra.mxu0 %v2468
        %v2470 = vand.u32 %v294, 4294901760
        %2471 = vmatprep.subr.mxu0 %v2470
        %v2472 = vand.u32 %v293, 4294901760
        %2473 = vmatpush1.msra.mxu0 %v2472
        %v2474 = vand.u32 %v296, 4294901760
        %2475 = vmatprep.subr.mxu0 %v2474
        %v2476 = vand.u32 %v295, 4294901760
        %2477 = vmatpush1.msra.mxu0 %v2476
        %v2478 = vand.u32 %v298, 4294901760
        %2479 = vmatprep.subr.mxu0 %v2478
        %v2480 = vand.u32 %v297, 4294901760
        %2481 = vmatpush1.msra.mxu0 %v2480
        %2482 = vmatprep.subr.mxu0 0.0
        %2483 = vmatpush1.msra.mxu0 0.0
        %2484 = vmatprep.subr.mxu0 0.0
        %2485 = vmatpush1.msra.mxu0 0.0
        %2486 = vmatprep.subr.mxu0 0.0
        %2487 = vmatpush1.msra.mxu0 0.0
        %2488 = vmatprep.subr.mxu0 0.0
        %2489 = vmatpush1.msra.mxu0 0.0
        %2490 = vmatprep.subr.mxu0 0.0
        %2491 = vmatpush1.msra.mxu0 0.0
        %2492 = vmatprep.subr.mxu0 0.0
        %2493 = vmatpush1.msra.mxu0 0.0
        %2494 = vmatprep.subr.mxu0 0.0
        %2495 = vmatpush1.msra.mxu0 0.0
        %2496 = vmatprep.subr.mxu0 0.0
        %2497 = vmatpush1.msra.mxu0 0.0
        %2498 = vmatprep.subr.mxu0 0.0
        %2499 = vmatpush1.msra.mxu0 0.0
        %2500 = vmatprep.subr.mxu0 0.0
        %2501 = vmatpush1.msra.mxu0 0.0
        %2502 = vmatprep.subr.mxu0 0.0
        %2503 = vmatpush1.msra.mxu0 0.0
        %2504 = vmatprep.subr.mxu0 0.0
        %2505 = vmatpush1.msra.mxu0 0.0
        %2506 = vmatprep.subr.mxu0 0.0
        %2507 = vmatpush1.msra.mxu0 0.0
        %2508 = vmatprep.subr.mxu0 0.0
        %2509 = vmatpush1.msra.mxu0 0.0
        %2510 = vmatprep.subr.mxu0 0.0
        %2511 = vmatpush1.msra.mxu0 0.0
        %2512 = vmatprep.subr.mxu0 0.0
        %2513 = vmatpush1.msra.mxu0 0.0
        %2514 = vmatprep.subr.mxu0 0.0
        %2515 = vmatpush1.msra.mxu0 0.0
        %2516 = vmatprep.subr.mxu0 0.0
        %2517 = vmatpush1.msra.mxu0 0.0
        %2518 = vmatprep.subr.mxu0 0.0
        %2519 = vmatpush1.msra.mxu0 0.0
        %2520 = vmatprep.subr.mxu0 0.0
        %2521 = vmatpush1.msra.mxu0 0.0
        %2522 = vmatprep.subr.mxu0 0.0
        %2523 = vmatpush1.msra.mxu0 0.0
        %2524 = vmatprep.subr.mxu0 0.0
        %2525 = vmatpush1.msra.mxu0 0.0
        %2526 = vmatprep.subr.mxu0 0.0
        %2527 = vmatpush1.msra.mxu0 0.0
        %2528 = vmatprep.subr.mxu0 0.0
        %2529 = vmatpush1.msra.mxu0 0.0
        %2530 = vmatprep.mubr.f32.mxu0 0.0
        %v2531 = vand.u32 %v2448, 4294901760
        %v2532 = vsub.f32 %v2448, %v2531
        %v2533 = vand.u32 %v2532, 4294901760
        %v2534 = vsub.f32 %v2532, %v2533
        %v2535 = vand.u32 %v2534, 4294901760
        %2536 = vmatmul.mubr.f32.gmra.mrb[0].mxu0 %v2535
        %v2537 = vpop.f32.mrb[0].mxu0
        %v2538 = vadd.f32 0.0, %v2537
        %v2539 = vpop.f32.mrb[0].mxu0
        %v2540 = vadd.f32 0.0, %v2539
        %2541 = vdwg.mxu0
        %v2542 = vand.u32 %v284, 4294901760
        %v2543 = vsub.f32 %v284, %v2542
        %v2544 = vand.u32 %v2543, 4294901760
        %v2545 = vsub.f32 %v2543, %v2544
        %v2546 = vand.u32 %v2545, 4294901760
        %2547 = vmatprep.subr.mxu0 %v2546
        %v2548 = vand.u32 %v283, 4294901760
        %v2549 = vsub.f32 %v283, %v2548
        %v2550 = vand.u32 %v2549, 4294901760
        %v2551 = vsub.f32 %v2549, %v2550
        %v2552 = vand.u32 %v2551, 4294901760
        %2553 = vmatpush1.msra.mxu0 %v2552
        %v2554 = vand.u32 %v286, 4294901760
        %v2555 = vsub.f32 %v286, %v2554
        %v2556 = vand.u32 %v2555, 4294901760
        %v2557 = vsub.f32 %v2555, %v2556
        %v2558 = vand.u32 %v2557, 4294901760
        %2559 = vmatprep.subr.mxu0 %v2558
        %v2560 = vand.u32 %v285, 4294901760
        %v2561 = vsub.f32 %v285, %v2560
        %v2562 = vand.u32 %v2561, 4294901760
        %v2563 = vsub.f32 %v2561, %v2562
        %v2564 = vand.u32 %v2563, 4294901760
        %2565 = vmatpush1.msra.mxu0 %v2564
        %v2566 = vand.u32 %v288, 4294901760
        %v2567 = vsub.f32 %v288, %v2566
        %v2568 = vand.u32 %v2567, 4294901760
        %v2569 = vsub.f32 %v2567, %v2568
        %v2570 = vand.u32 %v2569, 4294901760
        %2571 = vmatprep.subr.mxu0 %v2570
        %v2572 = vand.u32 %v287, 4294901760
        %v2573 = vsub.f32 %v287, %v2572
        %v2574 = vand.u32 %v2573, 4294901760
        %v2575 = vsub.f32 %v2573, %v2574
        %v2576 = vand.u32 %v2575, 4294901760
        %2577 = vmatpush1.msra.mxu0 %v2576
        %v2578 = vand.u32 %v290, 4294901760
        %v2579 = vsub.f32 %v290, %v2578
        %v2580 = vand.u32 %v2579, 4294901760
        %v2581 = vsub.f32 %v2579, %v2580
        %v2582 = vand.u32 %v2581, 4294901760
        %2583 = vmatprep.subr.mxu0 %v2582
        %v2584 = vand.u32 %v289, 4294901760
        %v2585 = vsub.f32 %v289, %v2584
        %v2586 = vand.u32 %v2585, 4294901760
        %v2587 = vsub.f32 %v2585, %v2586
        %v2588 = vand.u32 %v2587, 4294901760
        %2589 = vmatpush1.msra.mxu0 %v2588
        %v2590 = vand.u32 %v292, 4294901760
        %v2591 = vsub.f32 %v292, %v2590
        %v2592 = vand.u32 %v2591, 4294901760
        %v2593 = vsub.f32 %v2591, %v2592
        %v2594 = vand.u32 %v2593, 4294901760
        %2595 = vmatprep.subr.mxu0 %v2594
        %v2596 = vand.u32 %v291, 4294901760
        %v2597 = vsub.f32 %v291, %v2596
        %v2598 = vand.u32 %v2597, 4294901760
        %v2599 = vsub.f32 %v2597, %v2598
        %v2600 = vand.u32 %v2599, 4294901760
        %2601 = vmatpush1.msra.mxu0 %v2600
        %v2602 = vand.u32 %v294, 4294901760
        %v2603 = vsub.f32 %v294, %v2602
        %v2604 = vand.u32 %v2603, 4294901760
        %v2605 = vsub.f32 %v2603, %v2604
        %v2606 = vand.u32 %v2605, 4294901760
        %2607 = vmatprep.subr.mxu0 %v2606
        %v2608 = vand.u32 %v293, 4294901760
        %v2609 = vsub.f32 %v293, %v2608
        %v2610 = vand.u32 %v2609, 4294901760
        %v2611 = vsub.f32 %v2609, %v2610
        %v2612 = vand.u32 %v2611, 4294901760
        %2613 = vmatpush1.msra.mxu0 %v2612
        %v2614 = vand.u32 %v296, 4294901760
        %v2615 = vsub.f32 %v296, %v2614
        %v2616 = vand.u32 %v2615, 4294901760
        %v2617 = vsub.f32 %v2615, %v2616
        %v2618 = vand.u32 %v2617, 4294901760
        %2619 = vmatprep.subr.mxu0 %v2618
        %v2620 = vand.u32 %v295, 4294901760
        %v2621 = vsub.f32 %v295, %v2620
        %v2622 = vand.u32 %v2621, 4294901760
        %v2623 = vsub.f32 %v2621, %v2622
        %v2624 = vand.u32 %v2623, 4294901760
        %2625 = vmatpush1.msra.mxu0 %v2624
        %v2626 = vand.u32 %v298, 4294901760
        %v2627 = vsub.f32 %v298, %v2626
        %v2628 = vand.u32 %v2627, 4294901760
        %v2629 = vsub.f32 %v2627, %v2628
        %v2630 = vand.u32 %v2629, 4294901760
        %2631 = vmatprep.subr.mxu0 %v2630
        %v2632 = vand.u32 %v297, 4294901760
        %v2633 = vsub.f32 %v297, %v2632
        %v2634 = vand.u32 %v2633, 4294901760
        %v2635 = vsub.f32 %v2633, %v2634
        %v2636 = vand.u32 %v2635, 4294901760
        %2637 = vmatpush1.msra.mxu0 %v2636
        %2638 = vmatprep.subr.mxu0 0.0
        %2639 = vmatpush1.msra.mxu0 0.0
        %2640 = vmatprep.subr.mxu0 0.0
        %2641 = vmatpush1.msra.mxu0 0.0
        %2642 = vmatprep.subr.mxu0 0.0
        %2643 = vmatpush1.msra.mxu0 0.0
        %2644 = vmatprep.subr.mxu0 0.0
        %2645 = vmatpush1.msra.mxu0 0.0
        %2646 = vmatprep.subr.mxu0 0.0
        %2647 = vmatpush1.msra.mxu0 0.0
        %2648 = vmatprep.subr.mxu0 0.0
        %2649 = vmatpush1.msra.mxu0 0.0
        %2650 = vmatprep.subr.mxu0 0.0
        %2651 = vmatpush1.msra.mxu0 0.0
        %2652 = vmatprep.subr.mxu0 0.0
        %2653 = vmatpush1.msra.mxu0 0.0
        %2654 = vmatprep.subr.mxu0 0.0
        %2655 = vmatpush1.msra.mxu0 0.0
        %2656 = vmatprep.subr.mxu0 0.0
        %2657 = vmatpush1.msra.mxu0 0.0
        %2658 = vmatprep.subr.mxu0 0.0
        %2659 = vmatpush1.msra.mxu0 0.0
        %2660 = vmatprep.subr.mxu0 0.0
        %2661 = vmatpush1.msra.mxu0 0.0
        %2662 = vmatprep.subr.mxu0 0.0
        %2663 = vmatpush1.msra.mxu0 0.0
        %2664 = vmatprep.subr.mxu0 0.0
        %2665 = vmatpush1.msra.mxu0 0.0
        %2666 = vmatprep.subr.mxu0 0.0
        %2667 = vmatpush1.msra.mxu0 0.0
        %2668 = vmatprep.subr.mxu0 0.0
        %2669 = vmatpush1.msra.mxu0 0.0
        %2670 = vmatprep.subr.mxu0 0.0
        %2671 = vmatpush1.msra.mxu0 0.0
        %2672 = vmatprep.subr.mxu0 0.0
        %2673 = vmatpush1.msra.mxu0 0.0
        %2674 = vmatprep.subr.mxu0 0.0
        %2675 = vmatpush1.msra.mxu0 0.0
        %2676 = vmatprep.subr.mxu0 0.0
        %2677 = vmatpush1.msra.mxu0 0.0
        %2678 = vmatprep.subr.mxu0 0.0
        %2679 = vmatpush1.msra.mxu0 0.0
        %2680 = vmatprep.subr.mxu0 0.0
        %2681 = vmatpush1.msra.mxu0 0.0
        %2682 = vmatprep.subr.mxu0 0.0
        %2683 = vmatpush1.msra.mxu0 0.0
        %2684 = vmatprep.subr.mxu0 0.0
        %2685 = vmatpush1.msra.mxu0 0.0
        %2686 = vmatprep.mubr.f32.mxu0 0.0
        %v2687 = vand.u32 %v2448, 4294901760
        %2688 = vmatmul.mubr.f32.gmra.mrb[0].mxu0 %v2687
        %v2689 = vpop.f32.mrb[0].mxu0
        %v2690 = vadd.f32 %v2538, %v2689
        %v2691 = vpop.f32.mrb[0].mxu0
        %v2692 = vadd.f32 %v2540, %v2691
        %2693 = vdwg.mxu0
        %v2694 = vand.u32 %v284, 4294901760
        %v2695 = vsub.f32 %v284, %v2694
        %2696 = vmatprep.subr.mxu0 %v2695
        %v2697 = vand.u32 %v283, 4294901760
        %v2698 = vsub.f32 %v283, %v2697
        %2699 = vmatpush1.msra.mxu0 %v2698
        %v2700 = vand.u32 %v286, 4294901760
        %v2701 = vsub.f32 %v286, %v2700
        %2702 = vmatprep.subr.mxu0 %v2701
        %v2703 = vand.u32 %v285, 4294901760
        %v2704 = vsub.f32 %v285, %v2703
        %2705 = vmatpush1.msra.mxu0 %v2704
        %v2706 = vand.u32 %v288, 4294901760
        %v2707 = vsub.f32 %v288, %v2706
        %2708 = vmatprep.subr.mxu0 %v2707
        %v2709 = vand.u32 %v287, 4294901760
        %v2710 = vsub.f32 %v287, %v2709
        %2711 = vmatpush1.msra.mxu0 %v2710
        %v2712 = vand.u32 %v290, 4294901760
        %v2713 = vsub.f32 %v290, %v2712
        %2714 = vmatprep.subr.mxu0 %v2713
        %v2715 = vand.u32 %v289, 4294901760
        %v2716 = vsub.f32 %v289, %v2715
        %2717 = vmatpush1.msra.mxu0 %v2716
        %v2718 = vand.u32 %v292, 4294901760
        %v2719 = vsub.f32 %v292, %v2718
        %2720 = vmatprep.subr.mxu0 %v2719
        %v2721 = vand.u32 %v291, 4294901760
        %v2722 = vsub.f32 %v291, %v2721
        %2723 = vmatpush1.msra.mxu0 %v2722
        %v2724 = vand.u32 %v294, 4294901760
        %v2725 = vsub.f32 %v294, %v2724
        %2726 = vmatprep.subr.mxu0 %v2725
        %v2727 = vand.u32 %v293, 4294901760
        %v2728 = vsub.f32 %v293, %v2727
        %2729 = vmatpush1.msra.mxu0 %v2728
        %v2730 = vand.u32 %v296, 4294901760
        %v2731 = vsub.f32 %v296, %v2730
        %2732 = vmatprep.subr.mxu0 %v2731
        %v2733 = vand.u32 %v295, 4294901760
        %v2734 = vsub.f32 %v295, %v2733
        %2735 = vmatpush1.msra.mxu0 %v2734
        %v2736 = vand.u32 %v298, 4294901760
        %v2737 = vsub.f32 %v298, %v2736
        %2738 = vmatprep.subr.mxu0 %v2737
        %v2739 = vand.u32 %v297, 4294901760
        %v2740 = vsub.f32 %v297, %v2739
        %2741 = vmatpush1.msra.mxu0 %v2740
        %2742 = vmatprep.subr.mxu0 0.0
        %2743 = vmatpush1.msra.mxu0 0.0
        %2744 = vmatprep.subr.mxu0 0.0
        %2745 = vmatpush1.msra.mxu0 0.0
        %2746 = vmatprep.subr.mxu0 0.0
        %2747 = vmatpush1.msra.mxu0 0.0
        %2748 = vmatprep.subr.mxu0 0.0
        %2749 = vmatpush1.msra.mxu0 0.0
        %2750 = vmatprep.subr.mxu0 0.0
        %2751 = vmatpush1.msra.mxu0 0.0
        %2752 = vmatprep.subr.mxu0 0.0
        %2753 = vmatpush1.msra.mxu0 0.0
        %2754 = vmatprep.subr.mxu0 0.0
        %2755 = vmatpush1.msra.mxu0 0.0
        %2756 = vmatprep.subr.mxu0 0.0
        %2757 = vmatpush1.msra.mxu0 0.0
        %2758 = vmatprep.subr.mxu0 0.0
        %2759 = vmatpush1.msra.mxu0 0.0
        %2760 = vmatprep.subr.mxu0 0.0
        %2761 = vmatpush1.msra.mxu0 0.0
        %2762 = vmatprep.subr.mxu0 0.0
        %2763 = vmatpush1.msra.mxu0 0.0
        %2764 = vmatprep.subr.mxu0 0.0
        %2765 = vmatpush1.msra.mxu0 0.0
        %2766 = vmatprep.subr.mxu0 0.0
        %2767 = vmatpush1.msra.mxu0 0.0
        %2768 = vmatprep.subr.mxu0 0.0
        %2769 = vmatpush1.msra.mxu0 0.0
        %2770 = vmatprep.subr.mxu0 0.0
        %2771 = vmatpush1.msra.mxu0 0.0
        %2772 = vmatprep.subr.mxu0 0.0
        %2773 = vmatpush1.msra.mxu0 0.0
        %2774 = vmatprep.subr.mxu0 0.0
        %2775 = vmatpush1.msra.mxu0 0.0
        %2776 = vmatprep.subr.mxu0 0.0
        %2777 = vmatpush1.msra.mxu0 0.0
        %2778 = vmatprep.subr.mxu0 0.0
        %2779 = vmatpush1.msra.mxu0 0.0
        %2780 = vmatprep.subr.mxu0 0.0
        %2781 = vmatpush1.msra.mxu0 0.0
        %2782 = vmatprep.subr.mxu0 0.0
        %2783 = vmatpush1.msra.mxu0 0.0
        %2784 = vmatprep.subr.mxu0 0.0
        %2785 = vmatpush1.msra.mxu0 0.0
        %2786 = vmatprep.subr.mxu0 0.0
        %2787 = vmatpush1.msra.mxu0 0.0
        %2788 = vmatprep.subr.mxu0 0.0
        %2789 = vmatpush1.msra.mxu0 0.0
        %2790 = vmatprep.mubr.f32.mxu0 0.0
        %v2791 = vand.u32 %v2448, 4294901760
        %v2792 = vsub.f32 %v2448, %v2791
        %2793 = vmatmul.mubr.f32.gmra.mrb[0].mxu0 %v2792
        %v2794 = vpop.f32.mrb[0].mxu0
        %v2795 = vadd.f32 %v2690, %v2794
        %v2796 = vpop.f32.mrb[0].mxu0
        %v2797 = vadd.f32 %v2692, %v2796
        %2798 = vdwg.mxu0
        %v2799 = vand.u32 %v284, 4294901760
        %2800 = vmatprep.subr.mxu0 %v2799
        %v2801 = vand.u32 %v283, 4294901760
        %2802 = vmatpush1.msra.mxu0 %v2801
        %v2803 = vand.u32 %v286, 4294901760
        %2804 = vmatprep.subr.mxu0 %v2803
        %v2805 = vand.u32 %v285, 4294901760
        %2806 = vmatpush1.msra.mxu0 %v2805
        %v2807 = vand.u32 %v288, 4294901760
        %2808 = vmatprep.subr.mxu0 %v2807
        %v2809 = vand.u32 %v287, 4294901760
        %2810 = vmatpush1.msra.mxu0 %v2809
        %v2811 = vand.u32 %v290, 4294901760
        %2812 = vmatprep.subr.mxu0 %v2811
        %v2813 = vand.u32 %v289, 4294901760
        %2814 = vmatpush1.msra.mxu0 %v2813
        %v2815 = vand.u32 %v292, 4294901760
        %2816 = vmatprep.subr.mxu0 %v2815
        %v2817 = vand.u32 %v291, 4294901760
        %2818 = vmatpush1.msra.mxu0 %v2817
        %v2819 = vand.u32 %v294, 4294901760
        %2820 = vmatprep.subr.mxu0 %v2819
        %v2821 = vand.u32 %v293, 4294901760
        %2822 = vmatpush1.msra.mxu0 %v2821
        %v2823 = vand.u32 %v296, 4294901760
        %2824 = vmatprep.subr.mxu0 %v2823
        %v2825 = vand.u32 %v295, 4294901760
        %2826 = vmatpush1.msra.mxu0 %v2825
        %v2827 = vand.u32 %v298, 4294901760
        %2828 = vmatprep.subr.mxu0 %v2827
        %v2829 = vand.u32 %v297, 4294901760
        %2830 = vmatpush1.msra.mxu0 %v2829
        %2831 = vmatprep.subr.mxu0 0.0
        %2832 = vmatpush1.msra.mxu0 0.0
        %2833 = vmatprep.subr.mxu0 0.0
        %2834 = vmatpush1.msra.mxu0 0.0
        %2835 = vmatprep.subr.mxu0 0.0
        %2836 = vmatpush1.msra.mxu0 0.0
        %2837 = vmatprep.subr.mxu0 0.0
        %2838 = vmatpush1.msra.mxu0 0.0
        %2839 = vmatprep.subr.mxu0 0.0
        %2840 = vmatpush1.msra.mxu0 0.0
        %2841 = vmatprep.subr.mxu0 0.0
        %2842 = vmatpush1.msra.mxu0 0.0
        %2843 = vmatprep.subr.mxu0 0.0
        %2844 = vmatpush1.msra.mxu0 0.0
        %2845 = vmatprep.subr.mxu0 0.0
        %2846 = vmatpush1.msra.mxu0 0.0
        %2847 = vmatprep.subr.mxu0 0.0
        %2848 = vmatpush1.msra.mxu0 0.0
        %2849 = vmatprep.subr.mxu0 0.0
        %2850 = vmatpush1.msra.mxu0 0.0
        %2851 = vmatprep.subr.mxu0 0.0
        %2852 = vmatpush1.msra.mxu0 0.0
        %2853 = vmatprep.subr.mxu0 0.0
        %2854 = vmatpush1.msra.mxu0 0.0
        %2855 = vmatprep.subr.mxu0 0.0
        %2856 = vmatpush1.msra.mxu0 0.0
        %2857 = vmatprep.subr.mxu0 0.0
        %2858 = vmatpush1.msra.mxu0 0.0
        %2859 = vmatprep.subr.mxu0 0.0
        %2860 = vmatpush1.msra.mxu0 0.0
        %2861 = vmatprep.subr.mxu0 0.0
        %2862 = vmatpush1.msra.mxu0 0.0
        %2863 = vmatprep.subr.mxu0 0.0
        %2864 = vmatpush1.msra.mxu0 0.0
        %2865 = vmatprep.subr.mxu0 0.0
        %2866 = vmatpush1.msra.mxu0 0.0
        %2867 = vmatprep.subr.mxu0 0.0
        %2868 = vmatpush1.msra.mxu0 0.0
        %2869 = vmatprep.subr.mxu0 0.0
        %2870 = vmatpush1.msra.mxu0 0.0
        %2871 = vmatprep.subr.mxu0 0.0
        %2872 = vmatpush1.msra.mxu0 0.0
        %2873 = vmatprep.subr.mxu0 0.0
        %2874 = vmatpush1.msra.mxu0 0.0
        %2875 = vmatprep.subr.mxu0 0.0
        %2876 = vmatpush1.msra.mxu0 0.0
        %2877 = vmatprep.subr.mxu0 0.0
        %2878 = vmatpush1.msra.mxu0 0.0
        %2879 = vmatprep.mubr.f32.mxu0 0.0
        %v2880 = vand.u32 %v2448, 4294901760
        %v2881 = vsub.f32 %v2448, %v2880
        %v2882 = vand.u32 %v2881, 4294901760
        %2883 = vmatmul.mubr.f32.gmra.mrb[0].mxu0 %v2882
        %v2884 = vpop.f32.mrb[0].mxu0
        %v2885 = vadd.f32 %v2795, %v2884
        %v2886 = vpop.f32.mrb[0].mxu0
        %v2887 = vadd.f32 %v2797, %v2886
        %2888 = vdwg.mxu0
        %v2889 = vand.u32 %v284, 4294901760
        %v2890 = vsub.f32 %v284, %v2889
        %v2891 = vand.u32 %v2890, 4294901760
        %2892 = vmatprep.subr.mxu0 %v2891
        %v2893 = vand.u32 %v283, 4294901760
        %v2894 = vsub.f32 %v283, %v2893
        %v2895 = vand.u32 %v2894, 4294901760
        %2896 = vmatpush1.msra.mxu0 %v2895
        %v2897 = vand.u32 %v286, 4294901760
        %v2898 = vsub.f32 %v286, %v2897
        %v2899 = vand.u32 %v2898, 4294901760
        %2900 = vmatprep.subr.mxu0 %v2899
        %v2901 = vand.u32 %v285, 4294901760
        %v2902 = vsub.f32 %v285, %v2901
        %v2903 = vand.u32 %v2902, 4294901760
        %2904 = vmatpush1.msra.mxu0 %v2903
        %v2905 = vand.u32 %v288, 4294901760
        %v2906 = vsub.f32 %v288, %v2905
        %v2907 = vand.u32 %v2906, 4294901760
        %2908 = vmatprep.subr.mxu0 %v2907
        %v2909 = vand.u32 %v287, 4294901760
        %v2910 = vsub.f32 %v287, %v2909
        %v2911 = vand.u32 %v2910, 4294901760
        %2912 = vmatpush1.msra.mxu0 %v2911
        %v2913 = vand.u32 %v290, 4294901760
        %v2914 = vsub.f32 %v290, %v2913
        %v2915 = vand.u32 %v2914, 4294901760
        %2916 = vmatprep.subr.mxu0 %v2915
        %v2917 = vand.u32 %v289, 4294901760
        %v2918 = vsub.f32 %v289, %v2917
        %v2919 = vand.u32 %v2918, 4294901760
        %2920 = vmatpush1.msra.mxu0 %v2919
        %v2921 = vand.u32 %v292, 4294901760
        %v2922 = vsub.f32 %v292, %v2921
        %v2923 = vand.u32 %v2922, 4294901760
        %2924 = vmatprep.subr.mxu0 %v2923
        %v2925 = vand.u32 %v291, 4294901760
        %v2926 = vsub.f32 %v291, %v2925
        %v2927 = vand.u32 %v2926, 4294901760
        %2928 = vmatpush1.msra.mxu0 %v2927
        %v2929 = vand.u32 %v294, 4294901760
        %v2930 = vsub.f32 %v294, %v2929
        %v2931 = vand.u32 %v2930, 4294901760
        %2932 = vmatprep.subr.mxu0 %v2931
        %v2933 = vand.u32 %v293, 4294901760
        %v2934 = vsub.f32 %v293, %v2933
        %v2935 = vand.u32 %v2934, 4294901760
        %2936 = vmatpush1.msra.mxu0 %v2935
        %v2937 = vand.u32 %v296, 4294901760
        %v2938 = vsub.f32 %v296, %v2937
        %v2939 = vand.u32 %v2938, 4294901760
        %2940 = vmatprep.subr.mxu0 %v2939
        %v2941 = vand.u32 %v295, 4294901760
        %v2942 = vsub.f32 %v295, %v2941
        %v2943 = vand.u32 %v2942, 4294901760
        %2944 = vmatpush1.msra.mxu0 %v2943
        %v2945 = vand.u32 %v298, 4294901760
        %v2946 = vsub.f32 %v298, %v2945
        %v2947 = vand.u32 %v2946, 4294901760
        %2948 = vmatprep.subr.mxu0 %v2947
        %v2949 = vand.u32 %v297, 4294901760
        %v2950 = vsub.f32 %v297, %v2949
        %v2951 = vand.u32 %v2950, 4294901760
        %2952 = vmatpush1.msra.mxu0 %v2951
        %2953 = vmatprep.subr.mxu0 0.0
        %2954 = vmatpush1.msra.mxu0 0.0
        %2955 = vmatprep.subr.mxu0 0.0
        %2956 = vmatpush1.msra.mxu0 0.0
        %2957 = vmatprep.subr.mxu0 0.0
        %2958 = vmatpush1.msra.mxu0 0.0
        %2959 = vmatprep.subr.mxu0 0.0
        %2960 = vmatpush1.msra.mxu0 0.0
        %2961 = vmatprep.subr.mxu0 0.0
        %2962 = vmatpush1.msra.mxu0 0.0
        %2963 = vmatprep.subr.mxu0 0.0
        %2964 = vmatpush1.msra.mxu0 0.0
        %2965 = vmatprep.subr.mxu0 0.0
        %2966 = vmatpush1.msra.mxu0 0.0
        %2967 = vmatprep.subr.mxu0 0.0
        %2968 = vmatpush1.msra.mxu0 0.0
        %2969 = vmatprep.subr.mxu0 0.0
        %2970 = vmatpush1.msra.mxu0 0.0
        %2971 = vmatprep.subr.mxu0 0.0
        %2972 = vmatpush1.msra.mxu0 0.0
        %2973 = vmatprep.subr.mxu0 0.0
        %2974 = vmatpush1.msra.mxu0 0.0
        %2975 = vmatprep.subr.mxu0 0.0
        %2976 = vmatpush1.msra.mxu0 0.0
        %2977 = vmatprep.subr.mxu0 0.0
        %2978 = vmatpush1.msra.mxu0 0.0
        %2979 = vmatprep.subr.mxu0 0.0
        %2980 = vmatpush1.msra.mxu0 0.0
        %2981 = vmatprep.subr.mxu0 0.0
        %2982 = vmatpush1.msra.mxu0 0.0
        %2983 = vmatprep.subr.mxu0 0.0
        %2984 = vmatpush1.msra.mxu0 0.0
        %2985 = vmatprep.subr.mxu0 0.0
        %2986 = vmatpush1.msra.mxu0 0.0
        %2987 = vmatprep.subr.mxu0 0.0
        %2988 = vmatpush1.msra.mxu0 0.0
        %2989 = vmatprep.subr.mxu0 0.0
        %2990 = vmatpush1.msra.mxu0 0.0
        %2991 = vmatprep.subr.mxu0 0.0
        %2992 = vmatpush1.msra.mxu0 0.0
        %2993 = vmatprep.subr.mxu0 0.0
        %2994 = vmatpush1.msra.mxu0 0.0
        %2995 = vmatprep.subr.mxu0 0.0
        %2996 = vmatpush1.msra.mxu0 0.0
        %2997 = vmatprep.subr.mxu0 0.0
        %2998 = vmatpush1.msra.mxu0 0.0
        %2999 = vmatprep.subr.mxu0 0.0
        %3000 = vmatpush1.msra.mxu0 0.0
        %3001 = vmatprep.mubr.f32.mxu0 0.0
        %v3002 = vand.u32 %v2448, 4294901760
        %3003 = vmatmul.mubr.f32.gmra.mrb[0].mxu0 %v3002
        %v3004 = vpop.f32.mrb[0].mxu0
        %v3005 = vadd.f32 %v2885, %v3004
        %v3006 = vpop.f32.mrb[0].mxu0
        %v3007 = vadd.f32 %v2887, %v3006
        %3008 = vdwg.mxu0
        %v3009 = vand.u32 %v284, 4294901760
        %3010 = vmatprep.subr.mxu0 %v3009
        %v3011 = vand.u32 %v283, 4294901760
        %3012 = vmatpush1.msra.mxu0 %v3011
        %v3013 = vand.u32 %v286, 4294901760
        %3014 = vmatprep.subr.mxu0 %v3013
        %v3015 = vand.u32 %v285, 4294901760
        %3016 = vmatpush1.msra.mxu0 %v3015
        %v3017 = vand.u32 %v288, 4294901760
        %3018 = vmatprep.subr.mxu0 %v3017
        %v3019 = vand.u32 %v287, 4294901760
        %3020 = vmatpush1.msra.mxu0 %v3019
        %v3021 = vand.u32 %v290, 4294901760
        %3022 = vmatprep.subr.mxu0 %v3021
        %v3023 = vand.u32 %v289, 4294901760
        %3024 = vmatpush1.msra.mxu0 %v3023
        %v3025 = vand.u32 %v292, 4294901760
        %3026 = vmatprep.subr.mxu0 %v3025
        %v3027 = vand.u32 %v291, 4294901760
        %3028 = vmatpush1.msra.mxu0 %v3027
        %v3029 = vand.u32 %v294, 4294901760
        %3030 = vmatprep.subr.mxu0 %v3029
        %v3031 = vand.u32 %v293, 4294901760
        %3032 = vmatpush1.msra.mxu0 %v3031
        %v3033 = vand.u32 %v296, 4294901760
        %3034 = vmatprep.subr.mxu0 %v3033
        %v3035 = vand.u32 %v295, 4294901760
        %3036 = vmatpush1.msra.mxu0 %v3035
        %v3037 = vand.u32 %v298, 4294901760
        %3038 = vmatprep.subr.mxu0 %v3037
        %v3039 = vand.u32 %v297, 4294901760
        %3040 = vmatpush1.msra.mxu0 %v3039
        %3041 = vmatprep.subr.mxu0 0.0
        %3042 = vmatpush1.msra.mxu0 0.0
        %3043 = vmatprep.subr.mxu0 0.0
        %3044 = vmatpush1.msra.mxu0 0.0
        %3045 = vmatprep.subr.mxu0 0.0
        %3046 = vmatpush1.msra.mxu0 0.0
        %3047 = vmatprep.subr.mxu0 0.0
        %3048 = vmatpush1.msra.mxu0 0.0
        %3049 = vmatprep.subr.mxu0 0.0
        %3050 = vmatpush1.msra.mxu0 0.0
        %3051 = vmatprep.subr.mxu0 0.0
        %3052 = vmatpush1.msra.mxu0 0.0
        %3053 = vmatprep.subr.mxu0 0.0
        %3054 = vmatpush1.msra.mxu0 0.0
        %3055 = vmatprep.subr.mxu0 0.0
        %3056 = vmatpush1.msra.mxu0 0.0
        %3057 = vmatprep.subr.mxu0 0.0
        %3058 = vmatpush1.msra.mxu0 0.0
        %3059 = vmatprep.subr.mxu0 0.0
        %3060 = vmatpush1.msra.mxu0 0.0
        %3061 = vmatprep.subr.mxu0 0.0
        %3062 = vmatpush1.msra.mxu0 0.0
        %3063 = vmatprep.subr.mxu0 0.0
        %3064 = vmatpush1.msra.mxu0 0.0
        %3065 = vmatprep.subr.mxu0 0.0
        %3066 = vmatpush1.msra.mxu0 0.0
        %3067 = vmatprep.subr.mxu0 0.0
        %3068 = vmatpush1.msra.mxu0 0.0
        %3069 = vmatprep.subr.mxu0 0.0
        %3070 = vmatpush1.msra.mxu0 0.0
        %3071 = vmatprep.subr.mxu0 0.0
        %3072 = vmatpush1.msra.mxu0 0.0
        %3073 = vmatprep.subr.mxu0 0.0
        %3074 = vmatpush1.msra.mxu0 0.0
        %3075 = vmatprep.subr.mxu0 0.0
        %3076 = vmatpush1.msra.mxu0 0.0
        %3077 = vmatprep.subr.mxu0 0.0
        %3078 = vmatpush1.msra.mxu0 0.0
        %3079 = vmatprep.subr.mxu0 0.0
        %3080 = vmatpush1.msra.mxu0 0.0
        %3081 = vmatprep.subr.mxu0 0.0
        %3082 = vmatpush1.msra.mxu0 0.0
        %3083 = vmatprep.subr.mxu0 0.0
        %3084 = vmatpush1.msra.mxu0 0.0
        %3085 = vmatprep.subr.mxu0 0.0
        %3086 = vmatpush1.msra.mxu0 0.0
        %3087 = vmatprep.subr.mxu0 0.0
        %3088 = vmatpush1.msra.mxu0 0.0
        %3089 = vmatprep.mubr.f32.mxu0 0.0
        %v3090 = vand.u32 %v2448, 4294901760
        %3091 = vmatmul.mubr.f32.gmra.mrb[0].mxu0 %v3090
        %v3092 = vpop.f32.mrb[0].mxu0
        %v3093 = vadd.f32 %v3005, %v3092
        %v3094 = vpop.f32.mrb[0].mxu0
        %v3095 = vadd.f32 %v3007, %v3094
        %3096 = vdwg.mxu0
        %s3097 = scalar_lea.vmem %s259, 12
        %v3098 = vld [vmem:[%s3097] sm:$0xf]
        %v3099 = vadd.f32 %v3098, %v3093
        %v3100 = vxor.u32 %v3099, 2147483648
        %v3101 = vmul.f32 %v3100, 1.442695
        %v3102 = vpow.pop %v3101
        %v3103 = vadd.f32 %v3102, 1.0
        %v3104 = vrcp.pop %v3103
        %v3105 = vmul.f32 1.0, %v3104
        %v3106 = vadd.f32 %v3095, %v968
        %v3107 = vmul.f32 %v3105, %v3106
        %v3109 = vrot.slane %v3098, 2
        %v3111 = vadd.f32 %v3109, %v3107
        %v3112 = vtanh.pop %v3111
        %v3113 = vsub.f32 1.0, %v3105
        %3115 = vrot.lane.b32.xlu0 %v3112, 64
        %v3116 = vpop.permute.xlu0 %3115
        %v3118 = vmul.f32 %v3113, %v3116
        %v3120 = vunpack.c.l.s4 1983009808
        %v3121 = vunpack.c.0.s8 %v3120
        %v3122 = vlaneseq
        %v3123 = vshrl.u32 %v3122, 7
        %v3124 = vsub.s32 %v3121, %v3123
        %v3125 = vrot.slane %v2444, %v3124
        %3126 = vrot.lane.b32.xlu0 %v3125, 64
        %v3127 = vpop.permute.xlu0 %3126
        %v3129 = vmul.f32 %v3105, %v3127
        %v3130 = vadd.f32 %v3118, %v3129
        %v3131 = vstv %s2445
        %v3132 = vstv %s2446
        %v3133 = vsel %vm301, %v3131, %v3132
        %vm3134 = vcmp.lt.s32.totalorder %v3133, %v1000
        %v3137 = vunpack.c.l.s4 1983009808
        %v3138 = vunpack.c.0.s8 %v3137
        %v3139 = vlaneseq
        %v3140 = vshrl.u32 %v3139, 7
        %v3141 = vsub.s32 %v3138, %v3140
        %v3142 = vrot.slane %v3130, %v3141
        %3143 = vrot.lane.b32.xlu0 %v3142, 64
        %v3144 = vpop.permute.xlu0 %3143
        %v3146 = vsel %vm3134, %v3144, 0.0
        %s3147 = scalar_lea.vmem %s265, 6
        %3148 = vst.msk [vmem:[%s3147] sm:$0x3] %vm1014, %v3146
        %3150 = vrot.lane.b32.xlu0 %v3146, 96
        %v3151 = vpop.permute.xlu0 %3150
        %3153 = vst.msk [vmem:[%s272] sm:$0x3] %vm1014, %v3151
        %v3154 = vsel %vm3134, %v3144, %v2444
        %vm3155 = vcmask 517120
        %3156 = vst.msk [vmem:[#allocation2] sm:$0x3] %vm3155, %v3154
        %p3157 = scmp.eq.s32.totalorder %s19, 2
        // Predicated region
        $region41: #{_lambda_.1} parent=35 // pred_check
          %p3158 = pneg %p3157
        $region42: #{_lambda_.1} parent=35 // pred_check_branch
          %3160 = sbr.rel (%p3158) target = $region44
        $region43: #{_lambda_.1} parent=35 // pred_region
          %3161 = vst.msk [vmem:[#allocation3] sm:$0x3] %vm1014, %v3154
          %3163 = vrot.lane.b32.xlu0 %v3154, 96
          %v3164 = vpop.permute.xlu0 %3163
          %s3166 = scalar_lea.vmem [#allocation3], 2
          %3167 = vst.msk [vmem:[%s3166] sm:$0x3] %vm1014, %v3164
        $region44: #{_lambda_.1} parent=35 // pred_fallthru
          _
        %s3168 = smul.u32 4, %s19
        %p3169 = scmp.lt.s32.totalorder %s3168, 11
        %s3170 = scalar_select %p3169, %s3168, 11
        %s3171 = smul.addr %s3170, 2
        %s3172 = scalar_lea.vmem %s4, %s3171
        %s3173 = ssub.s32 2, %s19
        %s3174 = smul.u32 4, %s3173
        %p3175 = scmp.lt.s32.totalorder %s3174, 11
        %s3176 = scalar_select %p3175, %s3174, 11
        %s3177 = smul.addr %s3176, 2
        %s3178 = scalar_lea.vmem %s5, %s3177
        // Predicated region
        $region45: #{_lambda_.1} parent=35 // pred_check
          %p3179 = pneg %p126
        $region46: #{_lambda_.1} parent=35 // pred_check_branch
          %3181 = sbr.rel (%p3179) target = $region48
        $region47: #{_lambda_.1} parent=35 // pred_region
          %s3182 = smul.u32 4, %s19
        $region48: #{_lambda_.1} parent=35 // pred_fallthru
          _
        // Predicated region
        $region49: #{_lambda_.1} parent=35 // pred_check
          %p3183 = pneg %p154
        $region50: #{_lambda_.1} parent=35 // pred_check_branch
          %3185 = sbr.rel (%p3183) target = $region52
        $region51: #{_lambda_.1} parent=35 // pred_region
          %s3186 = ssub.s32 2, %s19
          %s3187 = smul.u32 4, %s3186
        $region52: #{_lambda_.1} parent=35 // pred_fallthru
          _
        // Predicated region
        $region53: #{_lambda_.1} parent=35 // pred_check
          %p3188 = pneg %p175
        $region54: #{_lambda_.1} parent=35 // pred_check_branch
          %3190 = sbr.rel (%p3188) target = $region56
        $region55: #{_lambda_.1} parent=35 // pred_region
          %s3192 = ssub.s32 64, 64
          %3193 = vsyncadd [#allocation4], %s3192
          %s3194 = sshll.u32 [#allocation3], 4
          %s3195 = int_to_ptr.vmem [resolvable:$true] %s3194
          %3200 = dma.vmem_to_hbm [thread:$0]  %s3195, 64, %s6, [#allocation4], 32, 32, 2
        $region56: #{_lambda_.1} parent=35 // pred_fallthru
          _
        // Predicated region
        $region57: #{_lambda_.1} parent=35 // pred_check
          %p3201 = pneg %p175
        $region58: #{_lambda_.1} parent=35 // pred_check_branch
          %3203 = sbr.rel (%p3201) target = $region60
        $region59: #{_lambda_.1} parent=35 // pred_region
          %3204 = dma.done [#allocation4], 64
        $region60: #{_lambda_.1} parent=35 // pred_fallthru
          _
      $region36: #{_lambda_.1} parent=5 // pred_fallthru
        _
      %p3205 = scmp.le.s32.totalorder 2, %s14
      // Predicated region
      $region61: #{_lambda_.1} parent=5 // pred_check
        %p3206 = pneg %p3205
      $region62: #{_lambda_.1} parent=5 // pred_check_branch
        %3208 = sbr.rel (%p3206) target = $region64
      $region63: #{_lambda_.1} parent=5 // pred_region
        %s3209 = ssub.s32 %s14, 2
        // Predicated region
        $region65: #{_lambda_.1} parent=63 // pred_check
          %p3210 = pneg %p132
        $region66: #{_lambda_.1} parent=63 // pred_check_branch
          %3212 = sbr.rel (%p3210) target = $region68
        $region67: #{_lambda_.1} parent=63 // pred_region
          %s3213 = smul.u32 4, %s20
          %p3214 = scmp.lt.s32.totalorder %s3213, 11
          %s3215 = scalar_select %p3214, %s3213, 11
          %s3216 = smul.addr %s3215, 2
          %s3217 = scalar_lea.vmem %s4, %s3216
        $region68: #{_lambda_.1} parent=63 // pred_fallthru
          _
        // Predicated region
        $region69: #{_lambda_.1} parent=63 // pred_check
          %p3218 = pneg %p160
        $region70: #{_lambda_.1} parent=63 // pred_check_branch
          %3220 = sbr.rel (%p3218) target = $region72
        $region71: #{_lambda_.1} parent=63 // pred_region
          %s3221 = ssub.s32 2, %s20
          %s3222 = smul.u32 4, %s3221
          %p3223 = scmp.lt.s32.totalorder %s3222, 11
          %s3224 = scalar_select %p3223, %s3222, 11
          %s3225 = smul.addr %s3224, 2
          %s3226 = scalar_lea.vmem %s5, %s3225
        $region72: #{_lambda_.1} parent=63 // pred_fallthru
          _
      $region64: #{_lambda_.1} parent=5 // pred_fallthru
        _
    $region6: #{_lambda_.1} parent=1 // loop_footer
      %s18 = sadd.s32 1, %s14
    $region7: #{_lambda_.1} parent=1 // loop_footer_branch
      %13 = sbr.rel target = $region3
    $region8: #{_lambda_.1} parent=1 // loop_exit
      _
    %3227 = vsyncpa [#allocation4], 1
    %s3228 = scalar_lea.sflag [#allocation4], 1
    %3229 = vsyncpa %s3228, 1

</llo_original>
